<compile_context>
chip_gen: v6e
topology: v6e:2x2x1
jax: 0.10.0
libtpu: 0.0.40
codegen_flags: <defaults>
</compile_context>

<pallas_src>
import math

import jax
import jax.numpy as jnp
from jax import lax
from jax.experimental import pallas as pl
from jax.experimental.pallas import tpu as pltpu

_LN_EPS = 1e-5  # torch.nn.LayerNorm default

_PARAM_ORDER = ("wq", "bq", "wk", "bk", "wv", "bv", "wo", "bo",
                "g1", "be1", "w1", "bf1", "w2", "bf2", "g2", "be2")


def _layer_norm(x, gamma, beta):
    """LayerNorm over the last axis (biased variance, like torch)."""
    mu = jnp.mean(x, axis=-1, keepdims=True)
    var = jnp.mean(jnp.square(x - mu), axis=-1, keepdims=True)
    return (x - mu) * lax.rsqrt(var + _LN_EPS) * gamma + beta


# -----------------------------------------------------------------------------
# Kernel: one encoder block for one batch element; grid = (batch, layer).
# -----------------------------------------------------------------------------
def _encoder_stack_kernel(
    x_ref,                                   # (1, S, D) activation block
    wq_ref, bq_ref,                          # (1, H, D, Dh), (1, H, 1, Dh)
    wk_ref, bk_ref,
    wv_ref, bv_ref,
    wo_ref, bo_ref,                          # (1, H, Dh, D), (1, 1, D)
    g1_ref, be1_ref,                         # (1, 1, D), (1, 1, D)
    w1_ref, bf1_ref,                         # (1, D, F), (1, 1, F)
    w2_ref, bf2_ref,                         # (1, F, D), (1, 1, D)
    g2_ref, be2_ref,                         # (1, 1, D), (1, 1, D)
    o_ref,                                   # (1, S, D)
    carry_ref,                               # VMEM (S, D) f32 — activation carry
):
    l = pl.program_id(1)

    # First layer for this batch element: load activations into the carry.
    @pl.when(l == 0)
    def _():
        carry_ref[...] = x_ref[0].astype(jnp.float32)

    x = carry_ref[...]                       # (S, D), f32
    H, Dh = wq_ref.shape[1], wq_ref.shape[3]
    scale = 1.0 / math.sqrt(Dh)

    # ---- multi-head self-attention (mask=None; eval mode -> dropout = id) ----
    # TODO(synk): additive attention mask and train-mode dropout not implemented.
    attn = jnp.zeros(x.shape, jnp.float32)
    for h in range(H):                       # static unroll over heads
        q_h = jnp.dot(x, wq_ref[0, h], preferred_element_type=jnp.float32) + bq_ref[0, h]
        k_h = jnp.dot(x, wk_ref[0, h], preferred_element_type=jnp.float32) + bk_ref[0, h]
        v_h = jnp.dot(x, wv_ref[0, h], preferred_element_type=jnp.float32) + bv_ref[0, h]
        # q @ k^T: contract the head dims directly (no materialized transpose).
        s = lax.dot_general(q_h, k_h, (((1,), (1,)), ((), ())),
                            preferred_element_type=jnp.float32) * scale       # (S, S)
        s = s - jnp.max(s, axis=-1, keepdims=True)
        p = jnp.exp(s)
        p = p / jnp.sum(p, axis=-1, keepdims=True)
        o_h = jnp.dot(p, v_h, preferred_element_type=jnp.float32)             # (S, Dh)
        # Fold concat + output projection: concat(heads) @ Wo == sum_h o_h @ Wo[h]
        attn = attn + jnp.dot(o_h, wo_ref[0, h], preferred_element_type=jnp.float32)
    attn = attn + bo_ref[0]

    # ---- residual + LayerNorm 1 ----
    x1 = _layer_norm(x + attn, g1_ref[0], be1_ref[0])

    # ---- feed-forward: Linear -> ReLU -> Linear (dropout = identity) ----
    hdn = jnp.dot(x1, w1_ref[0], preferred_element_type=jnp.float32) + bf1_ref[0]
    hdn = jnp.maximum(hdn, 0.0)
    ff = jnp.dot(hdn, w2_ref[0], preferred_element_type=jnp.float32) + bf2_ref[0]

    # ---- residual + LayerNorm 2 ----
    y = _layer_norm(x1 + ff, g2_ref[0], be2_ref[0])

    carry_ref[...] = y
    # Output block index is constant across the layer axis -> stays resident in
    # VMEM; HBM writeback happens once per batch element.
    o_ref[0] = y.astype(o_ref.dtype)


def _weight_spec(arr):
    """Full layer-slice block, indexed by the layer grid axis."""
    block = (1,) + arr.shape[1:]
    if arr.ndim == 4:
        return pl.BlockSpec(block, lambda b, l: (l, 0, 0, 0))
    return pl.BlockSpec(block, lambda b, l: (l, 0, 0))


# -----------------------------------------------------------------------------
# Wrapper: whole encoder stack in one pallas_call.
# -----------------------------------------------------------------------------
def transformer_encoder_forward(x, params, mask=None):
    """Equivalent of TransformerEncoder.forward (mask=None path)."""
    if mask is not None:
        # TODO(synk): attention mask path not implemented (module default is None).
        raise NotImplementedError("mask is not supported in this kernel")

    B, S, D = x.shape
    L = params["wq"].shape[0]
    weight_specs = [_weight_spec(params[name]) for name in _PARAM_ORDER]

    return pl.pallas_call(
        _encoder_stack_kernel,
        out_shape=jax.ShapeDtypeStruct((B, S, D), x.dtype),
        grid_spec=pltpu.PrefetchScalarGridSpec(
            num_scalar_prefetch=0,
            grid=(B, L),
            in_specs=[pl.BlockSpec((1, S, D), lambda b, l: (b, 0, 0))] + weight_specs,
            out_specs=pl.BlockSpec((1, S, D), lambda b, l: (b, 0, 0)),
            scratch_shapes=[pltpu.VMEM((S, D), jnp.float32)],
        ),
        compiler_params=pltpu.CompilerParams(
            # batch steps are independent -> shard across the 2 TCs on v7x;
            # the layer axis carries the activation -> "arbitrary".
            dimension_semantics=("parallel", "arbitrary"),
        ),
    )(x, *(params[name] for name in _PARAM_ORDER))


# -----------------------------------------------------------------------------
# Parameter construction + pure-JAX reference (same math, same layout).
# -----------------------------------------------------------------------------
def init_encoder_params(key, num_layers, d_model, num_heads, d_ff):
    assert d_model % num_heads == 0, "d_model must be divisible by num_heads"
    d_head = d_model // num_heads
    L, H = num_layers, num_heads
    ks = jax.random.split(key, 16)
    s_in = 1.0 / math.sqrt(d_model)
    s_ff = 1.0 / math.sqrt(d_ff)
    return dict(
        wq=jax.random.normal(ks[0], (L, H, d_model, d_head), jnp.float32) * s_in,
        bq=jax.random.normal(ks[1], (L, H, 1, d_head), jnp.float32) * 0.02,
        wk=jax.random.normal(ks[2], (L, H, d_model, d_head), jnp.float32) * s_in,
        bk=jax.random.normal(ks[3], (L, H, 1, d_head), jnp.float32) * 0.02,
        wv=jax.random.normal(ks[4], (L, H, d_model, d_head), jnp.float32) * s_in,
        bv=jax.random.normal(ks[5], (L, H, 1, d_head), jnp.float32) * 0.02,
        wo=jax.random.normal(ks[6], (L, H, d_head, d_model), jnp.float32) * s_in,
        bo=jax.random.normal(ks[7], (L, 1, d_model), jnp.float32) * 0.02,
        g1=1.0 + 0.1 * jax.random.normal(ks[8], (L, 1, d_model), jnp.float32),
        be1=0.1 * jax.random.normal(ks[9], (L, 1, d_model), jnp.float32),
        w1=jax.random.normal(ks[10], (L, d_model, d_ff), jnp.float32) * s_in,
        bf1=jax.random.normal(ks[11], (L, 1, d_ff), jnp.float32) * 0.02,
        w2=jax.random.normal(ks[12], (L, d_ff, d_model), jnp.float32) * s_ff,
        bf2=jax.random.normal(ks[13], (L, 1, d_model), jnp.float32) * 0.02,
        g2=1.0 + 0.1 * jax.random.normal(ks[14], (L, 1, d_model), jnp.float32),
        be2=0.1 * jax.random.normal(ks[15], (L, 1, d_model), jnp.float32),
    )


def _encoder_ref(x, p):
    """Pure-JAX reference with identical math/param layout."""
    hi = lax.Precision.HIGHEST
    L = p["wq"].shape[0]
    d_head = p["wq"].shape[-1]
    for l in range(L):
        q = jnp.einsum("bsd,hde->bhse", x, p["wq"][l], precision=hi) + p["bq"][l][None]
        k = jnp.einsum("bsd,hde->bhse", x, p["wk"][l], precision=hi) + p["bk"][l][None]
        v = jnp.einsum("bsd,hde->bhse", x, p["wv"][l], precision=hi) + p["bv"][l][None]
        s = jnp.einsum("bhqe,bhke->bhqk", q, k, precision=hi) / math.sqrt(d_head)
        a = jax.nn.softmax(s, axis=-1)
        o = jnp.einsum("bhqk,bhke->bhqe", a, v, precision=hi)
        attn = jnp.einsum("bhse,hed->bsd", o, p["wo"][l], precision=hi) + p["bo"][l][None]
        x = _layer_norm(x + attn, p["g1"][l], p["be1"][l])
        h = jax.nn.relu(jnp.einsum("bsd,df->bsf", x, p["w1"][l], precision=hi) + p["bf1"][l][None])
        ff = jnp.einsum("bsf,fd->bsd", h, p["w2"][l], precision=hi) + p["bf2"][l][None]
        x = _layer_norm(x + ff, p["g2"][l], p["be2"][l])
    return x


if __name__ == "__main__":
    B, S, D = 2, 8, 32          # batch, seq_len, input_dim
    H, F, L = 4, 64, 2          # num_heads, dim_feedforward, num_layers

    key = jax.random.PRNGKey(0)
    kx, kp = jax.random.split(key)
    x = jax.random.normal(kx, (B, S, D), dtype=jnp.float32)
    params = init_encoder_params(kp, L, D, H, F)

    fwd = jax.jit(transformer_encoder_forward)
    out = jax.block_until_ready(fwd(x, params))

    ref = jax.block_until_ready(_encoder_ref(x, params))

    assert out.shape == (B, S, D)
    max_err = float(jnp.max(jnp.abs(out - ref)))
    assert jnp.allclose(out, ref, atol=5e-3, rtol=5e-3), (
        f"mismatch vs reference (max abs err={max_err})")

    print("KERNEL_OK")
</pallas_src>

<mosaic_0001>
module attributes {stable_mosaic.version = 11 : i64} {
  func.func @_encoder_stack_kernel(%arg0: i32, %arg1: i32, %arg2: memref<1x8x32xf32, #tpu.memory_space<vmem>>, %arg3: memref<1x4x32x8xf32, #tpu.memory_space<vmem>>, %arg4: memref<1x4x1x8xf32, #tpu.memory_space<vmem>>, %arg5: memref<1x4x32x8xf32, #tpu.memory_space<vmem>>, %arg6: memref<1x4x1x8xf32, #tpu.memory_space<vmem>>, %arg7: memref<1x4x32x8xf32, #tpu.memory_space<vmem>>, %arg8: memref<1x4x1x8xf32, #tpu.memory_space<vmem>>, %arg9: memref<1x4x8x32xf32, #tpu.memory_space<vmem>>, %arg10: memref<1x1x32xf32, #tpu.memory_space<vmem>>, %arg11: memref<1x1x32xf32, #tpu.memory_space<vmem>>, %arg12: memref<1x1x32xf32, #tpu.memory_space<vmem>>, %arg13: memref<1x32x64xf32, #tpu.memory_space<vmem>>, %arg14: memref<1x1x64xf32, #tpu.memory_space<vmem>>, %arg15: memref<1x64x32xf32, #tpu.memory_space<vmem>>, %arg16: memref<1x1x32xf32, #tpu.memory_space<vmem>>, %arg17: memref<1x1x32xf32, #tpu.memory_space<vmem>>, %arg18: memref<1x1x32xf32, #tpu.memory_space<vmem>>, %arg19: memref<1x8x32xf32, #tpu.memory_space<vmem>>, %arg20: memref<8x32xf32, #tpu.memory_space<vmem>>) attributes {dimension_semantics = [#tpu.dimension_semantics<parallel>, #tpu.dimension_semantics<arbitrary>], iteration_bounds = array<i64: 2, 2>, scalar_prefetch = 0 : i64, scratch_operands = 1 : i64, tpu.core_type = #tpu.core_type<tc>, window_params = [{transform_indices = @transform_0, window_bounds = array<i64: 1, 8, 32>}, {transform_indices = @transform_1, window_bounds = array<i64: 1, 4, 32, 8>}, {transform_indices = @transform_2, window_bounds = array<i64: 1, 4, 1, 8>}, {transform_indices = @transform_3, window_bounds = array<i64: 1, 4, 32, 8>}, {transform_indices = @transform_4, window_bounds = array<i64: 1, 4, 1, 8>}, {transform_indices = @transform_5, window_bounds = array<i64: 1, 4, 32, 8>}, {transform_indices = @transform_6, window_bounds = array<i64: 1, 4, 1, 8>}, {transform_indices = @transform_7, window_bounds = array<i64: 1, 4, 8, 32>}, {transform_indices = @transform_8, window_bounds = array<i64: 1, 1, 32>}, {transform_indices = @transform_9, window_bounds = array<i64: 1, 1, 32>}, {transform_indices = @transform_10, window_bounds = array<i64: 1, 1, 32>}, {transform_indices = @transform_11, window_bounds = array<i64: 1, 32, 64>}, {transform_indices = @transform_12, window_bounds = array<i64: 1, 1, 64>}, {transform_indices = @transform_13, window_bounds = array<i64: 1, 64, 32>}, {transform_indices = @transform_14, window_bounds = array<i64: 1, 1, 32>}, {transform_indices = @transform_15, window_bounds = array<i64: 1, 1, 32>}, {transform_indices = @transform_16, window_bounds = array<i64: 1, 1, 32>}, {transform_indices = @transform_17, window_bounds = array<i64: 1, 8, 32>}]} {
    %c0_i32 = arith.constant 0 : i32
    %0 = arith.cmpi eq, %arg1, %c0_i32 : i32
    %1 = arith.extui %0 : i1 to i32
    %c0_i32_0 = arith.constant 0 : i32
    %2 = arith.cmpi ne, %1, %c0_i32_0 : i32
    scf.if %2 {
      %c0_192 = arith.constant 0 : index
      %c0_193 = arith.constant 0 : index
      %c0_194 = arith.constant 0 : index
      %235 = vector.load %arg2[%c0_192, %c0_193, %c0_194] : memref<1x8x32xf32, #tpu.memory_space<vmem>>, vector<1x8x32xf32>
      %236 = vector.shape_cast %235 : vector<1x8x32xf32> to vector<8x32xf32>
      %c0_195 = arith.constant 0 : index
      %c0_196 = arith.constant 0 : index
      %237 = vector.load %arg20[%c0_195, %c0_196] : memref<8x32xf32, #tpu.memory_space<vmem>>, vector<8x32xf32>
      tpu.vector_store %arg20[%c0_195, %c0_196], %236 {strides = array<i32>} : memref<8x32xf32, #tpu.memory_space<vmem>>, vector<8x32xf32>,
    } else {
    }
    %c0 = arith.constant 0 : index
    %c0_1 = arith.constant 0 : index
    %3 = vector.load %arg20[%c0, %c0_1] : memref<8x32xf32, #tpu.memory_space<vmem>>, vector<8x32xf32>
    %cst = arith.constant 0.000000e+00 : f32
    %4 = vector.broadcast %cst : f32 to vector<8x32xf32>
    %c0_2 = arith.constant 0 : index
    %c0_3 = arith.constant 0 : index
    %c0_4 = arith.constant 0 : index
    %c0_5 = arith.constant 0 : index
    %5 = vector.load %arg3[%c0_2, %c0_3, %c0_4, %c0_5] : memref<1x4x32x8xf32, #tpu.memory_space<vmem>>, vector<1x1x32x8xf32>
    %6 = vector.shape_cast %5 : vector<1x1x32x8xf32> to vector<32x8xf32>
    %cst_6 = arith.constant dense<0.000000e+00> : vector<8x8xf32>
    %7 = tpu.matmul %3, %6, %cst_6 {dimension_numbers = #tpu.dot_dimension_numbers<[1], [0], [0], [1], [0, 0, 1, 1], [], []>} : vector<8x32xf32>, vector<32x8xf32>, vector<8x8xf32> -> vector<8x8xf32>
    %c0_7 = arith.constant 0 : index
    %c0_8 = arith.constant 0 : index
    %c0_9 = arith.constant 0 : index
    %c0_10 = arith.constant 0 : index
    %8 = vector.load %arg4[%c0_7, %c0_8, %c0_9, %c0_10] : memref<1x4x1x8xf32, #tpu.memory_space<vmem>>, vector<1x1x1x8xf32>
    %9 = vector.shape_cast %8 : vector<1x1x1x8xf32> to vector<1x8xf32>
    %10 = vector.broadcast %9 : vector<1x8xf32> to vector<8x8xf32>
    %11 = arith.addf %7, %10 : vector<8x8xf32>
    %c0_11 = arith.constant 0 : index
    %c0_12 = arith.constant 0 : index
    %c0_13 = arith.constant 0 : index
    %c0_14 = arith.constant 0 : index
    %12 = vector.load %arg5[%c0_11, %c0_12, %c0_13, %c0_14] : memref<1x4x32x8xf32, #tpu.memory_space<vmem>>, vector<1x1x32x8xf32>
    %13 = vector.shape_cast %12 : vector<1x1x32x8xf32> to vector<32x8xf32>
    %cst_15 = arith.constant dense<0.000000e+00> : vector<8x8xf32>
    %14 = tpu.matmul %3, %13, %cst_15 {dimension_numbers = #tpu.dot_dimension_numbers<[1], [0], [0], [1], [0, 0, 1, 1], [], []>} : vector<8x32xf32>, vector<32x8xf32>, vector<8x8xf32> -> vector<8x8xf32>
    %c0_16 = arith.constant 0 : index
    %c0_17 = arith.constant 0 : index
    %c0_18 = arith.constant 0 : index
    %c0_19 = arith.constant 0 : index
    %15 = vector.load %arg6[%c0_16, %c0_17, %c0_18, %c0_19] : memref<1x4x1x8xf32, #tpu.memory_space<vmem>>, vector<1x1x1x8xf32>
    %16 = vector.shape_cast %15 : vector<1x1x1x8xf32> to vector<1x8xf32>
    %17 = vector.broadcast %16 : vector<1x8xf32> to vector<8x8xf32>
    %18 = arith.addf %14, %17 : vector<8x8xf32>
    %c0_20 = arith.constant 0 : index
    %c0_21 = arith.constant 0 : index
    %c0_22 = arith.constant 0 : index
    %c0_23 = arith.constant 0 : index
    %19 = vector.load %arg7[%c0_20, %c0_21, %c0_22, %c0_23] : memref<1x4x32x8xf32, #tpu.memory_space<vmem>>, vector<1x1x32x8xf32>
    %20 = vector.shape_cast %19 : vector<1x1x32x8xf32> to vector<32x8xf32>
    %cst_24 = arith.constant dense<0.000000e+00> : vector<8x8xf32>
    %21 = tpu.matmul %3, %20, %cst_24 {dimension_numbers = #tpu.dot_dimension_numbers<[1], [0], [0], [1], [0, 0, 1, 1], [], []>} : vector<8x32xf32>, vector<32x8xf32>, vector<8x8xf32> -> vector<8x8xf32>
    %c0_25 = arith.constant 0 : index
    %c0_26 = arith.constant 0 : index
    %c0_27 = arith.constant 0 : index
    %c0_28 = arith.constant 0 : index
    %22 = vector.load %arg8[%c0_25, %c0_26, %c0_27, %c0_28] : memref<1x4x1x8xf32, #tpu.memory_space<vmem>>, vector<1x1x1x8xf32>
    %23 = vector.shape_cast %22 : vector<1x1x1x8xf32> to vector<1x8xf32>
    %24 = vector.broadcast %23 : vector<1x8xf32> to vector<8x8xf32>
    %25 = arith.addf %21, %24 : vector<8x8xf32>
    %cst_29 = arith.constant dense<0.000000e+00> : vector<8x8xf32>
    %26 = tpu.matmul %11, %18, %cst_29 {dimension_numbers = #tpu.dot_dimension_numbers<[1], [1], [0], [0], [0, 0, 1, 0], [], []>} : vector<8x8xf32>, vector<8x8xf32>, vector<8x8xf32> -> vector<8x8xf32>
    %cst_30 = arith.constant 0.353553385 : f32
    %27 = vector.broadcast %cst_30 : f32 to vector<8x8xf32>
    %28 = arith.mulf %26, %27 : vector<8x8xf32>
    %cst_31 = arith.constant dense<0xFF800000> : vector<8xf32>
    %29 = vector.multi_reduction <maximumf>, %28, %cst_31 [1] : vector<8x8xf32> to vector<8xf32>
    %30 = vector.shape_cast %29 : vector<8xf32> to vector<8x1xf32>
    %31 = vector.broadcast %30 : vector<8x1xf32> to vector<8x8xf32>
    %32 = arith.subf %28, %31 : vector<8x8xf32>
    %33 = math.exp %32 : vector<8x8xf32>
    %cst_32 = arith.constant dense<0.000000e+00> : vector<8xf32>
    %34 = vector.multi_reduction <add>, %33, %cst_32 [1] : vector<8x8xf32> to vector<8xf32>
    %35 = vector.shape_cast %34 : vector<8xf32> to vector<8x1xf32>
    %36 = vector.broadcast %35 : vector<8x1xf32> to vector<8x8xf32>
    %37 = arith.divf %33, %36 : vector<8x8xf32>
    %cst_33 = arith.constant dense<0.000000e+00> : vector<8x8xf32>
    %38 = tpu.matmul %37, %25, %cst_33 {dimension_numbers = #tpu.dot_dimension_numbers<[1], [0], [0], [1], [0, 0, 1, 1], [], []>} : vector<8x8xf32>, vector<8x8xf32>, vector<8x8xf32> -> vector<8x8xf32>
    %c0_34 = arith.constant 0 : index
    %c0_35 = arith.constant 0 : index
    %c0_36 = arith.constant 0 : index
    %c0_37 = arith.constant 0 : index
    %39 = vector.load %arg9[%c0_34, %c0_35, %c0_36, %c0_37] : memref<1x4x8x32xf32, #tpu.memory_space<vmem>>, vector<1x1x8x32xf32>
    %40 = vector.shape_cast %39 : vector<1x1x8x32xf32> to vector<8x32xf32>
    %cst_38 = arith.constant dense<0.000000e+00> : vector<8x32xf32>
    %41 = tpu.matmul %38, %40, %cst_38 {dimension_numbers = #tpu.dot_dimension_numbers<[1], [0], [0], [1], [0, 0, 1, 1], [], []>} : vector<8x8xf32>, vector<8x32xf32>, vector<8x32xf32> -> vector<8x32xf32>
    %42 = arith.addf %4, %41 : vector<8x32xf32>
    %c0_39 = arith.constant 0 : index
    %c1 = arith.constant 1 : index
    %c0_40 = arith.constant 0 : index
    %c0_41 = arith.constant 0 : index
    %43 = vector.load %arg3[%c0_39, %c1, %c0_40, %c0_41] : memref<1x4x32x8xf32, #tpu.memory_space<vmem>>, vector<1x1x32x8xf32>
    %44 = vector.shape_cast %43 : vector<1x1x32x8xf32> to vector<32x8xf32>
    %cst_42 = arith.constant dense<0.000000e+00> : vector<8x8xf32>
    %45 = tpu.matmul %3, %44, %cst_42 {dimension_numbers = #tpu.dot_dimension_numbers<[1], [0], [0], [1], [0, 0, 1, 1], [], []>} : vector<8x32xf32>, vector<32x8xf32>, vector<8x8xf32> -> vector<8x8xf32>
    %c0_43 = arith.constant 0 : index
    %c1_44 = arith.constant 1 : index
    %c0_45 = arith.constant 0 : index
    %c0_46 = arith.constant 0 : index
    %46 = vector.load %arg4[%c0_43, %c1_44, %c0_45, %c0_46] : memref<1x4x1x8xf32, #tpu.memory_space<vmem>>, vector<1x1x1x8xf32>
    %47 = vector.shape_cast %46 : vector<1x1x1x8xf32> to vector<1x8xf32>
    %48 = vector.broadcast %47 : vector<1x8xf32> to vector<8x8xf32>
    %49 = arith.addf %45, %48 : vector<8x8xf32>
    %c0_47 = arith.constant 0 : index
    %c1_48 = arith.constant 1 : index
    %c0_49 = arith.constant 0 : index
    %c0_50 = arith.constant 0 : index
    %50 = vector.load %arg5[%c0_47, %c1_48, %c0_49, %c0_50] : memref<1x4x32x8xf32, #tpu.memory_space<vmem>>, vector<1x1x32x8xf32>
    %51 = vector.shape_cast %50 : vector<1x1x32x8xf32> to vector<32x8xf32>
    %cst_51 = arith.constant dense<0.000000e+00> : vector<8x8xf32>
    %52 = tpu.matmul %3, %51, %cst_51 {dimension_numbers = #tpu.dot_dimension_numbers<[1], [0], [0], [1], [0, 0, 1, 1], [], []>} : vector<8x32xf32>, vector<32x8xf32>, vector<8x8xf32> -> vector<8x8xf32>
    %c0_52 = arith.constant 0 : index
    %c1_53 = arith.constant 1 : index
    %c0_54 = arith.constant 0 : index
    %c0_55 = arith.constant 0 : index
    %53 = vector.load %arg6[%c0_52, %c1_53, %c0_54, %c0_55] : memref<1x4x1x8xf32, #tpu.memory_space<vmem>>, vector<1x1x1x8xf32>
    %54 = vector.shape_cast %53 : vector<1x1x1x8xf32> to vector<1x8xf32>
    %55 = vector.broadcast %54 : vector<1x8xf32> to vector<8x8xf32>
    %56 = arith.addf %52, %55 : vector<8x8xf32>
    %c0_56 = arith.constant 0 : index
    %c1_57 = arith.constant 1 : index
    %c0_58 = arith.constant 0 : index
    %c0_59 = arith.constant 0 : index
    %57 = vector.load %arg7[%c0_56, %c1_57, %c0_58, %c0_59] : memref<1x4x32x8xf32, #tpu.memory_space<vmem>>, vector<1x1x32x8xf32>
    %58 = vector.shape_cast %57 : vector<1x1x32x8xf32> to vector<32x8xf32>
    %cst_60 = arith.constant dense<0.000000e+00> : vector<8x8xf32>
    %59 = tpu.matmul %3, %58, %cst_60 {dimension_numbers = #tpu.dot_dimension_numbers<[1], [0], [0], [1], [0, 0, 1, 1], [], []>} : vector<8x32xf32>, vector<32x8xf32>, vector<8x8xf32> -> vector<8x8xf32>
    %c0_61 = arith.constant 0 : index
    %c1_62 = arith.constant 1 : index
    %c0_63 = arith.constant 0 : index
    %c0_64 = arith.constant 0 : index
    %60 = vector.load %arg8[%c0_61, %c1_62, %c0_63, %c0_64] : memref<1x4x1x8xf32, #tpu.memory_space<vmem>>, vector<1x1x1x8xf32>
    %61 = vector.shape_cast %60 : vector<1x1x1x8xf32> to vector<1x8xf32>
    %62 = vector.broadcast %61 : vector<1x8xf32> to vector<8x8xf32>
    %63 = arith.addf %59, %62 : vector<8x8xf32>
    %cst_65 = arith.constant dense<0.000000e+00> : vector<8x8xf32>
    %64 = tpu.matmul %49, %56, %cst_65 {dimension_numbers = #tpu.dot_dimension_numbers<[1], [1], [0], [0], [0, 0, 1, 0], [], []>} : vector<8x8xf32>, vector<8x8xf32>, vector<8x8xf32> -> vector<8x8xf32>
    %cst_66 = arith.constant 0.353553385 : f32
    %65 = vector.broadcast %cst_66 : f32 to vector<8x8xf32>
    %66 = arith.mulf %64, %65 : vector<8x8xf32>
    %cst_67 = arith.constant dense<0xFF800000> : vector<8xf32>
    %67 = vector.multi_reduction <maximumf>, %66, %cst_67 [1] : vector<8x8xf32> to vector<8xf32>
    %68 = vector.shape_cast %67 : vector<8xf32> to vector<8x1xf32>
    %69 = vector.broadcast %68 : vector<8x1xf32> to vector<8x8xf32>
    %70 = arith.subf %66, %69 : vector<8x8xf32>
    %71 = math.exp %70 : vector<8x8xf32>
    %cst_68 = arith.constant dense<0.000000e+00> : vector<8xf32>
    %72 = vector.multi_reduction <add>, %71, %cst_68 [1] : vector<8x8xf32> to vector<8xf32>
    %73 = vector.shape_cast %72 : vector<8xf32> to vector<8x1xf32>
    %74 = vector.broadcast %73 : vector<8x1xf32> to vector<8x8xf32>
    %75 = arith.divf %71, %74 : vector<8x8xf32>
    %cst_69 = arith.constant dense<0.000000e+00> : vector<8x8xf32>
    %76 = tpu.matmul %75, %63, %cst_69 {dimension_numbers = #tpu.dot_dimension_numbers<[1], [0], [0], [1], [0, 0, 1, 1], [], []>} : vector<8x8xf32>, vector<8x8xf32>, vector<8x8xf32> -> vector<8x8xf32>
    %c0_70 = arith.constant 0 : index
    %c1_71 = arith.constant 1 : index
    %c0_72 = arith.constant 0 : index
    %c0_73 = arith.constant 0 : index
    %77 = vector.load %arg9[%c0_70, %c1_71, %c0_72, %c0_73] : memref<1x4x8x32xf32, #tpu.memory_space<vmem>>, vector<1x1x8x32xf32>
    %78 = vector.shape_cast %77 : vector<1x1x8x32xf32> to vector<8x32xf32>
    %cst_74 = arith.constant dense<0.000000e+00> : vector<8x32xf32>
    %79 = tpu.matmul %76, %78, %cst_74 {dimension_numbers = #tpu.dot_dimension_numbers<[1], [0], [0], [1], [0, 0, 1, 1], [], []>} : vector<8x8xf32>, vector<8x32xf32>, vector<8x32xf32> -> vector<8x32xf32>
    %80 = arith.addf %42, %79 : vector<8x32xf32>
    %c0_75 = arith.constant 0 : index
    %c2 = arith.constant 2 : index
    %c0_76 = arith.constant 0 : index
    %c0_77 = arith.constant 0 : index
    %81 = vector.load %arg3[%c0_75, %c2, %c0_76, %c0_77] : memref<1x4x32x8xf32, #tpu.memory_space<vmem>>, vector<1x1x32x8xf32>
    %82 = vector.shape_cast %81 : vector<1x1x32x8xf32> to vector<32x8xf32>
    %cst_78 = arith.constant dense<0.000000e+00> : vector<8x8xf32>
    %83 = tpu.matmul %3, %82, %cst_78 {dimension_numbers = #tpu.dot_dimension_numbers<[1], [0], [0], [1], [0, 0, 1, 1], [], []>} : vector<8x32xf32>, vector<32x8xf32>, vector<8x8xf32> -> vector<8x8xf32>
    %c0_79 = arith.constant 0 : index
    %c2_80 = arith.constant 2 : index
    %c0_81 = arith.constant 0 : index
    %c0_82 = arith.constant 0 : index
    %84 = vector.load %arg4[%c0_79, %c2_80, %c0_81, %c0_82] : memref<1x4x1x8xf32, #tpu.memory_space<vmem>>, vector<1x1x1x8xf32>
    %85 = vector.shape_cast %84 : vector<1x1x1x8xf32> to vector<1x8xf32>
    %86 = vector.broadcast %85 : vector<1x8xf32> to vector<8x8xf32>
    %87 = arith.addf %83, %86 : vector<8x8xf32>
    %c0_83 = arith.constant 0 : index
    %c2_84 = arith.constant 2 : index
    %c0_85 = arith.constant 0 : index
    %c0_86 = arith.constant 0 : index
    %88 = vector.load %arg5[%c0_83, %c2_84, %c0_85, %c0_86] : memref<1x4x32x8xf32, #tpu.memory_space<vmem>>, vector<1x1x32x8xf32>
    %89 = vector.shape_cast %88 : vector<1x1x32x8xf32> to vector<32x8xf32>
    %cst_87 = arith.constant dense<0.000000e+00> : vector<8x8xf32>
    %90 = tpu.matmul %3, %89, %cst_87 {dimension_numbers = #tpu.dot_dimension_numbers<[1], [0], [0], [1], [0, 0, 1, 1], [], []>} : vector<8x32xf32>, vector<32x8xf32>, vector<8x8xf32> -> vector<8x8xf32>
    %c0_88 = arith.constant 0 : index
    %c2_89 = arith.constant 2 : index
    %c0_90 = arith.constant 0 : index
    %c0_91 = arith.constant 0 : index
    %91 = vector.load %arg6[%c0_88, %c2_89, %c0_90, %c0_91] : memref<1x4x1x8xf32, #tpu.memory_space<vmem>>, vector<1x1x1x8xf32>
    %92 = vector.shape_cast %91 : vector<1x1x1x8xf32> to vector<1x8xf32>
    %93 = vector.broadcast %92 : vector<1x8xf32> to vector<8x8xf32>
    %94 = arith.addf %90, %93 : vector<8x8xf32>
    %c0_92 = arith.constant 0 : index
    %c2_93 = arith.constant 2 : index
    %c0_94 = arith.constant 0 : index
    %c0_95 = arith.constant 0 : index
    %95 = vector.load %arg7[%c0_92, %c2_93, %c0_94, %c0_95] : memref<1x4x32x8xf32, #tpu.memory_space<vmem>>, vector<1x1x32x8xf32>
    %96 = vector.shape_cast %95 : vector<1x1x32x8xf32> to vector<32x8xf32>
    %cst_96 = arith.constant dense<0.000000e+00> : vector<8x8xf32>
    %97 = tpu.matmul %3, %96, %cst_96 {dimension_numbers = #tpu.dot_dimension_numbers<[1], [0], [0], [1], [0, 0, 1, 1], [], []>} : vector<8x32xf32>, vector<32x8xf32>, vector<8x8xf32> -> vector<8x8xf32>
    %c0_97 = arith.constant 0 : index
    %c2_98 = arith.constant 2 : index
    %c0_99 = arith.constant 0 : index
    %c0_100 = arith.constant 0 : index
    %98 = vector.load %arg8[%c0_97, %c2_98, %c0_99, %c0_100] : memref<1x4x1x8xf32, #tpu.memory_space<vmem>>, vector<1x1x1x8xf32>
    %99 = vector.shape_cast %98 : vector<1x1x1x8xf32> to vector<1x8xf32>
    %100 = vector.broadcast %99 : vector<1x8xf32> to vector<8x8xf32>
    %101 = arith.addf %97, %100 : vector<8x8xf32>
    %cst_101 = arith.constant dense<0.000000e+00> : vector<8x8xf32>
    %102 = tpu.matmul %87, %94, %cst_101 {dimension_numbers = #tpu.dot_dimension_numbers<[1], [1], [0], [0], [0, 0, 1, 0], [], []>} : vector<8x8xf32>, vector<8x8xf32>, vector<8x8xf32> -> vector<8x8xf32>
    %cst_102 = arith.constant 0.353553385 : f32
    %103 = vector.broadcast %cst_102 : f32 to vector<8x8xf32>
    %104 = arith.mulf %102, %103 : vector<8x8xf32>
    %cst_103 = arith.constant dense<0xFF800000> : vector<8xf32>
    %105 = vector.multi_reduction <maximumf>, %104, %cst_103 [1] : vector<8x8xf32> to vector<8xf32>
    %106 = vector.shape_cast %105 : vector<8xf32> to vector<8x1xf32>
    %107 = vector.broadcast %106 : vector<8x1xf32> to vector<8x8xf32>
    %108 = arith.subf %104, %107 : vector<8x8xf32>
    %109 = math.exp %108 : vector<8x8xf32>
    %cst_104 = arith.constant dense<0.000000e+00> : vector<8xf32>
    %110 = vector.multi_reduction <add>, %109, %cst_104 [1] : vector<8x8xf32> to vector<8xf32>
    %111 = vector.shape_cast %110 : vector<8xf32> to vector<8x1xf32>
    %112 = vector.broadcast %111 : vector<8x1xf32> to vector<8x8xf32>
    %113 = arith.divf %109, %112 : vector<8x8xf32>
    %cst_105 = arith.constant dense<0.000000e+00> : vector<8x8xf32>
    %114 = tpu.matmul %113, %101, %cst_105 {dimension_numbers = #tpu.dot_dimension_numbers<[1], [0], [0], [1], [0, 0, 1, 1], [], []>} : vector<8x8xf32>, vector<8x8xf32>, vector<8x8xf32> -> vector<8x8xf32>
    %c0_106 = arith.constant 0 : index
    %c2_107 = arith.constant 2 : index
    %c0_108 = arith.constant 0 : index
    %c0_109 = arith.constant 0 : index
    %115 = vector.load %arg9[%c0_106, %c2_107, %c0_108, %c0_109] : memref<1x4x8x32xf32, #tpu.memory_space<vmem>>, vector<1x1x8x32xf32>
    %116 = vector.shape_cast %115 : vector<1x1x8x32xf32> to vector<8x32xf32>
    %cst_110 = arith.constant dense<0.000000e+00> : vector<8x32xf32>
    %117 = tpu.matmul %114, %116, %cst_110 {dimension_numbers = #tpu.dot_dimension_numbers<[1], [0], [0], [1], [0, 0, 1, 1], [], []>} : vector<8x8xf32>, vector<8x32xf32>, vector<8x32xf32> -> vector<8x32xf32>
    %118 = arith.addf %80, %117 : vector<8x32xf32>
    %c0_111 = arith.constant 0 : index
    %c3 = arith.constant 3 : index
    %c0_112 = arith.constant 0 : index
    %c0_113 = arith.constant 0 : index
    %119 = vector.load %arg3[%c0_111, %c3, %c0_112, %c0_113] : memref<1x4x32x8xf32, #tpu.memory_space<vmem>>, vector<1x1x32x8xf32>
    %120 = vector.shape_cast %119 : vector<1x1x32x8xf32> to vector<32x8xf32>
    %cst_114 = arith.constant dense<0.000000e+00> : vector<8x8xf32>
    %121 = tpu.matmul %3, %120, %cst_114 {dimension_numbers = #tpu.dot_dimension_numbers<[1], [0], [0], [1], [0, 0, 1, 1], [], []>} : vector<8x32xf32>, vector<32x8xf32>, vector<8x8xf32> -> vector<8x8xf32>
    %c0_115 = arith.constant 0 : index
    %c3_116 = arith.constant 3 : index
    %c0_117 = arith.constant 0 : index
    %c0_118 = arith.constant 0 : index
    %122 = vector.load %arg4[%c0_115, %c3_116, %c0_117, %c0_118] : memref<1x4x1x8xf32, #tpu.memory_space<vmem>>, vector<1x1x1x8xf32>
    %123 = vector.shape_cast %122 : vector<1x1x1x8xf32> to vector<1x8xf32>
    %124 = vector.broadcast %123 : vector<1x8xf32> to vector<8x8xf32>
    %125 = arith.addf %121, %124 : vector<8x8xf32>
    %c0_119 = arith.constant 0 : index
    %c3_120 = arith.constant 3 : index
    %c0_121 = arith.constant 0 : index
    %c0_122 = arith.constant 0 : index
    %126 = vector.load %arg5[%c0_119, %c3_120, %c0_121, %c0_122] : memref<1x4x32x8xf32, #tpu.memory_space<vmem>>, vector<1x1x32x8xf32>
    %127 = vector.shape_cast %126 : vector<1x1x32x8xf32> to vector<32x8xf32>
    %cst_123 = arith.constant dense<0.000000e+00> : vector<8x8xf32>
    %128 = tpu.matmul %3, %127, %cst_123 {dimension_numbers = #tpu.dot_dimension_numbers<[1], [0], [0], [1], [0, 0, 1, 1], [], []>} : vector<8x32xf32>, vector<32x8xf32>, vector<8x8xf32> -> vector<8x8xf32>
    %c0_124 = arith.constant 0 : index
    %c3_125 = arith.constant 3 : index
    %c0_126 = arith.constant 0 : index
    %c0_127 = arith.constant 0 : index
    %129 = vector.load %arg6[%c0_124, %c3_125, %c0_126, %c0_127] : memref<1x4x1x8xf32, #tpu.memory_space<vmem>>, vector<1x1x1x8xf32>
    %130 = vector.shape_cast %129 : vector<1x1x1x8xf32> to vector<1x8xf32>
    %131 = vector.broadcast %130 : vector<1x8xf32> to vector<8x8xf32>
    %132 = arith.addf %128, %131 : vector<8x8xf32>
    %c0_128 = arith.constant 0 : index
    %c3_129 = arith.constant 3 : index
    %c0_130 = arith.constant 0 : index
    %c0_131 = arith.constant 0 : index
    %133 = vector.load %arg7[%c0_128, %c3_129, %c0_130, %c0_131] : memref<1x4x32x8xf32, #tpu.memory_space<vmem>>, vector<1x1x32x8xf32>
    %134 = vector.shape_cast %133 : vector<1x1x32x8xf32> to vector<32x8xf32>
    %cst_132 = arith.constant dense<0.000000e+00> : vector<8x8xf32>
    %135 = tpu.matmul %3, %134, %cst_132 {dimension_numbers = #tpu.dot_dimension_numbers<[1], [0], [0], [1], [0, 0, 1, 1], [], []>} : vector<8x32xf32>, vector<32x8xf32>, vector<8x8xf32> -> vector<8x8xf32>
    %c0_133 = arith.constant 0 : index
    %c3_134 = arith.constant 3 : index
    %c0_135 = arith.constant 0 : index
    %c0_136 = arith.constant 0 : index
    %136 = vector.load %arg8[%c0_133, %c3_134, %c0_135, %c0_136] : memref<1x4x1x8xf32, #tpu.memory_space<vmem>>, vector<1x1x1x8xf32>
    %137 = vector.shape_cast %136 : vector<1x1x1x8xf32> to vector<1x8xf32>
    %138 = vector.broadcast %137 : vector<1x8xf32> to vector<8x8xf32>
    %139 = arith.addf %135, %138 : vector<8x8xf32>
    %cst_137 = arith.constant dense<0.000000e+00> : vector<8x8xf32>
    %140 = tpu.matmul %125, %132, %cst_137 {dimension_numbers = #tpu.dot_dimension_numbers<[1], [1], [0], [0], [0, 0, 1, 0], [], []>} : vector<8x8xf32>, vector<8x8xf32>, vector<8x8xf32> -> vector<8x8xf32>
    %cst_138 = arith.constant 0.353553385 : f32
    %141 = vector.broadcast %cst_138 : f32 to vector<8x8xf32>
    %142 = arith.mulf %140, %141 : vector<8x8xf32>
    %cst_139 = arith.constant dense<0xFF800000> : vector<8xf32>
    %143 = vector.multi_reduction <maximumf>, %142, %cst_139 [1] : vector<8x8xf32> to vector<8xf32>
    %144 = vector.shape_cast %143 : vector<8xf32> to vector<8x1xf32>
    %145 = vector.broadcast %144 : vector<8x1xf32> to vector<8x8xf32>
    %146 = arith.subf %142, %145 : vector<8x8xf32>
    %147 = math.exp %146 : vector<8x8xf32>
    %cst_140 = arith.constant dense<0.000000e+00> : vector<8xf32>
    %148 = vector.multi_reduction <add>, %147, %cst_140 [1] : vector<8x8xf32> to vector<8xf32>
    %149 = vector.shape_cast %148 : vector<8xf32> to vector<8x1xf32>
    %150 = vector.broadcast %149 : vector<8x1xf32> to vector<8x8xf32>
    %151 = arith.divf %147, %150 : vector<8x8xf32>
    %cst_141 = arith.constant dense<0.000000e+00> : vector<8x8xf32>
    %152 = tpu.matmul %151, %139, %cst_141 {dimension_numbers = #tpu.dot_dimension_numbers<[1], [0], [0], [1], [0, 0, 1, 1], [], []>} : vector<8x8xf32>, vector<8x8xf32>, vector<8x8xf32> -> vector<8x8xf32>
    %c0_142 = arith.constant 0 : index
    %c3_143 = arith.constant 3 : index
    %c0_144 = arith.constant 0 : index
    %c0_145 = arith.constant 0 : index
    %153 = vector.load %arg9[%c0_142, %c3_143, %c0_144, %c0_145] : memref<1x4x8x32xf32, #tpu.memory_space<vmem>>, vector<1x1x8x32xf32>
    %154 = vector.shape_cast %153 : vector<1x1x8x32xf32> to vector<8x32xf32>
    %cst_146 = arith.constant dense<0.000000e+00> : vector<8x32xf32>
    %155 = tpu.matmul %152, %154, %cst_146 {dimension_numbers = #tpu.dot_dimension_numbers<[1], [0], [0], [1], [0, 0, 1, 1], [], []>} : vector<8x8xf32>, vector<8x32xf32>, vector<8x32xf32> -> vector<8x32xf32>
    %156 = arith.addf %118, %155 : vector<8x32xf32>
    %c0_147 = arith.constant 0 : index
    %c0_148 = arith.constant 0 : index
    %c0_149 = arith.constant 0 : index
    %157 = vector.load %arg10[%c0_147, %c0_148, %c0_149] : memref<1x1x32xf32, #tpu.memory_space<vmem>>, vector<1x1x32xf32>
    %158 = vector.shape_cast %157 : vector<1x1x32xf32> to vector<1x32xf32>
    %159 = vector.broadcast %158 : vector<1x32xf32> to vector<8x32xf32>
    %160 = arith.addf %156, %159 : vector<8x32xf32>
    %161 = arith.addf %3, %160 : vector<8x32xf32>
    %c0_150 = arith.constant 0 : index
    %c0_151 = arith.constant 0 : index
    %c0_152 = arith.constant 0 : index
    %162 = vector.load %arg11[%c0_150, %c0_151, %c0_152] : memref<1x1x32xf32, #tpu.memory_space<vmem>>, vector<1x1x32xf32>
    %163 = vector.shape_cast %162 : vector<1x1x32xf32> to vector<1x32xf32>
    %c0_153 = arith.constant 0 : index
    %c0_154 = arith.constant 0 : index
    %c0_155 = arith.constant 0 : index
    %164 = vector.load %arg12[%c0_153, %c0_154, %c0_155] : memref<1x1x32xf32, #tpu.memory_space<vmem>>, vector<1x1x32xf32>
    %165 = vector.shape_cast %164 : vector<1x1x32xf32> to vector<1x32xf32>
    %cst_156 = arith.constant dense<0.000000e+00> : vector<8xf32>
    %166 = vector.multi_reduction <add>, %161, %cst_156 [1] : vector<8x32xf32> to vector<8xf32>
    %167 = vector.shape_cast %166 : vector<8xf32> to vector<8x1xf32>
    %cst_157 = arith.constant 3.200000e+01 : f32
    %168 = vector.broadcast %cst_157 : f32 to vector<8x1xf32>
    %169 = arith.divf %167, %168 : vector<8x1xf32>
    %170 = vector.broadcast %169 : vector<8x1xf32> to vector<8x32xf32>
    %171 = arith.subf %161, %170 : vector<8x32xf32>
    %172 = arith.mulf %171, %171 : vector<8x32xf32>
    %cst_158 = arith.constant dense<0.000000e+00> : vector<8xf32>
    %173 = vector.multi_reduction <add>, %172, %cst_158 [1] : vector<8x32xf32> to vector<8xf32>
    %174 = vector.shape_cast %173 : vector<8xf32> to vector<8x1xf32>
    %cst_159 = arith.constant 3.200000e+01 : f32
    %175 = vector.broadcast %cst_159 : f32 to vector<8x1xf32>
    %176 = arith.divf %174, %175 : vector<8x1xf32>
    %177 = vector.broadcast %169 : vector<8x1xf32> to vector<8x32xf32>
    %178 = arith.subf %161, %177 : vector<8x32xf32>
    %cst_160 = arith.constant 9.99999974E-6 : f32
    %179 = vector.broadcast %cst_160 : f32 to vector<8x1xf32>
    %180 = arith.addf %176, %179 : vector<8x1xf32>
    %181 = math.rsqrt %180 : vector<8x1xf32>
    %182 = vector.broadcast %181 : vector<8x1xf32> to vector<8x32xf32>
    %183 = arith.mulf %178, %182 : vector<8x32xf32>
    %184 = vector.broadcast %163 : vector<1x32xf32> to vector<8x32xf32>
    %185 = arith.mulf %183, %184 : vector<8x32xf32>
    %186 = vector.broadcast %165 : vector<1x32xf32> to vector<8x32xf32>
    %187 = arith.addf %185, %186 : vector<8x32xf32>
    %c0_161 = arith.constant 0 : index
    %c0_162 = arith.constant 0 : index
    %c0_163 = arith.constant 0 : index
    %188 = vector.load %arg13[%c0_161, %c0_162, %c0_163] : memref<1x32x64xf32, #tpu.memory_space<vmem>>, vector<1x32x64xf32>
    %189 = vector.shape_cast %188 : vector<1x32x64xf32> to vector<32x64xf32>
    %cst_164 = arith.constant dense<0.000000e+00> : vector<8x64xf32>
    %190 = tpu.matmul %187, %189, %cst_164 {dimension_numbers = #tpu.dot_dimension_numbers<[1], [0], [0], [1], [0, 0, 1, 1], [], []>} : vector<8x32xf32>, vector<32x64xf32>, vector<8x64xf32> -> vector<8x64xf32>
    %c0_165 = arith.constant 0 : index
    %c0_166 = arith.constant 0 : index
    %c0_167 = arith.constant 0 : index
    %191 = vector.load %arg14[%c0_165, %c0_166, %c0_167] : memref<1x1x64xf32, #tpu.memory_space<vmem>>, vector<1x1x64xf32>
    %192 = vector.shape_cast %191 : vector<1x1x64xf32> to vector<1x64xf32>
    %193 = vector.broadcast %192 : vector<1x64xf32> to vector<8x64xf32>
    %194 = arith.addf %190, %193 : vector<8x64xf32>
    %cst_168 = arith.constant 0.000000e+00 : f32
    %195 = vector.broadcast %cst_168 : f32 to vector<8x64xf32>
    %196 = arith.maximumf %194, %195 : vector<8x64xf32>
    %c0_169 = arith.constant 0 : index
    %c0_170 = arith.constant 0 : index
    %c0_171 = arith.constant 0 : index
    %197 = vector.load %arg15[%c0_169, %c0_170, %c0_171] : memref<1x64x32xf32, #tpu.memory_space<vmem>>, vector<1x64x32xf32>
    %198 = vector.shape_cast %197 : vector<1x64x32xf32> to vector<64x32xf32>
    %cst_172 = arith.constant dense<0.000000e+00> : vector<8x32xf32>
    %199 = tpu.matmul %196, %198, %cst_172 {dimension_numbers = #tpu.dot_dimension_numbers<[1], [0], [0], [1], [0, 0, 1, 1], [], []>} : vector<8x64xf32>, vector<64x32xf32>, vector<8x32xf32> -> vector<8x32xf32>
    %c0_173 = arith.constant 0 : index
    %c0_174 = arith.constant 0 : index
    %c0_175 = arith.constant 0 : index
    %200 = vector.load %arg16[%c0_173, %c0_174, %c0_175] : memref<1x1x32xf32, #tpu.memory_space<vmem>>, vector<1x1x32xf32>
    %201 = vector.shape_cast %200 : vector<1x1x32xf32> to vector<1x32xf32>
    %202 = vector.broadcast %201 : vector<1x32xf32> to vector<8x32xf32>
    %203 = arith.addf %199, %202 : vector<8x32xf32>
    %204 = arith.addf %187, %203 : vector<8x32xf32>
    %c0_176 = arith.constant 0 : index
    %c0_177 = arith.constant 0 : index
    %c0_178 = arith.constant 0 : index
    %205 = vector.load %arg17[%c0_176, %c0_177, %c0_178] : memref<1x1x32xf32, #tpu.memory_space<vmem>>, vector<1x1x32xf32>
    %206 = vector.shape_cast %205 : vector<1x1x32xf32> to vector<1x32xf32>
    %c0_179 = arith.constant 0 : index
    %c0_180 = arith.constant 0 : index
    %c0_181 = arith.constant 0 : index
    %207 = vector.load %arg18[%c0_179, %c0_180, %c0_181] : memref<1x1x32xf32, #tpu.memory_space<vmem>>, vector<1x1x32xf32>
    %208 = vector.shape_cast %207 : vector<1x1x32xf32> to vector<1x32xf32>
    %cst_182 = arith.constant dense<0.000000e+00> : vector<8xf32>
    %209 = vector.multi_reduction <add>, %204, %cst_182 [1] : vector<8x32xf32> to vector<8xf32>
    %210 = vector.shape_cast %209 : vector<8xf32> to vector<8x1xf32>
    %cst_183 = arith.constant 3.200000e+01 : f32
    %211 = vector.broadcast %cst_183 : f32 to vector<8x1xf32>
    %212 = arith.divf %210, %211 : vector<8x1xf32>
    %213 = vector.broadcast %212 : vector<8x1xf32> to vector<8x32xf32>
    %214 = arith.subf %204, %213 : vector<8x32xf32>
    %215 = arith.mulf %214, %214 : vector<8x32xf32>
    %cst_184 = arith.constant dense<0.000000e+00> : vector<8xf32>
    %216 = vector.multi_reduction <add>, %215, %cst_184 [1] : vector<8x32xf32> to vector<8xf32>
    %217 = vector.shape_cast %216 : vector<8xf32> to vector<8x1xf32>
    %cst_185 = arith.constant 3.200000e+01 : f32
    %218 = vector.broadcast %cst_185 : f32 to vector<8x1xf32>
    %219 = arith.divf %217, %218 : vector<8x1xf32>
    %220 = vector.broadcast %212 : vector<8x1xf32> to vector<8x32xf32>
    %221 = arith.subf %204, %220 : vector<8x32xf32>
    %cst_186 = arith.constant 9.99999974E-6 : f32
    %222 = vector.broadcast %cst_186 : f32 to vector<8x1xf32>
    %223 = arith.addf %219, %222 : vector<8x1xf32>
    %224 = math.rsqrt %223 : vector<8x1xf32>
    %225 = vector.broadcast %224 : vector<8x1xf32> to vector<8x32xf32>
    %226 = arith.mulf %221, %225 : vector<8x32xf32>
    %227 = vector.broadcast %206 : vector<1x32xf32> to vector<8x32xf32>
    %228 = arith.mulf %226, %227 : vector<8x32xf32>
    %229 = vector.broadcast %208 : vector<1x32xf32> to vector<8x32xf32>
    %230 = arith.addf %228, %229 : vector<8x32xf32>
    %c0_187 = arith.constant 0 : index
    %c0_188 = arith.constant 0 : index
    %231 = vector.load %arg20[%c0_187, %c0_188] : memref<8x32xf32, #tpu.memory_space<vmem>>, vector<8x32xf32>
    tpu.vector_store %arg20[%c0_187, %c0_188], %230 {strides = array<i32>} : memref<8x32xf32, #tpu.memory_space<vmem>>, vector<8x32xf32>,
    %c0_189 = arith.constant 0 : index
    %c0_190 = arith.constant 0 : index
    %c0_191 = arith.constant 0 : index
    %232 = vector.load %arg19[%c0_189, %c0_190, %c0_191] : memref<1x8x32xf32, #tpu.memory_space<vmem>>, vector<1x8x32xf32>
    %233 = vector.shape_cast %232 : vector<1x8x32xf32> to vector<8x32xf32>
    %234 = vector.shape_cast %230 : vector<8x32xf32> to vector<1x8x32xf32>
    tpu.vector_store %arg19[%c0_189, %c0_190, %c0_191], %234 {strides = array<i32>} : memref<1x8x32xf32, #tpu.memory_space<vmem>>, vector<1x8x32xf32>,
    return
  }
  func.func @transform_0(%arg0: i32, %arg1: i32) -> (i32, i32, i32) {
    %c0_i32 = arith.constant 0 : i32
    %c0_i32_0 = arith.constant 0 : i32
    %c0_i32_1 = arith.constant 0 : i32
    return %arg0, %c0_i32, %c0_i32_0 : i32, i32, i32
  }
  func.func @transform_1(%arg0: i32, %arg1: i32) -> (i32, i32, i32, i32) {
    %c0_i32 = arith.constant 0 : i32
    %c0_i32_0 = arith.constant 0 : i32
    %c0_i32_1 = arith.constant 0 : i32
    %c0_i32_2 = arith.constant 0 : i32
    return %arg1, %c0_i32, %c0_i32_0, %c0_i32_1 : i32, i32, i32, i32
  }
  func.func @transform_2(%arg0: i32, %arg1: i32) -> (i32, i32, i32, i32) {
    %c0_i32 = arith.constant 0 : i32
    %c0_i32_0 = arith.constant 0 : i32
    %c0_i32_1 = arith.constant 0 : i32
    %c0_i32_2 = arith.constant 0 : i32
    return %arg1, %c0_i32, %c0_i32_0, %c0_i32_1 : i32, i32, i32, i32
  }
  func.func @transform_3(%arg0: i32, %arg1: i32) -> (i32, i32, i32, i32) {
    %c0_i32 = arith.constant 0 : i32
    %c0_i32_0 = arith.constant 0 : i32
    %c0_i32_1 = arith.constant 0 : i32
    %c0_i32_2 = arith.constant 0 : i32
    return %arg1, %c0_i32, %c0_i32_0, %c0_i32_1 : i32, i32, i32, i32
  }
  func.func @transform_4(%arg0: i32, %arg1: i32) -> (i32, i32, i32, i32) {
    %c0_i32 = arith.constant 0 : i32
    %c0_i32_0 = arith.constant 0 : i32
    %c0_i32_1 = arith.constant 0 : i32
    %c0_i32_2 = arith.constant 0 : i32
    return %arg1, %c0_i32, %c0_i32_0, %c0_i32_1 : i32, i32, i32, i32
  }
  func.func @transform_5(%arg0: i32, %arg1: i32) -> (i32, i32, i32, i32) {
    %c0_i32 = arith.constant 0 : i32
    %c0_i32_0 = arith.constant 0 : i32
    %c0_i32_1 = arith.constant 0 : i32
    %c0_i32_2 = arith.constant 0 : i32
    return %arg1, %c0_i32, %c0_i32_0, %c0_i32_1 : i32, i32, i32, i32
  }
  func.func @transform_6(%arg0: i32, %arg1: i32) -> (i32, i32, i32, i32) {
    %c0_i32 = arith.constant 0 : i32
    %c0_i32_0 = arith.constant 0 : i32
    %c0_i32_1 = arith.constant 0 : i32
    %c0_i32_2 = arith.constant 0 : i32
    return %arg1, %c0_i32, %c0_i32_0, %c0_i32_1 : i32, i32, i32, i32
  }
  func.func @transform_7(%arg0: i32, %arg1: i32) -> (i32, i32, i32, i32) {
    %c0_i32 = arith.constant 0 : i32
    %c0_i32_0 = arith.constant 0 : i32
    %c0_i32_1 = arith.constant 0 : i32
    %c0_i32_2 = arith.constant 0 : i32
    return %arg1, %c0_i32, %c0_i32_0, %c0_i32_1 : i32, i32, i32, i32
  }
  func.func @transform_8(%arg0: i32, %arg1: i32) -> (i32, i32, i32) {
    %c0_i32 = arith.constant 0 : i32
    %c0_i32_0 = arith.constant 0 : i32
    %c0_i32_1 = arith.constant 0 : i32
    return %arg1, %c0_i32, %c0_i32_0 : i32, i32, i32
  }
  func.func @transform_9(%arg0: i32, %arg1: i32) -> (i32, i32, i32) {
    %c0_i32 = arith.constant 0 : i32
    %c0_i32_0 = arith.constant 0 : i32
    %c0_i32_1 = arith.constant 0 : i32
    return %arg1, %c0_i32, %c0_i32_0 : i32, i32, i32
  }
  func.func @transform_10(%arg0: i32, %arg1: i32) -> (i32, i32, i32) {
    %c0_i32 = arith.constant 0 : i32
    %c0_i32_0 = arith.constant 0 : i32
    %c0_i32_1 = arith.constant 0 : i32
    return %arg1, %c0_i32, %c0_i32_0 : i32, i32, i32
  }
  func.func @transform_11(%arg0: i32, %arg1: i32) -> (i32, i32, i32) {
    %c0_i32 = arith.constant 0 : i32
    %c0_i32_0 = arith.constant 0 : i32
    %c0_i32_1 = arith.constant 0 : i32
    return %arg1, %c0_i32, %c0_i32_0 : i32, i32, i32
  }
  func.func @transform_12(%arg0: i32, %arg1: i32) -> (i32, i32, i32) {
    %c0_i32 = arith.constant 0 : i32
    %c0_i32_0 = arith.constant 0 : i32
    %c0_i32_1 = arith.constant 0 : i32
    return %arg1, %c0_i32, %c0_i32_0 : i32, i32, i32
  }
  func.func @transform_13(%arg0: i32, %arg1: i32) -> (i32, i32, i32) {
    %c0_i32 = arith.constant 0 : i32
    %c0_i32_0 = arith.constant 0 : i32
    %c0_i32_1 = arith.constant 0 : i32
    return %arg1, %c0_i32, %c0_i32_0 : i32, i32, i32
  }
  func.func @transform_14(%arg0: i32, %arg1: i32) -> (i32, i32, i32) {
    %c0_i32 = arith.constant 0 : i32
    %c0_i32_0 = arith.constant 0 : i32
    %c0_i32_1 = arith.constant 0 : i32
    return %arg1, %c0_i32, %c0_i32_0 : i32, i32, i32
  }
  func.func @transform_15(%arg0: i32, %arg1: i32) -> (i32, i32, i32) {
    %c0_i32 = arith.constant 0 : i32
    %c0_i32_0 = arith.constant 0 : i32
    %c0_i32_1 = arith.constant 0 : i32
    return %arg1, %c0_i32, %c0_i32_0 : i32, i32, i32
  }
  func.func @transform_16(%arg0: i32, %arg1: i32) -> (i32, i32, i32) {
    %c0_i32 = arith.constant 0 : i32
    %c0_i32_0 = arith.constant 0 : i32
    %c0_i32_1 = arith.constant 0 : i32
    return %arg1, %c0_i32, %c0_i32_0 : i32, i32, i32
  }
  func.func @transform_17(%arg0: i32, %arg1: i32) -> (i32, i32, i32) {
    %c0_i32 = arith.constant 0 : i32
    %c0_i32_0 = arith.constant 0 : i32
    %c0_i32_1 = arith.constant 0 : i32
    return %arg0, %c0_i32, %c0_i32_0 : i32, i32, i32
  }
}

</mosaic_0001>

<llo_original>
// kernel: transformer_encoder_forward.1
$region0: #{transformer_encoder_forward.1}
  #allocation0 [shape = 'u32[]', space=smem, size = 0x4, offset = 0x4, fixed_abs, tag = 'smem constant byte address 0x4 - core index']
  #allocation1 [shape = 'u32[144,128]{1,0:T(1,128)}', space=vmem, size = 0x12000, scoped, tag = 'internal scratch']
  #allocation2 [shape = 'f32[8,32]{1,0:T(8,128)}', space=vmem, size = 0x1000, scoped, tag = 'scratch operand']
  %s0 = inlined_call_operand.vmem [shape: f32[2,8,32], index: 0, kind: input, shape index: {}]
  %s1 = inlined_call_operand.vmem [shape: f32[2,4,32,8], index: 1, kind: input, shape index: {}]
  %s2 = inlined_call_operand.vmem [shape: f32[2,4,1,8], index: 2, kind: input, shape index: {}]
  %s3 = inlined_call_operand.vmem [shape: f32[2,4,32,8], index: 3, kind: input, shape index: {}]
  %s4 = inlined_call_operand.vmem [shape: f32[2,4,1,8], index: 4, kind: input, shape index: {}]
  %s5 = inlined_call_operand.vmem [shape: f32[2,4,32,8], index: 5, kind: input, shape index: {}]
  %s6 = inlined_call_operand.vmem [shape: f32[2,4,1,8], index: 6, kind: input, shape index: {}]
  %s7 = inlined_call_operand.vmem [shape: f32[2,4,8,32], index: 7, kind: input, shape index: {}]
  %s8 = inlined_call_operand.vmem [shape: f32[2,1,32], index: 8, kind: input, shape index: {}]
  %s9 = inlined_call_operand.vmem [shape: f32[2,1,32], index: 9, kind: input, shape index: {}]
  %s10 = inlined_call_operand.vmem [shape: f32[2,1,32], index: 10, kind: input, shape index: {}]
  %s11 = inlined_call_operand.vmem [shape: f32[2,32,64], index: 11, kind: input, shape index: {}]
  %s12 = inlined_call_operand.vmem [shape: f32[2,1,64], index: 12, kind: input, shape index: {}]
  %s13 = inlined_call_operand.vmem [shape: f32[2,64,32], index: 13, kind: input, shape index: {}]
  %s14 = inlined_call_operand.vmem [shape: f32[2,1,32], index: 14, kind: input, shape index: {}]
  %s15 = inlined_call_operand.vmem [shape: f32[2,1,32], index: 15, kind: input, shape index: {}]
  %s16 = inlined_call_operand.vmem [shape: f32[2,1,32], index: 16, kind: input, shape index: {}]
  %s17 = inlined_call_operand.hbm [shape: f32[2,8,32], index: 17, kind: output, shape index: {}]
  %s18 = sld [smem:[#allocation0]]
  $region105: #{transformer_encoder_forward.1} parent=0
    _
  %s20 = ssub.s32 1, %s18
  %s21 = scalar_select 0, %s20, %s18
  $region1: #{transformer_encoder_forward.1} parent=0
    #allocation3 [shape = 'u8[8192]{0}', space=vmem, size = 0x2000, scoped, tag = 'output window, operand 0']
    #allocation4 [shape = 's32[2]{0}', space=sflag, size = 0x8, scoped, tag = 'scoped memory for transformer_encoder_forward.1']
    %22 = vsyncpa [#allocation4], 0
    %s23 = scalar_lea.sflag [#allocation4], 1
    %24 = vsyncpa %s23, 0
    loop: start=0, step=1, limit=6
    $region2: #{transformer_encoder_forward.1} parent=1 // loop_pre_header
      _
    $region3: #{transformer_encoder_forward.1} parent=1 // loop_header
      %s26 = sphi 0, %s30
      %p27 = scmp.ge.s32.totalorder %s26, 6
      %s33 = sphi 0, %s45
      %s34 = sphi 0, %s41
      %s35 = sphi 0, %s33
      %s36 = sphi 0, %s34
      %s37 = sphi 0, %s35
      %s38 = sphi 0, %s36
      %s48 = sphi 0, %s50
      %s51 = sphi 0, %s48
      %s52 = sphi 0, %s51
      %s68 = sphi 0, %s52
      %s74 = sphi 0, %s76
      %s77 = sphi 0, %s74
      %s78 = sphi 0, %s77
      %s94 = sphi 0, %s78
      %s100 = sphi 0, %s102
      %s103 = sphi 0, %s100
      %s104 = sphi 0, %s103
      %s120 = sphi 0, %s104
      %s126 = sphi 0, %s128
      %s129 = sphi 0, %s126
      %s130 = sphi 0, %s129
      %s146 = sphi 0, %s130
      %s152 = sphi 0, %s154
      %s155 = sphi 0, %s152
      %s156 = sphi 0, %s155
      %s172 = sphi 0, %s156
      %s178 = sphi 0, %s180
      %s181 = sphi 0, %s178
      %s182 = sphi 0, %s181
      %s198 = sphi 0, %s182
      %s204 = sphi 0, %s206
      %s207 = sphi 0, %s204
      %s208 = sphi 0, %s207
      %s224 = sphi 0, %s208
      %s230 = sphi 0, %s232
      %s233 = sphi 0, %s230
      %s234 = sphi 0, %s233
      %s250 = sphi 0, %s234
      %s256 = sphi 0, %s258
      %s259 = sphi 0, %s256
      %s260 = sphi 0, %s259
      %s276 = sphi 0, %s260
      %s282 = sphi 0, %s284
      %s285 = sphi 0, %s282
      %s286 = sphi 0, %s285
      %s302 = sphi 0, %s286
      %s308 = sphi 0, %s310
      %s311 = sphi 0, %s308
      %s312 = sphi 0, %s311
      %s328 = sphi 0, %s312
      %s334 = sphi 0, %s336
      %s337 = sphi 0, %s334
      %s338 = sphi 0, %s337
      %s354 = sphi 0, %s338
      %s360 = sphi 0, %s362
      %s363 = sphi 0, %s360
      %s364 = sphi 0, %s363
      %s380 = sphi 0, %s364
      %s386 = sphi 0, %s388
      %s389 = sphi 0, %s386
      %s390 = sphi 0, %s389
      %s406 = sphi 0, %s390
      %s412 = sphi 0, %s414
      %s415 = sphi 0, %s412
      %s416 = sphi 0, %s415
      %s432 = sphi 0, %s416
      %s438 = sphi 0, %s440
      %s441 = sphi 0, %s438
      %s442 = sphi 0, %s441
      %s458 = sphi 0, %s442
      %s464 = sphi 0, %s466
      %s467 = sphi 0, %s464
      %s468 = sphi 0, %s467
      %s484 = sphi 0, %s468
      %s490 = sphi 0, %s492
      %s493 = sphi 0, %s490
      %s494 = sphi 0, %s493
      %s510 = sphi 0, %s494
    $region4: #{transformer_encoder_forward.1} parent=1 // loop_header_branch
      %29 = sbr.rel (%p27) target = $region8
    $region5: #{transformer_encoder_forward.1} parent=1 // loop_body
      %s31 = ssub.s32 %s26, 1
      %s32 = ssub.s32 %s26, 2
      %s39 = sadd.s32 1, %s34
      %p40 = scmp.ge.s32.totalorder %s39, 2
      %s41 = scalar_select %p40, 0, %s39
      %s42 = sadd.s32 1, %s33
      %s43 = scalar_select %p40, %s42, %s33
      %p44 = scmp.ge.s32.totalorder %s43, 2
      %s45 = scalar_select %p44, 0, %s43
      %s46 = ssub.s32 %s33, %s45
      %p47 = scmp.eq.s32.totalorder %s46, 0
      %s49 = sadd.s32 %s48, 1
      %s50 = scalar_select %p47, %s48, %s49
      %p53 = pneg %p47
      %p54 = scmp.eq.s32.totalorder %s26, 3
      %p55 = por %p53, %p54
      %p56 = scmp.ne.s32.totalorder %s48, %s51
      %p57 = scmp.eq.s32.totalorder %s26, 0
      %p58 = por %p56, %p57
      %p59 = scmp.ne.s32.totalorder %s48, %s51
      %p60 = scmp.eq.s32.totalorder %s31, 3
      %p61 = por %p59, %p60
      %p62 = scmp.ne.s32.totalorder %s51, %s52
      %p63 = scmp.eq.s32.totalorder %s31, 0
      %p64 = por %p62, %p63
      %p65 = scmp.ne.s32.totalorder %s51, %s52
      %p66 = scmp.eq.s32.totalorder %s32, 3
      %p67 = por %p65, %p66
      %p69 = scmp.ne.s32.totalorder %s52, %s68
      %p70 = scmp.eq.s32.totalorder %s32, 0
      %p71 = por %p69, %p70
      %s72 = ssub.s32 %s34, %s41
      %p73 = scmp.eq.s32.totalorder %s72, 0
      %s75 = sadd.s32 %s74, 1
      %s76 = scalar_select %p73, %s74, %s75
      %p79 = pneg %p73
      %p80 = scmp.eq.s32.totalorder %s26, 3
      %p81 = por %p79, %p80
      %p82 = scmp.ne.s32.totalorder %s74, %s77
      %p83 = scmp.eq.s32.totalorder %s26, 0
      %p84 = por %p82, %p83
      %p85 = scmp.ne.s32.totalorder %s74, %s77
      %p86 = scmp.eq.s32.totalorder %s31, 3
      %p87 = por %p85, %p86
      %p88 = scmp.ne.s32.totalorder %s77, %s78
      %p89 = scmp.eq.s32.totalorder %s31, 0
      %p90 = por %p88, %p89
      %p91 = scmp.ne.s32.totalorder %s77, %s78
      %p92 = scmp.eq.s32.totalorder %s32, 3
      %p93 = por %p91, %p92
      %p95 = scmp.ne.s32.totalorder %s78, %s94
      %p96 = scmp.eq.s32.totalorder %s32, 0
      %p97 = por %p95, %p96
      %s98 = ssub.s32 %s34, %s41
      %p99 = scmp.eq.s32.totalorder %s98, 0
      %s101 = sadd.s32 %s100, 1
      %s102 = scalar_select %p99, %s100, %s101
      %p105 = pneg %p99
      %p106 = scmp.eq.s32.totalorder %s26, 3
      %p107 = por %p105, %p106
      %p108 = scmp.ne.s32.totalorder %s100, %s103
      %p109 = scmp.eq.s32.totalorder %s26, 0
      %p110 = por %p108, %p109
      %p111 = scmp.ne.s32.totalorder %s100, %s103
      %p112 = scmp.eq.s32.totalorder %s31, 3
      %p113 = por %p111, %p112
      %p114 = scmp.ne.s32.totalorder %s103, %s104
      %p115 = scmp.eq.s32.totalorder %s31, 0
      %p116 = por %p114, %p115
      %p117 = scmp.ne.s32.totalorder %s103, %s104
      %p118 = scmp.eq.s32.totalorder %s32, 3
      %p119 = por %p117, %p118
      %p121 = scmp.ne.s32.totalorder %s104, %s120
      %p122 = scmp.eq.s32.totalorder %s32, 0
      %p123 = por %p121, %p122
      %s124 = ssub.s32 %s34, %s41
      %p125 = scmp.eq.s32.totalorder %s124, 0
      %s127 = sadd.s32 %s126, 1
      %s128 = scalar_select %p125, %s126, %s127
      %p131 = pneg %p125
      %p132 = scmp.eq.s32.totalorder %s26, 3
      %p133 = por %p131, %p132
      %p134 = scmp.ne.s32.totalorder %s126, %s129
      %p135 = scmp.eq.s32.totalorder %s26, 0
      %p136 = por %p134, %p135
      %p137 = scmp.ne.s32.totalorder %s126, %s129
      %p138 = scmp.eq.s32.totalorder %s31, 3
      %p139 = por %p137, %p138
      %p140 = scmp.ne.s32.totalorder %s129, %s130
      %p141 = scmp.eq.s32.totalorder %s31, 0
      %p142 = por %p140, %p141
      %p143 = scmp.ne.s32.totalorder %s129, %s130
      %p144 = scmp.eq.s32.totalorder %s32, 3
      %p145 = por %p143, %p144
      %p147 = scmp.ne.s32.totalorder %s130, %s146
      %p148 = scmp.eq.s32.totalorder %s32, 0
      %p149 = por %p147, %p148
      %s150 = ssub.s32 %s34, %s41
      %p151 = scmp.eq.s32.totalorder %s150, 0
      %s153 = sadd.s32 %s152, 1
      %s154 = scalar_select %p151, %s152, %s153
      %p157 = pneg %p151
      %p158 = scmp.eq.s32.totalorder %s26, 3
      %p159 = por %p157, %p158
      %p160 = scmp.ne.s32.totalorder %s152, %s155
      %p161 = scmp.eq.s32.totalorder %s26, 0
      %p162 = por %p160, %p161
      %p163 = scmp.ne.s32.totalorder %s152, %s155
      %p164 = scmp.eq.s32.totalorder %s31, 3
      %p165 = por %p163, %p164
      %p166 = scmp.ne.s32.totalorder %s155, %s156
      %p167 = scmp.eq.s32.totalorder %s31, 0
      %p168 = por %p166, %p167
      %p169 = scmp.ne.s32.totalorder %s155, %s156
      %p170 = scmp.eq.s32.totalorder %s32, 3
      %p171 = por %p169, %p170
      %p173 = scmp.ne.s32.totalorder %s156, %s172
      %p174 = scmp.eq.s32.totalorder %s32, 0
      %p175 = por %p173, %p174
      %s176 = ssub.s32 %s34, %s41
      %p177 = scmp.eq.s32.totalorder %s176, 0
      %s179 = sadd.s32 %s178, 1
      %s180 = scalar_select %p177, %s178, %s179
      %p183 = pneg %p177
      %p184 = scmp.eq.s32.totalorder %s26, 3
      %p185 = por %p183, %p184
      %p186 = scmp.ne.s32.totalorder %s178, %s181
      %p187 = scmp.eq.s32.totalorder %s26, 0
      %p188 = por %p186, %p187
      %p189 = scmp.ne.s32.totalorder %s178, %s181
      %p190 = scmp.eq.s32.totalorder %s31, 3
      %p191 = por %p189, %p190
      %p192 = scmp.ne.s32.totalorder %s181, %s182
      %p193 = scmp.eq.s32.totalorder %s31, 0
      %p194 = por %p192, %p193
      %p195 = scmp.ne.s32.totalorder %s181, %s182
      %p196 = scmp.eq.s32.totalorder %s32, 3
      %p197 = por %p195, %p196
      %p199 = scmp.ne.s32.totalorder %s182, %s198
      %p200 = scmp.eq.s32.totalorder %s32, 0
      %p201 = por %p199, %p200
      %s202 = ssub.s32 %s34, %s41
      %p203 = scmp.eq.s32.totalorder %s202, 0
      %s205 = sadd.s32 %s204, 1
      %s206 = scalar_select %p203, %s204, %s205
      %p209 = pneg %p203
      %p210 = scmp.eq.s32.totalorder %s26, 3
      %p211 = por %p209, %p210
      %p212 = scmp.ne.s32.totalorder %s204, %s207
      %p213 = scmp.eq.s32.totalorder %s26, 0
      %p214 = por %p212, %p213
      %p215 = scmp.ne.s32.totalorder %s204, %s207
      %p216 = scmp.eq.s32.totalorder %s31, 3
      %p217 = por %p215, %p216
      %p218 = scmp.ne.s32.totalorder %s207, %s208
      %p219 = scmp.eq.s32.totalorder %s31, 0
      %p220 = por %p218, %p219
      %p221 = scmp.ne.s32.totalorder %s207, %s208
      %p222 = scmp.eq.s32.totalorder %s32, 3
      %p223 = por %p221, %p222
      %p225 = scmp.ne.s32.totalorder %s208, %s224
      %p226 = scmp.eq.s32.totalorder %s32, 0
      %p227 = por %p225, %p226
      %s228 = ssub.s32 %s34, %s41
      %p229 = scmp.eq.s32.totalorder %s228, 0
      %s231 = sadd.s32 %s230, 1
      %s232 = scalar_select %p229, %s230, %s231
      %p235 = pneg %p229
      %p236 = scmp.eq.s32.totalorder %s26, 3
      %p237 = por %p235, %p236
      %p238 = scmp.ne.s32.totalorder %s230, %s233
      %p239 = scmp.eq.s32.totalorder %s26, 0
      %p240 = por %p238, %p239
      %p241 = scmp.ne.s32.totalorder %s230, %s233
      %p242 = scmp.eq.s32.totalorder %s31, 3
      %p243 = por %p241, %p242
      %p244 = scmp.ne.s32.totalorder %s233, %s234
      %p245 = scmp.eq.s32.totalorder %s31, 0
      %p246 = por %p244, %p245
      %p247 = scmp.ne.s32.totalorder %s233, %s234
      %p248 = scmp.eq.s32.totalorder %s32, 3
      %p249 = por %p247, %p248
      %p251 = scmp.ne.s32.totalorder %s234, %s250
      %p252 = scmp.eq.s32.totalorder %s32, 0
      %p253 = por %p251, %p252
      %s254 = ssub.s32 %s34, %s41
      %p255 = scmp.eq.s32.totalorder %s254, 0
      %s257 = sadd.s32 %s256, 1
      %s258 = scalar_select %p255, %s256, %s257
      %p261 = pneg %p255
      %p262 = scmp.eq.s32.totalorder %s26, 3
      %p263 = por %p261, %p262
      %p264 = scmp.ne.s32.totalorder %s256, %s259
      %p265 = scmp.eq.s32.totalorder %s26, 0
      %p266 = por %p264, %p265
      %p267 = scmp.ne.s32.totalorder %s256, %s259
      %p268 = scmp.eq.s32.totalorder %s31, 3
      %p269 = por %p267, %p268
      %p270 = scmp.ne.s32.totalorder %s259, %s260
      %p271 = scmp.eq.s32.totalorder %s31, 0
      %p272 = por %p270, %p271
      %p273 = scmp.ne.s32.totalorder %s259, %s260
      %p274 = scmp.eq.s32.totalorder %s32, 3
      %p275 = por %p273, %p274
      %p277 = scmp.ne.s32.totalorder %s260, %s276
      %p278 = scmp.eq.s32.totalorder %s32, 0
      %p279 = por %p277, %p278
      %s280 = ssub.s32 %s34, %s41
      %p281 = scmp.eq.s32.totalorder %s280, 0
      %s283 = sadd.s32 %s282, 1
      %s284 = scalar_select %p281, %s282, %s283
      %p287 = pneg %p281
      %p288 = scmp.eq.s32.totalorder %s26, 3
      %p289 = por %p287, %p288
      %p290 = scmp.ne.s32.totalorder %s282, %s285
      %p291 = scmp.eq.s32.totalorder %s26, 0
      %p292 = por %p290, %p291
      %p293 = scmp.ne.s32.totalorder %s282, %s285
      %p294 = scmp.eq.s32.totalorder %s31, 3
      %p295 = por %p293, %p294
      %p296 = scmp.ne.s32.totalorder %s285, %s286
      %p297 = scmp.eq.s32.totalorder %s31, 0
      %p298 = por %p296, %p297
      %p299 = scmp.ne.s32.totalorder %s285, %s286
      %p300 = scmp.eq.s32.totalorder %s32, 3
      %p301 = por %p299, %p300
      %p303 = scmp.ne.s32.totalorder %s286, %s302
      %p304 = scmp.eq.s32.totalorder %s32, 0
      %p305 = por %p303, %p304
      %s306 = ssub.s32 %s34, %s41
      %p307 = scmp.eq.s32.totalorder %s306, 0
      %s309 = sadd.s32 %s308, 1
      %s310 = scalar_select %p307, %s308, %s309
      %p313 = pneg %p307
      %p314 = scmp.eq.s32.totalorder %s26, 3
      %p315 = por %p313, %p314
      %p316 = scmp.ne.s32.totalorder %s308, %s311
      %p317 = scmp.eq.s32.totalorder %s26, 0
      %p318 = por %p316, %p317
      %p319 = scmp.ne.s32.totalorder %s308, %s311
      %p320 = scmp.eq.s32.totalorder %s31, 3
      %p321 = por %p319, %p320
      %p322 = scmp.ne.s32.totalorder %s311, %s312
      %p323 = scmp.eq.s32.totalorder %s31, 0
      %p324 = por %p322, %p323
      %p325 = scmp.ne.s32.totalorder %s311, %s312
      %p326 = scmp.eq.s32.totalorder %s32, 3
      %p327 = por %p325, %p326
      %p329 = scmp.ne.s32.totalorder %s312, %s328
      %p330 = scmp.eq.s32.totalorder %s32, 0
      %p331 = por %p329, %p330
      %s332 = ssub.s32 %s34, %s41
      %p333 = scmp.eq.s32.totalorder %s332, 0
      %s335 = sadd.s32 %s334, 1
      %s336 = scalar_select %p333, %s334, %s335
      %p339 = pneg %p333
      %p340 = scmp.eq.s32.totalorder %s26, 3
      %p341 = por %p339, %p340
      %p342 = scmp.ne.s32.totalorder %s334, %s337
      %p343 = scmp.eq.s32.totalorder %s26, 0
      %p344 = por %p342, %p343
      %p345 = scmp.ne.s32.totalorder %s334, %s337
      %p346 = scmp.eq.s32.totalorder %s31, 3
      %p347 = por %p345, %p346
      %p348 = scmp.ne.s32.totalorder %s337, %s338
      %p349 = scmp.eq.s32.totalorder %s31, 0
      %p350 = por %p348, %p349
      %p351 = scmp.ne.s32.totalorder %s337, %s338
      %p352 = scmp.eq.s32.totalorder %s32, 3
      %p353 = por %p351, %p352
      %p355 = scmp.ne.s32.totalorder %s338, %s354
      %p356 = scmp.eq.s32.totalorder %s32, 0
      %p357 = por %p355, %p356
      %s358 = ssub.s32 %s34, %s41
      %p359 = scmp.eq.s32.totalorder %s358, 0
      %s361 = sadd.s32 %s360, 1
      %s362 = scalar_select %p359, %s360, %s361
      %p365 = pneg %p359
      %p366 = scmp.eq.s32.totalorder %s26, 3
      %p367 = por %p365, %p366
      %p368 = scmp.ne.s32.totalorder %s360, %s363
      %p369 = scmp.eq.s32.totalorder %s26, 0
      %p370 = por %p368, %p369
      %p371 = scmp.ne.s32.totalorder %s360, %s363
      %p372 = scmp.eq.s32.totalorder %s31, 3
      %p373 = por %p371, %p372
      %p374 = scmp.ne.s32.totalorder %s363, %s364
      %p375 = scmp.eq.s32.totalorder %s31, 0
      %p376 = por %p374, %p375
      %p377 = scmp.ne.s32.totalorder %s363, %s364
      %p378 = scmp.eq.s32.totalorder %s32, 3
      %p379 = por %p377, %p378
      %p381 = scmp.ne.s32.totalorder %s364, %s380
      %p382 = scmp.eq.s32.totalorder %s32, 0
      %p383 = por %p381, %p382
      %s384 = ssub.s32 %s34, %s41
      %p385 = scmp.eq.s32.totalorder %s384, 0
      %s387 = sadd.s32 %s386, 1
      %s388 = scalar_select %p385, %s386, %s387
      %p391 = pneg %p385
      %p392 = scmp.eq.s32.totalorder %s26, 3
      %p393 = por %p391, %p392
      %p394 = scmp.ne.s32.totalorder %s386, %s389
      %p395 = scmp.eq.s32.totalorder %s26, 0
      %p396 = por %p394, %p395
      %p397 = scmp.ne.s32.totalorder %s386, %s389
      %p398 = scmp.eq.s32.totalorder %s31, 3
      %p399 = por %p397, %p398
      %p400 = scmp.ne.s32.totalorder %s389, %s390
      %p401 = scmp.eq.s32.totalorder %s31, 0
      %p402 = por %p400, %p401
      %p403 = scmp.ne.s32.totalorder %s389, %s390
      %p404 = scmp.eq.s32.totalorder %s32, 3
      %p405 = por %p403, %p404
      %p407 = scmp.ne.s32.totalorder %s390, %s406
      %p408 = scmp.eq.s32.totalorder %s32, 0
      %p409 = por %p407, %p408
      %s410 = ssub.s32 %s34, %s41
      %p411 = scmp.eq.s32.totalorder %s410, 0
      %s413 = sadd.s32 %s412, 1
      %s414 = scalar_select %p411, %s412, %s413
      %p417 = pneg %p411
      %p418 = scmp.eq.s32.totalorder %s26, 3
      %p419 = por %p417, %p418
      %p420 = scmp.ne.s32.totalorder %s412, %s415
      %p421 = scmp.eq.s32.totalorder %s26, 0
      %p422 = por %p420, %p421
      %p423 = scmp.ne.s32.totalorder %s412, %s415
      %p424 = scmp.eq.s32.totalorder %s31, 3
      %p425 = por %p423, %p424
      %p426 = scmp.ne.s32.totalorder %s415, %s416
      %p427 = scmp.eq.s32.totalorder %s31, 0
      %p428 = por %p426, %p427
      %p429 = scmp.ne.s32.totalorder %s415, %s416
      %p430 = scmp.eq.s32.totalorder %s32, 3
      %p431 = por %p429, %p430
      %p433 = scmp.ne.s32.totalorder %s416, %s432
      %p434 = scmp.eq.s32.totalorder %s32, 0
      %p435 = por %p433, %p434
      %s436 = ssub.s32 %s34, %s41
      %p437 = scmp.eq.s32.totalorder %s436, 0
      %s439 = sadd.s32 %s438, 1
      %s440 = scalar_select %p437, %s438, %s439
      %p443 = pneg %p437
      %p444 = scmp.eq.s32.totalorder %s26, 3
      %p445 = por %p443, %p444
      %p446 = scmp.ne.s32.totalorder %s438, %s441
      %p447 = scmp.eq.s32.totalorder %s26, 0
      %p448 = por %p446, %p447
      %p449 = scmp.ne.s32.totalorder %s438, %s441
      %p450 = scmp.eq.s32.totalorder %s31, 3
      %p451 = por %p449, %p450
      %p452 = scmp.ne.s32.totalorder %s441, %s442
      %p453 = scmp.eq.s32.totalorder %s31, 0
      %p454 = por %p452, %p453
      %p455 = scmp.ne.s32.totalorder %s441, %s442
      %p456 = scmp.eq.s32.totalorder %s32, 3
      %p457 = por %p455, %p456
      %p459 = scmp.ne.s32.totalorder %s442, %s458
      %p460 = scmp.eq.s32.totalorder %s32, 0
      %p461 = por %p459, %p460
      %s462 = ssub.s32 %s34, %s41
      %p463 = scmp.eq.s32.totalorder %s462, 0
      %s465 = sadd.s32 %s464, 1
      %s466 = scalar_select %p463, %s464, %s465
      %p469 = pneg %p463
      %p470 = scmp.eq.s32.totalorder %s26, 3
      %p471 = por %p469, %p470
      %p472 = scmp.ne.s32.totalorder %s464, %s467
      %p473 = scmp.eq.s32.totalorder %s26, 0
      %p474 = por %p472, %p473
      %p475 = scmp.ne.s32.totalorder %s464, %s467
      %p476 = scmp.eq.s32.totalorder %s31, 3
      %p477 = por %p475, %p476
      %p478 = scmp.ne.s32.totalorder %s467, %s468
      %p479 = scmp.eq.s32.totalorder %s31, 0
      %p480 = por %p478, %p479
      %p481 = scmp.ne.s32.totalorder %s467, %s468
      %p482 = scmp.eq.s32.totalorder %s32, 3
      %p483 = por %p481, %p482
      %p485 = scmp.ne.s32.totalorder %s468, %s484
      %p486 = scmp.eq.s32.totalorder %s32, 0
      %p487 = por %p485, %p486
      %s488 = ssub.s32 %s33, %s45
      %p489 = scmp.eq.s32.totalorder %s488, 0
      %s491 = sadd.s32 %s490, 1
      %s492 = scalar_select %p489, %s490, %s491
      %p495 = pneg %p489
      %p496 = scmp.eq.s32.totalorder %s26, 3
      %p497 = por %p495, %p496
      %p498 = scmp.ne.s32.totalorder %s490, %s493
      %p499 = scmp.eq.s32.totalorder %s26, 0
      %p500 = por %p498, %p499
      %p501 = scmp.ne.s32.totalorder %s490, %s493
      %p502 = scmp.eq.s32.totalorder %s31, 3
      %p503 = por %p501, %p502
      %p504 = scmp.ne.s32.totalorder %s493, %s494
      %p505 = scmp.eq.s32.totalorder %s31, 0
      %p506 = por %p504, %p505
      %p507 = scmp.ne.s32.totalorder %s493, %s494
      %p508 = scmp.eq.s32.totalorder %s32, 3
      %p509 = por %p507, %p508
      %p511 = scmp.ne.s32.totalorder %s494, %s510
      %p512 = scmp.eq.s32.totalorder %s32, 0
      %p513 = por %p511, %p512
      %p514 = scmp.le.s32.totalorder 1, %s26
      %p515 = scmp.lt.s32.totalorder %s26, 5
      %p516 = pnand %p514, %p515
      %p517 = pneg %p516
      // Predicated region
      $region9: #{transformer_encoder_forward.1} parent=5 // pred_check
        _
      $region10: #{transformer_encoder_forward.1} parent=5 // pred_check_branch
        %519 = sbr.rel (%p516) target = $region12
      $region11: #{transformer_encoder_forward.1} parent=5 // pred_region
        %s520 = ssub.s32 %s26, 1
      $region12: #{transformer_encoder_forward.1} parent=5 // pred_fallthru
        _
      %p521 = scmp.lt.s32.totalorder %s26, 4
      // Predicated region
      $region13: #{transformer_encoder_forward.1} parent=5 // pred_check
        %p522 = pneg %p521
      $region14: #{transformer_encoder_forward.1} parent=5 // pred_check_branch
        %524 = sbr.rel (%p522) target = $region16
      $region15: #{transformer_encoder_forward.1} parent=5 // pred_region
        // Predicated region
        $region17: #{transformer_encoder_forward.1} parent=15 // pred_check
          %p525 = pneg %p58
        $region18: #{transformer_encoder_forward.1} parent=15 // pred_check_branch
          %527 = sbr.rel (%p525) target = $region20
        $region19: #{transformer_encoder_forward.1} parent=15 // pred_region
          %p528 = scmp.lt.s32.totalorder %s33, 1
          %s529 = scalar_select %p528, %s33, 1
          %s530 = smul.addr %s529, 8
          %s531 = scalar_lea.vmem %s0, %s530
        $region20: #{transformer_encoder_forward.1} parent=15 // pred_fallthru
          _
        // Predicated region
        $region21: #{transformer_encoder_forward.1} parent=15 // pred_check
          %p532 = pneg %p84
        $region22: #{transformer_encoder_forward.1} parent=15 // pred_check_branch
          %534 = sbr.rel (%p532) target = $region24
        $region23: #{transformer_encoder_forward.1} parent=15 // pred_region
          %p535 = scmp.lt.s32.totalorder %s34, 1
          %s536 = scalar_select %p535, %s34, 1
          %s537 = smul.addr %s536, 16
          %s538 = smul.addr %s537, 8
          %s539 = scalar_lea.vmem %s1, %s538
        $region24: #{transformer_encoder_forward.1} parent=15 // pred_fallthru
          _
        // Predicated region
        $region25: #{transformer_encoder_forward.1} parent=15 // pred_check
          %p540 = pneg %p110
        $region26: #{transformer_encoder_forward.1} parent=15 // pred_check_branch
          %542 = sbr.rel (%p540) target = $region28
        $region27: #{transformer_encoder_forward.1} parent=15 // pred_region
          %p543 = scmp.lt.s32.totalorder %s34, 1
          %s544 = scalar_select %p543, %s34, 1
          %s545 = smul.addr %s544, 4
          %s546 = scalar_lea.vmem %s2, %s545
        $region28: #{transformer_encoder_forward.1} parent=15 // pred_fallthru
          _
        // Predicated region
        $region29: #{transformer_encoder_forward.1} parent=15 // pred_check
          %p547 = pneg %p136
        $region30: #{transformer_encoder_forward.1} parent=15 // pred_check_branch
          %549 = sbr.rel (%p547) target = $region32
        $region31: #{transformer_encoder_forward.1} parent=15 // pred_region
          %p550 = scmp.lt.s32.totalorder %s34, 1
          %s551 = scalar_select %p550, %s34, 1
          %s552 = smul.addr %s551, 16
          %s553 = smul.addr %s552, 8
          %s554 = scalar_lea.vmem %s3, %s553
        $region32: #{transformer_encoder_forward.1} parent=15 // pred_fallthru
          _
        // Predicated region
        $region33: #{transformer_encoder_forward.1} parent=15 // pred_check
          %p555 = pneg %p162
        $region34: #{transformer_encoder_forward.1} parent=15 // pred_check_branch
          %557 = sbr.rel (%p555) target = $region36
        $region35: #{transformer_encoder_forward.1} parent=15 // pred_region
          %p558 = scmp.lt.s32.totalorder %s34, 1
          %s559 = scalar_select %p558, %s34, 1
          %s560 = smul.addr %s559, 4
          %s561 = scalar_lea.vmem %s4, %s560
        $region36: #{transformer_encoder_forward.1} parent=15 // pred_fallthru
          _
        // Predicated region
        $region37: #{transformer_encoder_forward.1} parent=15 // pred_check
          %p562 = pneg %p188
        $region38: #{transformer_encoder_forward.1} parent=15 // pred_check_branch
          %564 = sbr.rel (%p562) target = $region40
        $region39: #{transformer_encoder_forward.1} parent=15 // pred_region
          %p565 = scmp.lt.s32.totalorder %s34, 1
          %s566 = scalar_select %p565, %s34, 1
          %s567 = smul.addr %s566, 16
          %s568 = smul.addr %s567, 8
          %s569 = scalar_lea.vmem %s5, %s568
        $region40: #{transformer_encoder_forward.1} parent=15 // pred_fallthru
          _
        // Predicated region
        $region41: #{transformer_encoder_forward.1} parent=15 // pred_check
          %p570 = pneg %p214
        $region42: #{transformer_encoder_forward.1} parent=15 // pred_check_branch
          %572 = sbr.rel (%p570) target = $region44
        $region43: #{transformer_encoder_forward.1} parent=15 // pred_region
          %p573 = scmp.lt.s32.totalorder %s34, 1
          %s574 = scalar_select %p573, %s34, 1
          %s575 = smul.addr %s574, 4
          %s576 = scalar_lea.vmem %s6, %s575
        $region44: #{transformer_encoder_forward.1} parent=15 // pred_fallthru
          _
        // Predicated region
        $region45: #{transformer_encoder_forward.1} parent=15 // pred_check
          %p577 = pneg %p240
        $region46: #{transformer_encoder_forward.1} parent=15 // pred_check_branch
          %579 = sbr.rel (%p577) target = $region48
        $region47: #{transformer_encoder_forward.1} parent=15 // pred_region
          %p580 = scmp.lt.s32.totalorder %s34, 1
          %s581 = scalar_select %p580, %s34, 1
          %s582 = smul.addr %s581, 4
          %s583 = smul.addr %s582, 8
          %s584 = scalar_lea.vmem %s7, %s583
        $region48: #{transformer_encoder_forward.1} parent=15 // pred_fallthru
          _
        // Predicated region
        $region49: #{transformer_encoder_forward.1} parent=15 // pred_check
          %p585 = pneg %p266
        $region50: #{transformer_encoder_forward.1} parent=15 // pred_check_branch
          %587 = sbr.rel (%p585) target = $region52
        $region51: #{transformer_encoder_forward.1} parent=15 // pred_region
          %p588 = scmp.lt.s32.totalorder %s34, 1
          %s589 = scalar_select %p588, %s34, 1
          %s590 = scalar_lea.vmem %s8, %s589
        $region52: #{transformer_encoder_forward.1} parent=15 // pred_fallthru
          _
        // Predicated region
        $region53: #{transformer_encoder_forward.1} parent=15 // pred_check
          %p591 = pneg %p292
        $region54: #{transformer_encoder_forward.1} parent=15 // pred_check_branch
          %593 = sbr.rel (%p591) target = $region56
        $region55: #{transformer_encoder_forward.1} parent=15 // pred_region
          %p594 = scmp.lt.s32.totalorder %s34, 1
          %s595 = scalar_select %p594, %s34, 1
          %s596 = scalar_lea.vmem %s9, %s595
        $region56: #{transformer_encoder_forward.1} parent=15 // pred_fallthru
          _
        // Predicated region
        $region57: #{transformer_encoder_forward.1} parent=15 // pred_check
          %p597 = pneg %p318
        $region58: #{transformer_encoder_forward.1} parent=15 // pred_check_branch
          %599 = sbr.rel (%p597) target = $region60
        $region59: #{transformer_encoder_forward.1} parent=15 // pred_region
          %p600 = scmp.lt.s32.totalorder %s34, 1
          %s601 = scalar_select %p600, %s34, 1
          %s602 = scalar_lea.vmem %s10, %s601
        $region60: #{transformer_encoder_forward.1} parent=15 // pred_fallthru
          _
        // Predicated region
        $region61: #{transformer_encoder_forward.1} parent=15 // pred_check
          %p603 = pneg %p344
        $region62: #{transformer_encoder_forward.1} parent=15 // pred_check_branch
          %605 = sbr.rel (%p603) target = $region64
        $region63: #{transformer_encoder_forward.1} parent=15 // pred_region
          %p606 = scmp.lt.s32.totalorder %s34, 1
          %s607 = scalar_select %p606, %s34, 1
          %s608 = smul.addr %s607, 4
          %s609 = smul.addr %s608, 8
          %s610 = scalar_lea.vmem %s11, %s609
        $region64: #{transformer_encoder_forward.1} parent=15 // pred_fallthru
          _
        // Predicated region
        $region65: #{transformer_encoder_forward.1} parent=15 // pred_check
          %p611 = pneg %p370
        $region66: #{transformer_encoder_forward.1} parent=15 // pred_check_branch
          %613 = sbr.rel (%p611) target = $region68
        $region67: #{transformer_encoder_forward.1} parent=15 // pred_region
          %p614 = scmp.lt.s32.totalorder %s34, 1
          %s615 = scalar_select %p614, %s34, 1
          %s616 = scalar_lea.vmem %s12, %s615
        $region68: #{transformer_encoder_forward.1} parent=15 // pred_fallthru
          _
        // Predicated region
        $region69: #{transformer_encoder_forward.1} parent=15 // pred_check
          %p617 = pneg %p396
        $region70: #{transformer_encoder_forward.1} parent=15 // pred_check_branch
          %619 = sbr.rel (%p617) target = $region72
        $region71: #{transformer_encoder_forward.1} parent=15 // pred_region
          %p620 = scmp.lt.s32.totalorder %s34, 1
          %s621 = scalar_select %p620, %s34, 1
          %s622 = smul.addr %s621, 8
          %s623 = smul.addr %s622, 8
          %s624 = scalar_lea.vmem %s13, %s623
        $region72: #{transformer_encoder_forward.1} parent=15 // pred_fallthru
          _
        // Predicated region
        $region73: #{transformer_encoder_forward.1} parent=15 // pred_check
          %p625 = pneg %p422
        $region74: #{transformer_encoder_forward.1} parent=15 // pred_check_branch
          %627 = sbr.rel (%p625) target = $region76
        $region75: #{transformer_encoder_forward.1} parent=15 // pred_region
          %p628 = scmp.lt.s32.totalorder %s34, 1
          %s629 = scalar_select %p628, %s34, 1
          %s630 = scalar_lea.vmem %s14, %s629
        $region76: #{transformer_encoder_forward.1} parent=15 // pred_fallthru
          _
        // Predicated region
        $region77: #{transformer_encoder_forward.1} parent=15 // pred_check
          %p631 = pneg %p448
        $region78: #{transformer_encoder_forward.1} parent=15 // pred_check_branch
          %633 = sbr.rel (%p631) target = $region80
        $region79: #{transformer_encoder_forward.1} parent=15 // pred_region
          %p634 = scmp.lt.s32.totalorder %s34, 1
          %s635 = scalar_select %p634, %s34, 1
          %s636 = scalar_lea.vmem %s15, %s635
        $region80: #{transformer_encoder_forward.1} parent=15 // pred_fallthru
          _
        // Predicated region
        $region81: #{transformer_encoder_forward.1} parent=15 // pred_check
          %p637 = pneg %p474
        $region82: #{transformer_encoder_forward.1} parent=15 // pred_check_branch
          %639 = sbr.rel (%p637) target = $region84
        $region83: #{transformer_encoder_forward.1} parent=15 // pred_region
          %p640 = scmp.lt.s32.totalorder %s34, 1
          %s641 = scalar_select %p640, %s34, 1
          %s642 = scalar_lea.vmem %s16, %s641
        $region84: #{transformer_encoder_forward.1} parent=15 // pred_fallthru
          _
      $region16: #{transformer_encoder_forward.1} parent=5 // pred_fallthru
        _
      %p643 = scmp.le.s32.totalorder 1, %s26
      %p644 = scmp.lt.s32.totalorder %s26, 5
      %p645 = pnand %p643, %p644
      %p646 = pneg %p645
      // Predicated region
      $region85: #{transformer_encoder_forward.1} parent=5 // pred_check
        _
      $region86: #{transformer_encoder_forward.1} parent=5 // pred_check_branch
        %648 = sbr.rel (%p645) target = $region88
      $region87: #{transformer_encoder_forward.1} parent=5 // pred_region
        %s649 = ssub.s32 %s26, 1
        %p650 = scmp.lt.s32.totalorder %s35, 1
        %s651 = scalar_select %p650, %s35, 1
        %s652 = smul.addr %s651, 8
        %s653 = scalar_lea.vmem %s0, %s652
        %p654 = pneg %p64
        %p655 = pneg %p61
        %p656 = scmp.lt.s32.totalorder %s36, 1
        %s657 = scalar_select %p656, %s36, 1
        %s658 = smul.addr %s657, 16
        %s659 = smul.addr %s658, 8
        %s660 = scalar_lea.vmem %s1, %s659
        %p661 = pneg %p90
        %p662 = pneg %p87
        %p663 = scmp.lt.s32.totalorder %s36, 1
        %s664 = scalar_select %p663, %s36, 1
        %s665 = smul.addr %s664, 4
        %s666 = scalar_lea.vmem %s2, %s665
        %p667 = pneg %p116
        %p668 = pneg %p113
        %p669 = scmp.lt.s32.totalorder %s36, 1
        %s670 = scalar_select %p669, %s36, 1
        %s671 = smul.addr %s670, 16
        %s672 = smul.addr %s671, 8
        %s673 = scalar_lea.vmem %s3, %s672
        %p674 = pneg %p142
        %p675 = pneg %p139
        %p676 = scmp.lt.s32.totalorder %s36, 1
        %s677 = scalar_select %p676, %s36, 1
        %s678 = smul.addr %s677, 4
        %s679 = scalar_lea.vmem %s4, %s678
        %p680 = pneg %p168
        %p681 = pneg %p165
        %p682 = scmp.lt.s32.totalorder %s36, 1
        %s683 = scalar_select %p682, %s36, 1
        %s684 = smul.addr %s683, 16
        %s685 = smul.addr %s684, 8
        %s686 = scalar_lea.vmem %s5, %s685
        %p687 = pneg %p194
        %p688 = pneg %p191
        %p689 = scmp.lt.s32.totalorder %s36, 1
        %s690 = scalar_select %p689, %s36, 1
        %s691 = smul.addr %s690, 4
        %s692 = scalar_lea.vmem %s6, %s691
        %p693 = pneg %p220
        %p694 = pneg %p217
        %p695 = scmp.lt.s32.totalorder %s36, 1
        %s696 = scalar_select %p695, %s36, 1
        %s697 = smul.addr %s696, 4
        %s698 = smul.addr %s697, 8
        %s699 = scalar_lea.vmem %s7, %s698
        %p700 = pneg %p246
        %p701 = pneg %p243
        %p702 = scmp.lt.s32.totalorder %s36, 1
        %s703 = scalar_select %p702, %s36, 1
        %s704 = scalar_lea.vmem %s8, %s703
        %p705 = pneg %p272
        %p706 = pneg %p269
        %p707 = scmp.lt.s32.totalorder %s36, 1
        %s708 = scalar_select %p707, %s36, 1
        %s709 = scalar_lea.vmem %s9, %s708
        %p710 = pneg %p298
        %p711 = pneg %p295
        %p712 = scmp.lt.s32.totalorder %s36, 1
        %s713 = scalar_select %p712, %s36, 1
        %s714 = scalar_lea.vmem %s10, %s713
        %p715 = pneg %p324
        %p716 = pneg %p321
        %p717 = scmp.lt.s32.totalorder %s36, 1
        %s718 = scalar_select %p717, %s36, 1
        %s719 = smul.addr %s718, 4
        %s720 = smul.addr %s719, 8
        %s721 = scalar_lea.vmem %s11, %s720
        %p722 = pneg %p350
        %p723 = pneg %p347
        %p724 = scmp.lt.s32.totalorder %s36, 1
        %s725 = scalar_select %p724, %s36, 1
        %s726 = scalar_lea.vmem %s12, %s725
        %p727 = pneg %p376
        %p728 = pneg %p373
        %p729 = scmp.lt.s32.totalorder %s36, 1
        %s730 = scalar_select %p729, %s36, 1
        %s731 = smul.addr %s730, 8
        %s732 = smul.addr %s731, 8
        %s733 = scalar_lea.vmem %s13, %s732
        %p734 = pneg %p402
        %p735 = pneg %p399
        %p736 = scmp.lt.s32.totalorder %s36, 1
        %s737 = scalar_select %p736, %s36, 1
        %s738 = scalar_lea.vmem %s14, %s737
        %p739 = pneg %p428
        %p740 = pneg %p425
        %p741 = scmp.lt.s32.totalorder %s36, 1
        %s742 = scalar_select %p741, %s36, 1
        %s743 = scalar_lea.vmem %s15, %s742
        %p744 = pneg %p454
        %p745 = pneg %p451
        %p746 = scmp.lt.s32.totalorder %s36, 1
        %s747 = scalar_select %p746, %s36, 1
        %s748 = scalar_lea.vmem %s16, %s747
        %p749 = pneg %p480
        %p750 = pneg %p477
        %p751 = pneg %p506
        %p752 = pneg %p503
        %s753 = sand.u32 %s493, 1
        %s754 = scalar_lea.sflag [#allocation4], %s753
        %s755 = sand.u32 %s493, 1
        %s756 = smul.addr %s755, 8
        %s757 = scalar_lea.vmem [#allocation3], %s756
        %p758 = scmp.lt.s32.totalorder %s35, 1
        %s759 = scalar_select %p758, %s35, 1
        %s760 = smul.addr %s759, 8
        %s761 = scalar_lea.vmem %s0, %s760
        %p762 = scmp.lt.s32.totalorder %s36, 1
        %s763 = scalar_select %p762, %s36, 1
        %s764 = smul.addr %s763, 16
        %s765 = smul.addr %s764, 8
        %s766 = scalar_lea.vmem %s1, %s765
        %p767 = scmp.lt.s32.totalorder %s36, 1
        %s768 = scalar_select %p767, %s36, 1
        %s769 = smul.addr %s768, 4
        %s770 = scalar_lea.vmem %s2, %s769
        %p771 = scmp.lt.s32.totalorder %s36, 1
        %s772 = scalar_select %p771, %s36, 1
        %s773 = smul.addr %s772, 16
        %s774 = smul.addr %s773, 8
        %s775 = scalar_lea.vmem %s3, %s774
        %p776 = scmp.lt.s32.totalorder %s36, 1
        %s777 = scalar_select %p776, %s36, 1
        %s778 = smul.addr %s777, 4
        %s779 = scalar_lea.vmem %s4, %s778
        %p780 = scmp.lt.s32.totalorder %s36, 1
        %s781 = scalar_select %p780, %s36, 1
        %s782 = smul.addr %s781, 16
        %s783 = smul.addr %s782, 8
        %s784 = scalar_lea.vmem %s5, %s783
        %p785 = scmp.lt.s32.totalorder %s36, 1
        %s786 = scalar_select %p785, %s36, 1
        %s787 = smul.addr %s786, 4
        %s788 = scalar_lea.vmem %s6, %s787
        %p789 = scmp.lt.s32.totalorder %s36, 1
        %s790 = scalar_select %p789, %s36, 1
        %s791 = smul.addr %s790, 4
        %s792 = smul.addr %s791, 8
        %s793 = scalar_lea.vmem %s7, %s792
        %p794 = scmp.lt.s32.totalorder %s36, 1
        %s795 = scalar_select %p794, %s36, 1
        %s796 = scalar_lea.vmem %s8, %s795
        %p797 = scmp.lt.s32.totalorder %s36, 1
        %s798 = scalar_select %p797, %s36, 1
        %s799 = scalar_lea.vmem %s9, %s798
        %p800 = scmp.lt.s32.totalorder %s36, 1
        %s801 = scalar_select %p800, %s36, 1
        %s802 = scalar_lea.vmem %s10, %s801
        %p803 = scmp.lt.s32.totalorder %s36, 1
        %s804 = scalar_select %p803, %s36, 1
        %s805 = smul.addr %s804, 4
        %s806 = smul.addr %s805, 8
        %s807 = scalar_lea.vmem %s11, %s806
        %p808 = scmp.lt.s32.totalorder %s36, 1
        %s809 = scalar_select %p808, %s36, 1
        %s810 = scalar_lea.vmem %s12, %s809
        %p811 = scmp.lt.s32.totalorder %s36, 1
        %s812 = scalar_select %p811, %s36, 1
        %s813 = smul.addr %s812, 8
        %s814 = smul.addr %s813, 8
        %s815 = scalar_lea.vmem %s13, %s814
        %p816 = scmp.lt.s32.totalorder %s36, 1
        %s817 = scalar_select %p816, %s36, 1
        %s818 = scalar_lea.vmem %s14, %s817
        %p819 = scmp.lt.s32.totalorder %s36, 1
        %s820 = scalar_select %p819, %s36, 1
        %s821 = scalar_lea.vmem %s15, %s820
        %p822 = scmp.lt.s32.totalorder %s36, 1
        %s823 = scalar_select %p822, %s36, 1
        %s824 = scalar_lea.vmem %s16, %s823
        %p825 = scmp.eq.s32.totalorder %s36, 0
        // Predicated region
        $region89: #{transformer_encoder_forward.1} parent=87 // pred_check
          %p826 = pneg %p825
        $region90: #{transformer_encoder_forward.1} parent=87 // pred_check_branch
          %828 = sbr.rel (%p826) target = $region92
        $region91: #{transformer_encoder_forward.1} parent=87 // pred_region
          %v829 = vld [vmem:[%s761] sm:$0xff]
          %vm830 = vcmask 261120
          %831 = vst.msk [vmem:[#allocation2] sm:$0xff] %vm830, %v829
        $region92: #{transformer_encoder_forward.1} parent=87 // pred_fallthru
          _
        %v832 = vld [vmem:[#allocation2] sm:$0xff]
        %v833 = vld [vmem:[%s766] sm:$0xff]
        %v834 = vld [vmem:[%s766 + $0x8] sm:$0xff]
        %v835 = vld [vmem:[%s766 + $0x10] sm:$0xff]
        %v836 = vld [vmem:[%s766 + $0x18] sm:$0xff]
        %v837 = vld [vmem:[%s770] sm:$0x1]
        %v839 = vlaneseq
        %v840 = vshrl.u32 %v839, 7
        %v841 = vsub.s32 0, %v840
        %v842 = vrot.slane %v837, %v841
        %vm844 = vcmask 261120
        %v846 = vsel %vm844, %v832, 0
        %848 = vmatprep.subr.mxu0 0.0
        %849 = vmatpush1.msra.mxu0 0.0
        %850 = vmatprep.subr.mxu0 0.0
        %851 = vmatpush1.msra.mxu0 0.0
        %852 = vmatprep.subr.mxu0 0.0
        %853 = vmatpush1.msra.mxu0 0.0
        %854 = vmatprep.subr.mxu0 0.0
        %855 = vmatpush1.msra.mxu0 0.0
        %856 = vmatprep.subr.mxu0 0.0
        %857 = vmatpush1.msra.mxu0 0.0
        %858 = vmatprep.subr.mxu0 0.0
        %859 = vmatpush1.msra.mxu0 0.0
        %860 = vmatprep.subr.mxu0 0.0
        %861 = vmatpush1.msra.mxu0 0.0
        %862 = vmatprep.subr.mxu0 0.0
        %863 = vmatpush1.msra.mxu0 0.0
        %864 = vmatprep.subr.mxu0 0.0
        %865 = vmatpush1.msra.mxu0 0.0
        %866 = vmatprep.subr.mxu0 0.0
        %867 = vmatpush1.msra.mxu0 0.0
        %868 = vmatprep.subr.mxu0 0.0
        %869 = vmatpush1.msra.mxu0 0.0
        %870 = vmatprep.subr.mxu0 0.0
        %871 = vmatpush1.msra.mxu0 0.0
        %872 = vmatprep.subr.mxu0 0.0
        %873 = vmatpush1.msra.mxu0 %v836
        %874 = vmatprep.subr.mxu0 0.0
        %875 = vmatpush1.msra.mxu0 %v835
        %876 = vmatprep.subr.mxu0 0.0
        %877 = vmatpush1.msra.mxu0 %v834
        %878 = vmatprep.subr.mxu0 0.0
        %879 = vmatpush1.msra.mxu0 %v833
        %880 = vmatprep.subr.mxu0 0.0
        %881 = vmatpush2.msra.mxu0 0.0
        %882 = vmatprep.subr.mxu0 0.0
        %883 = vmatpush2.msra.mxu0 0.0
        %884 = vmatprep.subr.mxu0 0.0
        %885 = vmatpush2.msra.mxu0 0.0
        %886 = vmatprep.subr.mxu0 0.0
        %887 = vmatpush2.msra.mxu0 0.0
        %888 = vmatprep.subr.mxu0 0.0
        %889 = vmatpush2.msra.mxu0 0.0
        %890 = vmatprep.subr.mxu0 0.0
        %891 = vmatpush2.msra.mxu0 0.0
        %892 = vmatprep.subr.mxu0 0.0
        %893 = vmatpush2.msra.mxu0 0.0
        %894 = vmatprep.subr.mxu0 0.0
        %895 = vmatpush2.msra.mxu0 0.0
        %896 = vmatprep.subr.mxu0 0.0
        %897 = vmatpush2.msra.mxu0 0.0
        %898 = vmatprep.subr.mxu0 0.0
        %899 = vmatpush2.msra.mxu0 0.0
        %900 = vmatprep.subr.mxu0 0.0
        %901 = vmatpush2.msra.mxu0 0.0
        %902 = vmatprep.subr.mxu0 0.0
        %903 = vmatpush2.msra.mxu0 0.0
        %904 = vmatprep.subr.mxu0 0.0
        %905 = vmatpush2.msra.mxu0 0.0
        %906 = vmatprep.subr.mxu0 0.0
        %907 = vmatpush2.msra.mxu0 0.0
        %908 = vmatprep.subr.mxu0 0.0
        %909 = vmatpush2.msra.mxu0 0.0
        %910 = vmatprep.subr.mxu0 0.0
        %911 = vmatpush2.msra.mxu0 0.0
        %912 = vmatprep.mubr.f32.mxu0 0.0
        %913 = vmatmul.mubr.f32.gmra.mxu0 %v846
        %v914 = vpop.f32.mrf.mxu0
        %v915 = vadd.f32 %v842, %v914
        %v916 = vpop.f32.mrf.mxu0
        %917 = vdwg.mxu0
        %v918 = vld [vmem:[%s775] sm:$0xff]
        %v919 = vld [vmem:[%s775 + $0x8] sm:$0xff]
        %v920 = vld [vmem:[%s775 + $0x10] sm:$0xff]
        %v921 = vld [vmem:[%s775 + $0x18] sm:$0xff]
        %v922 = vld [vmem:[%s779] sm:$0x1]
        %v924 = vlaneseq
        %v925 = vshrl.u32 %v924, 7
        %v926 = vsub.s32 0, %v925
        %v927 = vrot.slane %v922, %v926
        %929 = vmatprep.subr.mxu0 0.0
        %930 = vmatpush1.msra.mxu0 0.0
        %931 = vmatprep.subr.mxu0 0.0
        %932 = vmatpush1.msra.mxu0 0.0
        %933 = vmatprep.subr.mxu0 0.0
        %934 = vmatpush1.msra.mxu0 0.0
        %935 = vmatprep.subr.mxu0 0.0
        %936 = vmatpush1.msra.mxu0 0.0
        %937 = vmatprep.subr.mxu0 0.0
        %938 = vmatpush1.msra.mxu0 0.0
        %939 = vmatprep.subr.mxu0 0.0
        %940 = vmatpush1.msra.mxu0 0.0
        %941 = vmatprep.subr.mxu0 0.0
        %942 = vmatpush1.msra.mxu0 0.0
        %943 = vmatprep.subr.mxu0 0.0
        %944 = vmatpush1.msra.mxu0 0.0
        %945 = vmatprep.subr.mxu0 0.0
        %946 = vmatpush1.msra.mxu0 0.0
        %947 = vmatprep.subr.mxu0 0.0
        %948 = vmatpush1.msra.mxu0 0.0
        %949 = vmatprep.subr.mxu0 0.0
        %950 = vmatpush1.msra.mxu0 0.0
        %951 = vmatprep.subr.mxu0 0.0
        %952 = vmatpush1.msra.mxu0 0.0
        %953 = vmatprep.subr.mxu0 0.0
        %954 = vmatpush1.msra.mxu0 %v921
        %955 = vmatprep.subr.mxu0 0.0
        %956 = vmatpush1.msra.mxu0 %v920
        %957 = vmatprep.subr.mxu0 0.0
        %958 = vmatpush1.msra.mxu0 %v919
        %959 = vmatprep.subr.mxu0 0.0
        %960 = vmatpush1.msra.mxu0 %v918
        %961 = vmatprep.subr.mxu0 0.0
        %962 = vmatpush2.msra.mxu0 0.0
        %963 = vmatprep.subr.mxu0 0.0
        %964 = vmatpush2.msra.mxu0 0.0
        %965 = vmatprep.subr.mxu0 0.0
        %966 = vmatpush2.msra.mxu0 0.0
        %967 = vmatprep.subr.mxu0 0.0
        %968 = vmatpush2.msra.mxu0 0.0
        %969 = vmatprep.subr.mxu0 0.0
        %970 = vmatpush2.msra.mxu0 0.0
        %971 = vmatprep.subr.mxu0 0.0
        %972 = vmatpush2.msra.mxu0 0.0
        %973 = vmatprep.subr.mxu0 0.0
        %974 = vmatpush2.msra.mxu0 0.0
        %975 = vmatprep.subr.mxu0 0.0
        %976 = vmatpush2.msra.mxu0 0.0
        %977 = vmatprep.subr.mxu0 0.0
        %978 = vmatpush2.msra.mxu0 0.0
        %979 = vmatprep.subr.mxu0 0.0
        %980 = vmatpush2.msra.mxu0 0.0
        %981 = vmatprep.subr.mxu0 0.0
        %982 = vmatpush2.msra.mxu0 0.0
        %983 = vmatprep.subr.mxu0 0.0
        %984 = vmatpush2.msra.mxu0 0.0
        %985 = vmatprep.subr.mxu0 0.0
        %986 = vmatpush2.msra.mxu0 0.0
        %987 = vmatprep.subr.mxu0 0.0
        %988 = vmatpush2.msra.mxu0 0.0
        %989 = vmatprep.subr.mxu0 0.0
        %990 = vmatpush2.msra.mxu0 0.0
        %991 = vmatprep.subr.mxu0 0.0
        %992 = vmatpush2.msra.mxu0 0.0
        %993 = vmatprep.mubr.f32.mxu0 0.0
        %994 = vmatmul.mubr.f32.gmra.mxu0 %v846
        %v995 = vpop.f32.mrf.mxu0
        %v996 = vadd.f32 %v927, %v995
        %v997 = vpop.f32.mrf.mxu0
        %998 = vdwg.mxu0
        %v999 = vld [vmem:[%s784] sm:$0xff]
        %v1000 = vld [vmem:[%s784 + $0x8] sm:$0xff]
        %v1001 = vld [vmem:[%s784 + $0x10] sm:$0xff]
        %v1002 = vld [vmem:[%s784 + $0x18] sm:$0xff]
        %v1003 = vld [vmem:[%s788] sm:$0x1]
        %v1005 = vlaneseq
        %v1006 = vshrl.u32 %v1005, 7
        %v1007 = vsub.s32 0, %v1006
        %v1008 = vrot.slane %v1003, %v1007
        %1010 = vmatprep.subr.mxu0 0.0
        %1011 = vmatpush1.msra.mxu0 0.0
        %1012 = vmatprep.subr.mxu0 0.0
        %1013 = vmatpush1.msra.mxu0 0.0
        %1014 = vmatprep.subr.mxu0 0.0
        %1015 = vmatpush1.msra.mxu0 0.0
        %1016 = vmatprep.subr.mxu0 0.0
        %1017 = vmatpush1.msra.mxu0 0.0
        %1018 = vmatprep.subr.mxu0 0.0
        %1019 = vmatpush1.msra.mxu0 0.0
        %1020 = vmatprep.subr.mxu0 0.0
        %1021 = vmatpush1.msra.mxu0 0.0
        %1022 = vmatprep.subr.mxu0 0.0
        %1023 = vmatpush1.msra.mxu0 0.0
        %1024 = vmatprep.subr.mxu0 0.0
        %1025 = vmatpush1.msra.mxu0 0.0
        %1026 = vmatprep.subr.mxu0 0.0
        %1027 = vmatpush1.msra.mxu0 0.0
        %1028 = vmatprep.subr.mxu0 0.0
        %1029 = vmatpush1.msra.mxu0 0.0
        %1030 = vmatprep.subr.mxu0 0.0
        %1031 = vmatpush1.msra.mxu0 0.0
        %1032 = vmatprep.subr.mxu0 0.0
        %1033 = vmatpush1.msra.mxu0 0.0
        %1034 = vmatprep.subr.mxu0 0.0
        %1035 = vmatpush1.msra.mxu0 %v1002
        %1036 = vmatprep.subr.mxu0 0.0
        %1037 = vmatpush1.msra.mxu0 %v1001
        %1038 = vmatprep.subr.mxu0 0.0
        %1039 = vmatpush1.msra.mxu0 %v1000
        %1040 = vmatprep.subr.mxu0 0.0
        %1041 = vmatpush1.msra.mxu0 %v999
        %1042 = vmatprep.subr.mxu0 0.0
        %1043 = vmatpush2.msra.mxu0 0.0
        %1044 = vmatprep.subr.mxu0 0.0
        %1045 = vmatpush2.msra.mxu0 0.0
        %1046 = vmatprep.subr.mxu0 0.0
        %1047 = vmatpush2.msra.mxu0 0.0
        %1048 = vmatprep.subr.mxu0 0.0
        %1049 = vmatpush2.msra.mxu0 0.0
        %1050 = vmatprep.subr.mxu0 0.0
        %1051 = vmatpush2.msra.mxu0 0.0
        %1052 = vmatprep.subr.mxu0 0.0
        %1053 = vmatpush2.msra.mxu0 0.0
        %1054 = vmatprep.subr.mxu0 0.0
        %1055 = vmatpush2.msra.mxu0 0.0
        %1056 = vmatprep.subr.mxu0 0.0
        %1057 = vmatpush2.msra.mxu0 0.0
        %1058 = vmatprep.subr.mxu0 0.0
        %1059 = vmatpush2.msra.mxu0 0.0
        %1060 = vmatprep.subr.mxu0 0.0
        %1061 = vmatpush2.msra.mxu0 0.0
        %1062 = vmatprep.subr.mxu0 0.0
        %1063 = vmatpush2.msra.mxu0 0.0
        %1064 = vmatprep.subr.mxu0 0.0
        %1065 = vmatpush2.msra.mxu0 0.0
        %1066 = vmatprep.subr.mxu0 0.0
        %1067 = vmatpush2.msra.mxu0 0.0
        %1068 = vmatprep.subr.mxu0 0.0
        %1069 = vmatpush2.msra.mxu0 0.0
        %1070 = vmatprep.subr.mxu0 0.0
        %1071 = vmatpush2.msra.mxu0 0.0
        %1072 = vmatprep.subr.mxu0 0.0
        %1073 = vmatpush2.msra.mxu0 0.0
        %1074 = vmatprep.mubr.f32.mxu0 0.0
        %1075 = vmatmul.mubr.f32.gmra.mxu0 %v846
        %v1076 = vpop.f32.mrf.mxu0
        %v1077 = vadd.f32 %v1008, %v1076
        %v1078 = vpop.f32.mrf.mxu0
        %1079 = vdwg.mxu0
        %vm1080 = vcmask 64512
        %v1082 = vsel %vm1080, %v915, 0
        %v1085 = vsel %vm1080, %v996, 0
        %1087 = vmatprep.subr.mxu0 0.0
        %1088 = vmatpush1.xpose.msra.mxu0 0.0
        %1089 = vmatprep.subr.mxu0 0.0
        %1090 = vmatpush1.xpose.msra.mxu0 0.0
        %1091 = vmatprep.subr.mxu0 0.0
        %1092 = vmatpush1.xpose.msra.mxu0 0.0
        %1093 = vmatprep.subr.mxu0 0.0
        %1094 = vmatpush1.xpose.msra.mxu0 0.0
        %1095 = vmatprep.subr.mxu0 0.0
        %1096 = vmatpush1.xpose.msra.mxu0 0.0
        %1097 = vmatprep.subr.mxu0 0.0
        %1098 = vmatpush1.xpose.msra.mxu0 0.0
        %1099 = vmatprep.subr.mxu0 0.0
        %1100 = vmatpush1.xpose.msra.mxu0 0.0
        %1101 = vmatprep.subr.mxu0 0.0
        %1102 = vmatpush1.xpose.msra.mxu0 0.0
        %1103 = vmatprep.subr.mxu0 0.0
        %1104 = vmatpush1.xpose.msra.mxu0 0.0
        %1105 = vmatprep.subr.mxu0 0.0
        %1106 = vmatpush1.xpose.msra.mxu0 0.0
        %1107 = vmatprep.subr.mxu0 0.0
        %1108 = vmatpush1.xpose.msra.mxu0 0.0
        %1109 = vmatprep.subr.mxu0 0.0
        %1110 = vmatpush1.xpose.msra.mxu0 0.0
        %1111 = vmatprep.subr.mxu0 0.0
        %1112 = vmatpush1.xpose.msra.mxu0 0.0
        %1113 = vmatprep.subr.mxu0 0.0
        %1114 = vmatpush1.xpose.msra.mxu0 0.0
        %1115 = vmatprep.subr.mxu0 0.0
        %1116 = vmatpush1.xpose.msra.mxu0 0.0
        %1117 = vmatprep.subr.mxu0 0.0
        %1118 = vmatpush1.xpose.msra.mxu0 %v1085
        %1119 = vmatprep.subr.mxu0 0.0
        %1120 = vmatpush2.xpose.msra.mxu0 0.0
        %1121 = vmatprep.subr.mxu0 0.0
        %1122 = vmatpush2.xpose.msra.mxu0 0.0
        %1123 = vmatprep.subr.mxu0 0.0
        %1124 = vmatpush2.xpose.msra.mxu0 0.0
        %1125 = vmatprep.subr.mxu0 0.0
        %1126 = vmatpush2.xpose.msra.mxu0 0.0
        %1127 = vmatprep.subr.mxu0 0.0
        %1128 = vmatpush2.xpose.msra.mxu0 0.0
        %1129 = vmatprep.subr.mxu0 0.0
        %1130 = vmatpush2.xpose.msra.mxu0 0.0
        %1131 = vmatprep.subr.mxu0 0.0
        %1132 = vmatpush2.xpose.msra.mxu0 0.0
        %1133 = vmatprep.subr.mxu0 0.0
        %1134 = vmatpush2.xpose.msra.mxu0 0.0
        %1135 = vmatprep.subr.mxu0 0.0
        %1136 = vmatpush2.xpose.msra.mxu0 0.0
        %1137 = vmatprep.subr.mxu0 0.0
        %1138 = vmatpush2.xpose.msra.mxu0 0.0
        %1139 = vmatprep.subr.mxu0 0.0
        %1140 = vmatpush2.xpose.msra.mxu0 0.0
        %1141 = vmatprep.subr.mxu0 0.0
        %1142 = vmatpush2.xpose.msra.mxu0 0.0
        %1143 = vmatprep.subr.mxu0 0.0
        %1144 = vmatpush2.xpose.msra.mxu0 0.0
        %1145 = vmatprep.subr.mxu0 0.0
        %1146 = vmatpush2.xpose.msra.mxu0 0.0
        %1147 = vmatprep.subr.mxu0 0.0
        %1148 = vmatpush2.xpose.msra.mxu0 0.0
        %1149 = vmatprep.subr.mxu0 0.0
        %1150 = vmatpush2.xpose.msra.mxu0 0.0
        %1151 = vmatprep.mubr.f32.mxu0 0.0
        %1152 = vmatmul.mubr.f32.gmra.mxu0 %v1082
        %v1153 = vpop.f32.mrf.mxu0
        %v1154 = vadd.f32 0.0, %v1153
        %v1155 = vpop.f32.mrf.mxu0
        %1156 = vdwg.mxu0
        %v1157 = vmul.f32 %v1154, 0.35355338
        %v1158 = vsel %vm1080, %v1157, -inf
        %1159 = vmax.xlane.f32.xlu0 %v1158
        %v1160 = vpop.xlane.xlu0 %1159
        %v1161 = vsub.f32 %v1157, %v1160
        %v1162 = vmul.f32 %v1161, 1.442695
        %v1163 = vpow.pop %v1162
        %v1164 = vsel %vm1080, %v1163, 0.0
        %1165 = vadd.xlane.f32.xlu0 %v1164
        %v1166 = vpop.xlane.xlu0 %1165
        %v1167 = vrcp.pop %v1166
        %v1168 = vmul.f32 %v1163, %v1167
        %v1170 = vsel %vm1080, %v1168, 0
        %1172 = vmatprep.subr.mxu0 0.0
        %1173 = vmatpush1.msra.mxu0 0.0
        %1174 = vmatprep.subr.mxu0 0.0
        %1175 = vmatpush1.msra.mxu0 0.0
        %1176 = vmatprep.subr.mxu0 0.0
        %1177 = vmatpush1.msra.mxu0 0.0
        %1178 = vmatprep.subr.mxu0 0.0
        %1179 = vmatpush1.msra.mxu0 0.0
        %1180 = vmatprep.subr.mxu0 0.0
        %1181 = vmatpush1.msra.mxu0 0.0
        %1182 = vmatprep.subr.mxu0 0.0
        %1183 = vmatpush1.msra.mxu0 0.0
        %1184 = vmatprep.subr.mxu0 0.0
        %1185 = vmatpush1.msra.mxu0 0.0
        %1186 = vmatprep.subr.mxu0 0.0
        %1187 = vmatpush1.msra.mxu0 0.0
        %1188 = vmatprep.subr.mxu0 0.0
        %1189 = vmatpush1.msra.mxu0 0.0
        %1190 = vmatprep.subr.mxu0 0.0
        %1191 = vmatpush1.msra.mxu0 0.0
        %1192 = vmatprep.subr.mxu0 0.0
        %1193 = vmatpush1.msra.mxu0 0.0
        %1194 = vmatprep.subr.mxu0 0.0
        %1195 = vmatpush1.msra.mxu0 0.0
        %1196 = vmatprep.subr.mxu0 0.0
        %1197 = vmatpush1.msra.mxu0 0.0
        %1198 = vmatprep.subr.mxu0 0.0
        %1199 = vmatpush1.msra.mxu0 0.0
        %1200 = vmatprep.subr.mxu0 0.0
        %1201 = vmatpush1.msra.mxu0 0.0
        %1202 = vmatprep.subr.mxu0 0.0
        %1203 = vmatpush1.msra.mxu0 %v1077
        %1204 = vmatprep.subr.mxu0 0.0
        %1205 = vmatpush2.msra.mxu0 0.0
        %1206 = vmatprep.subr.mxu0 0.0
        %1207 = vmatpush2.msra.mxu0 0.0
        %1208 = vmatprep.subr.mxu0 0.0
        %1209 = vmatpush2.msra.mxu0 0.0
        %1210 = vmatprep.subr.mxu0 0.0
        %1211 = vmatpush2.msra.mxu0 0.0
        %1212 = vmatprep.subr.mxu0 0.0
        %1213 = vmatpush2.msra.mxu0 0.0
        %1214 = vmatprep.subr.mxu0 0.0
        %1215 = vmatpush2.msra.mxu0 0.0
        %1216 = vmatprep.subr.mxu0 0.0
        %1217 = vmatpush2.msra.mxu0 0.0
        %1218 = vmatprep.subr.mxu0 0.0
        %1219 = vmatpush2.msra.mxu0 0.0
        %1220 = vmatprep.subr.mxu0 0.0
        %1221 = vmatpush2.msra.mxu0 0.0
        %1222 = vmatprep.subr.mxu0 0.0
        %1223 = vmatpush2.msra.mxu0 0.0
        %1224 = vmatprep.subr.mxu0 0.0
        %1225 = vmatpush2.msra.mxu0 0.0
        %1226 = vmatprep.subr.mxu0 0.0
        %1227 = vmatpush2.msra.mxu0 0.0
        %1228 = vmatprep.subr.mxu0 0.0
        %1229 = vmatpush2.msra.mxu0 0.0
        %1230 = vmatprep.subr.mxu0 0.0
        %1231 = vmatpush2.msra.mxu0 0.0
        %1232 = vmatprep.subr.mxu0 0.0
        %1233 = vmatpush2.msra.mxu0 0.0
        %1234 = vmatprep.subr.mxu0 0.0
        %1235 = vmatpush2.msra.mxu0 0.0
        %1236 = vmatprep.mubr.f32.mxu0 0.0
        %1237 = vmatmul.mubr.f32.gmra.mxu0 %v1170
        %v1238 = vpop.f32.mrf.mxu0
        %v1239 = vadd.f32 0.0, %v1238
        %v1240 = vpop.f32.mrf.mxu0
        %1241 = vdwg.mxu0
        %v1242 = vld [vmem:[%s793] sm:$0xff]
        %s1243 = scalar_lea.vmem %s766, 32
        %v1244 = vld [vmem:[%s1243] sm:$0xff]
        %v1245 = vld [vmem:[%s1243 + $0x8] sm:$0xff]
        %v1246 = vld [vmem:[%s1243 + $0x10] sm:$0xff]
        %v1247 = vld [vmem:[%s1243 + $0x18] sm:$0xff]
        %s1248 = scalar_lea.vmem %s770, 1
        %v1249 = vld [vmem:[%s1248] sm:$0x1]
        %v1251 = vlaneseq
        %v1252 = vshrl.u32 %v1251, 7
        %v1253 = vsub.s32 0, %v1252
        %v1254 = vrot.slane %v1249, %v1253
        %1256 = vmatprep.subr.mxu0 0.0
        %1257 = vmatpush1.msra.mxu0 0.0
        %1258 = vmatprep.subr.mxu0 0.0
        %1259 = vmatpush1.msra.mxu0 0.0
        %1260 = vmatprep.subr.mxu0 0.0
        %1261 = vmatpush1.msra.mxu0 0.0
        %1262 = vmatprep.subr.mxu0 0.0
        %1263 = vmatpush1.msra.mxu0 0.0
        %1264 = vmatprep.subr.mxu0 0.0
        %1265 = vmatpush1.msra.mxu0 0.0
        %1266 = vmatprep.subr.mxu0 0.0
        %1267 = vmatpush1.msra.mxu0 0.0
        %1268 = vmatprep.subr.mxu0 0.0
        %1269 = vmatpush1.msra.mxu0 0.0
        %1270 = vmatprep.subr.mxu0 0.0
        %1271 = vmatpush1.msra.mxu0 0.0
        %1272 = vmatprep.subr.mxu0 0.0
        %1273 = vmatpush1.msra.mxu0 0.0
        %1274 = vmatprep.subr.mxu0 0.0
        %1275 = vmatpush1.msra.mxu0 0.0
        %1276 = vmatprep.subr.mxu0 0.0
        %1277 = vmatpush1.msra.mxu0 0.0
        %1278 = vmatprep.subr.mxu0 0.0
        %1279 = vmatpush1.msra.mxu0 0.0
        %1280 = vmatprep.subr.mxu0 0.0
        %1281 = vmatpush1.msra.mxu0 %v1247
        %1282 = vmatprep.subr.mxu0 0.0
        %1283 = vmatpush1.msra.mxu0 %v1246
        %1284 = vmatprep.subr.mxu0 0.0
        %1285 = vmatpush1.msra.mxu0 %v1245
        %1286 = vmatprep.subr.mxu0 0.0
        %1287 = vmatpush1.msra.mxu0 %v1244
        %1288 = vmatprep.subr.mxu0 0.0
        %1289 = vmatpush2.msra.mxu0 0.0
        %1290 = vmatprep.subr.mxu0 0.0
        %1291 = vmatpush2.msra.mxu0 0.0
        %1292 = vmatprep.subr.mxu0 0.0
        %1293 = vmatpush2.msra.mxu0 0.0
        %1294 = vmatprep.subr.mxu0 0.0
        %1295 = vmatpush2.msra.mxu0 0.0
        %1296 = vmatprep.subr.mxu0 0.0
        %1297 = vmatpush2.msra.mxu0 0.0
        %1298 = vmatprep.subr.mxu0 0.0
        %1299 = vmatpush2.msra.mxu0 0.0
        %1300 = vmatprep.subr.mxu0 0.0
        %1301 = vmatpush2.msra.mxu0 0.0
        %1302 = vmatprep.subr.mxu0 0.0
        %1303 = vmatpush2.msra.mxu0 0.0
        %1304 = vmatprep.subr.mxu0 0.0
        %1305 = vmatpush2.msra.mxu0 0.0
        %1306 = vmatprep.subr.mxu0 0.0
        %1307 = vmatpush2.msra.mxu0 0.0
        %1308 = vmatprep.subr.mxu0 0.0
        %1309 = vmatpush2.msra.mxu0 0.0
        %1310 = vmatprep.subr.mxu0 0.0
        %1311 = vmatpush2.msra.mxu0 0.0
        %1312 = vmatprep.subr.mxu0 0.0
        %1313 = vmatpush2.msra.mxu0 0.0
        %1314 = vmatprep.subr.mxu0 0.0
        %1315 = vmatpush2.msra.mxu0 0.0
        %1316 = vmatprep.subr.mxu0 0.0
        %1317 = vmatpush2.msra.mxu0 0.0
        %1318 = vmatprep.subr.mxu0 0.0
        %1319 = vmatpush2.msra.mxu0 0.0
        %1320 = vmatprep.mubr.f32.mxu0 0.0
        %1321 = vmatmul.mubr.f32.gmra.mxu0 %v846
        %v1322 = vpop.f32.mrf.mxu0
        %v1323 = vadd.f32 %v1254, %v1322
        %v1324 = vpop.f32.mrf.mxu0
        %1325 = vdwg.mxu0
        %s1326 = scalar_lea.vmem %s775, 32
        %v1327 = vld [vmem:[%s1326] sm:$0xff]
        %v1328 = vld [vmem:[%s1326 + $0x8] sm:$0xff]
        %v1329 = vld [vmem:[%s1326 + $0x10] sm:$0xff]
        %v1330 = vld [vmem:[%s1326 + $0x18] sm:$0xff]
        %s1331 = scalar_lea.vmem %s779, 1
        %v1332 = vld [vmem:[%s1331] sm:$0x1]
        %v1334 = vlaneseq
        %v1335 = vshrl.u32 %v1334, 7
        %v1336 = vsub.s32 0, %v1335
        %v1337 = vrot.slane %v1332, %v1336
        %1339 = vmatprep.subr.mxu0 0.0
        %1340 = vmatpush1.msra.mxu0 0.0
        %1341 = vmatprep.subr.mxu0 0.0
        %1342 = vmatpush1.msra.mxu0 0.0
        %1343 = vmatprep.subr.mxu0 0.0
        %1344 = vmatpush1.msra.mxu0 0.0
        %1345 = vmatprep.subr.mxu0 0.0
        %1346 = vmatpush1.msra.mxu0 0.0
        %1347 = vmatprep.subr.mxu0 0.0
        %1348 = vmatpush1.msra.mxu0 0.0
        %1349 = vmatprep.subr.mxu0 0.0
        %1350 = vmatpush1.msra.mxu0 0.0
        %1351 = vmatprep.subr.mxu0 0.0
        %1352 = vmatpush1.msra.mxu0 0.0
        %1353 = vmatprep.subr.mxu0 0.0
        %1354 = vmatpush1.msra.mxu0 0.0
        %1355 = vmatprep.subr.mxu0 0.0
        %1356 = vmatpush1.msra.mxu0 0.0
        %1357 = vmatprep.subr.mxu0 0.0
        %1358 = vmatpush1.msra.mxu0 0.0
        %1359 = vmatprep.subr.mxu0 0.0
        %1360 = vmatpush1.msra.mxu0 0.0
        %1361 = vmatprep.subr.mxu0 0.0
        %1362 = vmatpush1.msra.mxu0 0.0
        %1363 = vmatprep.subr.mxu0 0.0
        %1364 = vmatpush1.msra.mxu0 %v1330
        %1365 = vmatprep.subr.mxu0 0.0
        %1366 = vmatpush1.msra.mxu0 %v1329
        %1367 = vmatprep.subr.mxu0 0.0
        %1368 = vmatpush1.msra.mxu0 %v1328
        %1369 = vmatprep.subr.mxu0 0.0
        %1370 = vmatpush1.msra.mxu0 %v1327
        %1371 = vmatprep.subr.mxu0 0.0
        %1372 = vmatpush2.msra.mxu0 0.0
        %1373 = vmatprep.subr.mxu0 0.0
        %1374 = vmatpush2.msra.mxu0 0.0
        %1375 = vmatprep.subr.mxu0 0.0
        %1376 = vmatpush2.msra.mxu0 0.0
        %1377 = vmatprep.subr.mxu0 0.0
        %1378 = vmatpush2.msra.mxu0 0.0
        %1379 = vmatprep.subr.mxu0 0.0
        %1380 = vmatpush2.msra.mxu0 0.0
        %1381 = vmatprep.subr.mxu0 0.0
        %1382 = vmatpush2.msra.mxu0 0.0
        %1383 = vmatprep.subr.mxu0 0.0
        %1384 = vmatpush2.msra.mxu0 0.0
        %1385 = vmatprep.subr.mxu0 0.0
        %1386 = vmatpush2.msra.mxu0 0.0
        %1387 = vmatprep.subr.mxu0 0.0
        %1388 = vmatpush2.msra.mxu0 0.0
        %1389 = vmatprep.subr.mxu0 0.0
        %1390 = vmatpush2.msra.mxu0 0.0
        %1391 = vmatprep.subr.mxu0 0.0
        %1392 = vmatpush2.msra.mxu0 0.0
        %1393 = vmatprep.subr.mxu0 0.0
        %1394 = vmatpush2.msra.mxu0 0.0
        %1395 = vmatprep.subr.mxu0 0.0
        %1396 = vmatpush2.msra.mxu0 0.0
        %1397 = vmatprep.subr.mxu0 0.0
        %1398 = vmatpush2.msra.mxu0 0.0
        %1399 = vmatprep.subr.mxu0 0.0
        %1400 = vmatpush2.msra.mxu0 0.0
        %1401 = vmatprep.subr.mxu0 0.0
        %1402 = vmatpush2.msra.mxu0 0.0
        %1403 = vmatprep.mubr.f32.mxu0 0.0
        %1404 = vmatmul.mubr.f32.gmra.mxu0 %v846
        %v1405 = vpop.f32.mrf.mxu0
        %v1406 = vadd.f32 %v1337, %v1405
        %v1407 = vpop.f32.mrf.mxu0
        %1408 = vdwg.mxu0
        %s1409 = scalar_lea.vmem %s784, 32
        %v1410 = vld [vmem:[%s1409] sm:$0xff]
        %v1411 = vld [vmem:[%s1409 + $0x8] sm:$0xff]
        %v1412 = vld [vmem:[%s1409 + $0x10] sm:$0xff]
        %v1413 = vld [vmem:[%s1409 + $0x18] sm:$0xff]
        %s1414 = scalar_lea.vmem %s788, 1
        %v1415 = vld [vmem:[%s1414] sm:$0x1]
        %v1417 = vlaneseq
        %v1418 = vshrl.u32 %v1417, 7
        %v1419 = vsub.s32 0, %v1418
        %v1420 = vrot.slane %v1415, %v1419
        %1422 = vmatprep.subr.mxu0 0.0
        %1423 = vmatpush1.msra.mxu0 0.0
        %1424 = vmatprep.subr.mxu0 0.0
        %1425 = vmatpush1.msra.mxu0 0.0
        %1426 = vmatprep.subr.mxu0 0.0
        %1427 = vmatpush1.msra.mxu0 0.0
        %1428 = vmatprep.subr.mxu0 0.0
        %1429 = vmatpush1.msra.mxu0 0.0
        %1430 = vmatprep.subr.mxu0 0.0
        %1431 = vmatpush1.msra.mxu0 0.0
        %1432 = vmatprep.subr.mxu0 0.0
        %1433 = vmatpush1.msra.mxu0 0.0
        %1434 = vmatprep.subr.mxu0 0.0
        %1435 = vmatpush1.msra.mxu0 0.0
        %1436 = vmatprep.subr.mxu0 0.0
        %1437 = vmatpush1.msra.mxu0 0.0
        %1438 = vmatprep.subr.mxu0 0.0
        %1439 = vmatpush1.msra.mxu0 0.0
        %1440 = vmatprep.subr.mxu0 0.0
        %1441 = vmatpush1.msra.mxu0 0.0
        %1442 = vmatprep.subr.mxu0 0.0
        %1443 = vmatpush1.msra.mxu0 0.0
        %1444 = vmatprep.subr.mxu0 0.0
        %1445 = vmatpush1.msra.mxu0 0.0
        %1446 = vmatprep.subr.mxu0 0.0
        %1447 = vmatpush1.msra.mxu0 %v1413
        %1448 = vmatprep.subr.mxu0 0.0
        %1449 = vmatpush1.msra.mxu0 %v1412
        %1450 = vmatprep.subr.mxu0 0.0
        %1451 = vmatpush1.msra.mxu0 %v1411
        %1452 = vmatprep.subr.mxu0 0.0
        %1453 = vmatpush1.msra.mxu0 %v1410
        %1454 = vmatprep.subr.mxu0 0.0
        %1455 = vmatpush2.msra.mxu0 0.0
        %1456 = vmatprep.subr.mxu0 0.0
        %1457 = vmatpush2.msra.mxu0 0.0
        %1458 = vmatprep.subr.mxu0 0.0
        %1459 = vmatpush2.msra.mxu0 0.0
        %1460 = vmatprep.subr.mxu0 0.0
        %1461 = vmatpush2.msra.mxu0 0.0
        %1462 = vmatprep.subr.mxu0 0.0
        %1463 = vmatpush2.msra.mxu0 0.0
        %1464 = vmatprep.subr.mxu0 0.0
        %1465 = vmatpush2.msra.mxu0 0.0
        %1466 = vmatprep.subr.mxu0 0.0
        %1467 = vmatpush2.msra.mxu0 0.0
        %1468 = vmatprep.subr.mxu0 0.0
        %1469 = vmatpush2.msra.mxu0 0.0
        %1470 = vmatprep.subr.mxu0 0.0
        %1471 = vmatpush2.msra.mxu0 0.0
        %1472 = vmatprep.subr.mxu0 0.0
        %1473 = vmatpush2.msra.mxu0 0.0
        %1474 = vmatprep.subr.mxu0 0.0
        %1475 = vmatpush2.msra.mxu0 0.0
        %1476 = vmatprep.subr.mxu0 0.0
        %1477 = vmatpush2.msra.mxu0 0.0
        %1478 = vmatprep.subr.mxu0 0.0
        %1479 = vmatpush2.msra.mxu0 0.0
        %1480 = vmatprep.subr.mxu0 0.0
        %1481 = vmatpush2.msra.mxu0 0.0
        %1482 = vmatprep.subr.mxu0 0.0
        %1483 = vmatpush2.msra.mxu0 0.0
        %1484 = vmatprep.subr.mxu0 0.0
        %1485 = vmatpush2.msra.mxu0 0.0
        %1486 = vmatprep.mubr.f32.mxu0 0.0
        %1487 = vmatmul.mubr.f32.gmra.mxu0 %v846
        %v1488 = vpop.f32.mrf.mxu0
        %v1489 = vadd.f32 %v1420, %v1488
        %v1490 = vpop.f32.mrf.mxu0
        %1491 = vdwg.mxu0
        %v1493 = vsel %vm1080, %v1323, 0
        %v1496 = vsel %vm1080, %v1406, 0
        %1498 = vmatprep.subr.mxu0 0.0
        %1499 = vmatpush1.xpose.msra.mxu0 0.0
        %1500 = vmatprep.subr.mxu0 0.0
        %1501 = vmatpush1.xpose.msra.mxu0 0.0
        %1502 = vmatprep.subr.mxu0 0.0
        %1503 = vmatpush1.xpose.msra.mxu0 0.0
        %1504 = vmatprep.subr.mxu0 0.0
        %1505 = vmatpush1.xpose.msra.mxu0 0.0
        %1506 = vmatprep.subr.mxu0 0.0
        %1507 = vmatpush1.xpose.msra.mxu0 0.0
        %1508 = vmatprep.subr.mxu0 0.0
        %1509 = vmatpush1.xpose.msra.mxu0 0.0
        %1510 = vmatprep.subr.mxu0 0.0
        %1511 = vmatpush1.xpose.msra.mxu0 0.0
        %1512 = vmatprep.subr.mxu0 0.0
        %1513 = vmatpush1.xpose.msra.mxu0 0.0
        %1514 = vmatprep.subr.mxu0 0.0
        %1515 = vmatpush1.xpose.msra.mxu0 0.0
        %1516 = vmatprep.subr.mxu0 0.0
        %1517 = vmatpush1.xpose.msra.mxu0 0.0
        %1518 = vmatprep.subr.mxu0 0.0
        %1519 = vmatpush1.xpose.msra.mxu0 0.0
        %1520 = vmatprep.subr.mxu0 0.0
        %1521 = vmatpush1.xpose.msra.mxu0 0.0
        %1522 = vmatprep.subr.mxu0 0.0
        %1523 = vmatpush1.xpose.msra.mxu0 0.0
        %1524 = vmatprep.subr.mxu0 0.0
        %1525 = vmatpush1.xpose.msra.mxu0 0.0
        %1526 = vmatprep.subr.mxu0 0.0
        %1527 = vmatpush1.xpose.msra.mxu0 0.0
        %1528 = vmatprep.subr.mxu0 0.0
        %1529 = vmatpush1.xpose.msra.mxu0 %v1496
        %1530 = vmatprep.subr.mxu0 0.0
        %1531 = vmatpush2.xpose.msra.mxu0 0.0
        %1532 = vmatprep.subr.mxu0 0.0
        %1533 = vmatpush2.xpose.msra.mxu0 0.0
        %1534 = vmatprep.subr.mxu0 0.0
        %1535 = vmatpush2.xpose.msra.mxu0 0.0
        %1536 = vmatprep.subr.mxu0 0.0
        %1537 = vmatpush2.xpose.msra.mxu0 0.0
        %1538 = vmatprep.subr.mxu0 0.0
        %1539 = vmatpush2.xpose.msra.mxu0 0.0
        %1540 = vmatprep.subr.mxu0 0.0
        %1541 = vmatpush2.xpose.msra.mxu0 0.0
        %1542 = vmatprep.subr.mxu0 0.0
        %1543 = vmatpush2.xpose.msra.mxu0 0.0
        %1544 = vmatprep.subr.mxu0 0.0
        %1545 = vmatpush2.xpose.msra.mxu0 0.0
        %1546 = vmatprep.subr.mxu0 0.0
        %1547 = vmatpush2.xpose.msra.mxu0 0.0
        %1548 = vmatprep.subr.mxu0 0.0
        %1549 = vmatpush2.xpose.msra.mxu0 0.0
        %1550 = vmatprep.subr.mxu0 0.0
        %1551 = vmatpush2.xpose.msra.mxu0 0.0
        %1552 = vmatprep.subr.mxu0 0.0
        %1553 = vmatpush2.xpose.msra.mxu0 0.0
        %1554 = vmatprep.subr.mxu0 0.0
        %1555 = vmatpush2.xpose.msra.mxu0 0.0
        %1556 = vmatprep.subr.mxu0 0.0
        %1557 = vmatpush2.xpose.msra.mxu0 0.0
        %1558 = vmatprep.subr.mxu0 0.0
        %1559 = vmatpush2.xpose.msra.mxu0 0.0
        %1560 = vmatprep.subr.mxu0 0.0
        %1561 = vmatpush2.xpose.msra.mxu0 0.0
        %1562 = vmatprep.mubr.f32.mxu0 0.0
        %1563 = vmatmul.mubr.f32.gmra.mxu0 %v1493
        %v1564 = vpop.f32.mrf.mxu0
        %v1565 = vadd.f32 0.0, %v1564
        %v1566 = vpop.f32.mrf.mxu0
        %1567 = vdwg.mxu0
        %v1568 = vmul.f32 %v1565, 0.35355338
        %v1569 = vsel %vm1080, %v1568, -inf
        %1570 = vmax.xlane.f32.xlu0 %v1569
        %v1571 = vpop.xlane.xlu0 %1570
        %v1572 = vsub.f32 %v1568, %v1571
        %v1573 = vmul.f32 %v1572, 1.442695
        %v1574 = vpow.pop %v1573
        %v1575 = vsel %vm1080, %v1574, 0.0
        %1576 = vadd.xlane.f32.xlu0 %v1575
        %v1577 = vpop.xlane.xlu0 %1576
        %v1578 = vrcp.pop %v1577
        %v1579 = vmul.f32 %v1574, %v1578
        %v1581 = vsel %vm1080, %v1579, 0
        %1583 = vmatprep.subr.mxu0 0.0
        %1584 = vmatpush1.msra.mxu0 0.0
        %1585 = vmatprep.subr.mxu0 0.0
        %1586 = vmatpush1.msra.mxu0 0.0
        %1587 = vmatprep.subr.mxu0 0.0
        %1588 = vmatpush1.msra.mxu0 0.0
        %1589 = vmatprep.subr.mxu0 0.0
        %1590 = vmatpush1.msra.mxu0 0.0
        %1591 = vmatprep.subr.mxu0 0.0
        %1592 = vmatpush1.msra.mxu0 0.0
        %1593 = vmatprep.subr.mxu0 0.0
        %1594 = vmatpush1.msra.mxu0 0.0
        %1595 = vmatprep.subr.mxu0 0.0
        %1596 = vmatpush1.msra.mxu0 0.0
        %1597 = vmatprep.subr.mxu0 0.0
        %1598 = vmatpush1.msra.mxu0 0.0
        %1599 = vmatprep.subr.mxu0 0.0
        %1600 = vmatpush1.msra.mxu0 0.0
        %1601 = vmatprep.subr.mxu0 0.0
        %1602 = vmatpush1.msra.mxu0 0.0
        %1603 = vmatprep.subr.mxu0 0.0
        %1604 = vmatpush1.msra.mxu0 0.0
        %1605 = vmatprep.subr.mxu0 0.0
        %1606 = vmatpush1.msra.mxu0 0.0
        %1607 = vmatprep.subr.mxu0 0.0
        %1608 = vmatpush1.msra.mxu0 0.0
        %1609 = vmatprep.subr.mxu0 0.0
        %1610 = vmatpush1.msra.mxu0 0.0
        %1611 = vmatprep.subr.mxu0 0.0
        %1612 = vmatpush1.msra.mxu0 0.0
        %1613 = vmatprep.subr.mxu0 0.0
        %1614 = vmatpush1.msra.mxu0 %v1489
        %1615 = vmatprep.subr.mxu0 0.0
        %1616 = vmatpush2.msra.mxu0 0.0
        %1617 = vmatprep.subr.mxu0 0.0
        %1618 = vmatpush2.msra.mxu0 0.0
        %1619 = vmatprep.subr.mxu0 0.0
        %1620 = vmatpush2.msra.mxu0 0.0
        %1621 = vmatprep.subr.mxu0 0.0
        %1622 = vmatpush2.msra.mxu0 0.0
        %1623 = vmatprep.subr.mxu0 0.0
        %1624 = vmatpush2.msra.mxu0 0.0
        %1625 = vmatprep.subr.mxu0 0.0
        %1626 = vmatpush2.msra.mxu0 0.0
        %1627 = vmatprep.subr.mxu0 0.0
        %1628 = vmatpush2.msra.mxu0 0.0
        %1629 = vmatprep.subr.mxu0 0.0
        %1630 = vmatpush2.msra.mxu0 0.0
        %1631 = vmatprep.subr.mxu0 0.0
        %1632 = vmatpush2.msra.mxu0 0.0
        %1633 = vmatprep.subr.mxu0 0.0
        %1634 = vmatpush2.msra.mxu0 0.0
        %1635 = vmatprep.subr.mxu0 0.0
        %1636 = vmatpush2.msra.mxu0 0.0
        %1637 = vmatprep.subr.mxu0 0.0
        %1638 = vmatpush2.msra.mxu0 0.0
        %1639 = vmatprep.subr.mxu0 0.0
        %1640 = vmatpush2.msra.mxu0 0.0
        %1641 = vmatprep.subr.mxu0 0.0
        %1642 = vmatpush2.msra.mxu0 0.0
        %1643 = vmatprep.subr.mxu0 0.0
        %1644 = vmatpush2.msra.mxu0 0.0
        %1645 = vmatprep.subr.mxu0 0.0
        %1646 = vmatpush2.msra.mxu0 0.0
        %1647 = vmatprep.mubr.f32.mxu0 0.0
        %1648 = vmatmul.mubr.f32.gmra.mxu0 %v1581
        %v1649 = vpop.f32.mrf.mxu0
        %v1650 = vadd.f32 0.0, %v1649
        %v1651 = vpop.f32.mrf.mxu0
        %1652 = vdwg.mxu0
        %s1653 = scalar_lea.vmem %s793, 8
        %v1654 = vld [vmem:[%s1653] sm:$0xff]
        %v1656 = vsel %vm1080, %v1650, 0
        %1658 = vmatprep.subr.mxu0 0.0
        %1659 = vmatpush1.msra.mxu0 0.0
        %1660 = vmatprep.subr.mxu0 0.0
        %1661 = vmatpush1.msra.mxu0 0.0
        %1662 = vmatprep.subr.mxu0 0.0
        %1663 = vmatpush1.msra.mxu0 0.0
        %1664 = vmatprep.subr.mxu0 0.0
        %1665 = vmatpush1.msra.mxu0 0.0
        %1666 = vmatprep.subr.mxu0 0.0
        %1667 = vmatpush1.msra.mxu0 0.0
        %1668 = vmatprep.subr.mxu0 0.0
        %1669 = vmatpush1.msra.mxu0 0.0
        %1670 = vmatprep.subr.mxu0 0.0
        %1671 = vmatpush1.msra.mxu0 0.0
        %1672 = vmatprep.subr.mxu0 0.0
        %1673 = vmatpush1.msra.mxu0 0.0
        %1674 = vmatprep.subr.mxu0 0.0
        %1675 = vmatpush1.msra.mxu0 0.0
        %1676 = vmatprep.subr.mxu0 0.0
        %1677 = vmatpush1.msra.mxu0 0.0
        %1678 = vmatprep.subr.mxu0 0.0
        %1679 = vmatpush1.msra.mxu0 0.0
        %1680 = vmatprep.subr.mxu0 0.0
        %1681 = vmatpush1.msra.mxu0 0.0
        %1682 = vmatprep.subr.mxu0 0.0
        %1683 = vmatpush1.msra.mxu0 0.0
        %1684 = vmatprep.subr.mxu0 0.0
        %1685 = vmatpush1.msra.mxu0 0.0
        %1686 = vmatprep.subr.mxu0 0.0
        %1687 = vmatpush1.msra.mxu0 0.0
        %1688 = vmatprep.subr.mxu0 0.0
        %1689 = vmatpush1.msra.mxu0 %v1654
        %1690 = vmatprep.subr.mxu0 0.0
        %1691 = vmatpush2.msra.mxu0 0.0
        %1692 = vmatprep.subr.mxu0 0.0
        %1693 = vmatpush2.msra.mxu0 0.0
        %1694 = vmatprep.subr.mxu0 0.0
        %1695 = vmatpush2.msra.mxu0 0.0
        %1696 = vmatprep.subr.mxu0 0.0
        %1697 = vmatpush2.msra.mxu0 0.0
        %1698 = vmatprep.subr.mxu0 0.0
        %1699 = vmatpush2.msra.mxu0 0.0
        %1700 = vmatprep.subr.mxu0 0.0
        %1701 = vmatpush2.msra.mxu0 0.0
        %1702 = vmatprep.subr.mxu0 0.0
        %1703 = vmatpush2.msra.mxu0 0.0
        %1704 = vmatprep.subr.mxu0 0.0
        %1705 = vmatpush2.msra.mxu0 0.0
        %1706 = vmatprep.subr.mxu0 0.0
        %1707 = vmatpush2.msra.mxu0 0.0
        %1708 = vmatprep.subr.mxu0 0.0
        %1709 = vmatpush2.msra.mxu0 0.0
        %1710 = vmatprep.subr.mxu0 0.0
        %1711 = vmatpush2.msra.mxu0 0.0
        %1712 = vmatprep.subr.mxu0 0.0
        %1713 = vmatpush2.msra.mxu0 0.0
        %1714 = vmatprep.subr.mxu0 0.0
        %1715 = vmatpush2.msra.mxu0 0.0
        %1716 = vmatprep.subr.mxu0 0.0
        %1717 = vmatpush2.msra.mxu0 0.0
        %1718 = vmatprep.subr.mxu0 0.0
        %1719 = vmatpush2.msra.mxu0 0.0
        %1720 = vmatprep.subr.mxu0 0.0
        %1721 = vmatpush2.msra.mxu0 0.0
        %1722 = vmatprep.mubr.f32.mxu0 0.0
        %1723 = vmatmul.mubr.f32.gmra.mxu0 %v1656
        %v1724 = vpop.f32.mrf.mxu0
        %v1725 = vadd.f32 0.0, %v1724
        %v1726 = vpop.f32.mrf.mxu0
        %1727 = vdwg.mxu0
        %v1729 = vsel %vm1080, %v1239, 0
        %1731 = vmatprep.subr.mxu0 0.0
        %1732 = vmatpush1.msra.mxu0 0.0
        %1733 = vmatprep.subr.mxu0 0.0
        %1734 = vmatpush1.msra.mxu0 0.0
        %1735 = vmatprep.subr.mxu0 0.0
        %1736 = vmatpush1.msra.mxu0 0.0
        %1737 = vmatprep.subr.mxu0 0.0
        %1738 = vmatpush1.msra.mxu0 0.0
        %1739 = vmatprep.subr.mxu0 0.0
        %1740 = vmatpush1.msra.mxu0 0.0
        %1741 = vmatprep.subr.mxu0 0.0
        %1742 = vmatpush1.msra.mxu0 0.0
        %1743 = vmatprep.subr.mxu0 0.0
        %1744 = vmatpush1.msra.mxu0 0.0
        %1745 = vmatprep.subr.mxu0 0.0
        %1746 = vmatpush1.msra.mxu0 0.0
        %1747 = vmatprep.subr.mxu0 0.0
        %1748 = vmatpush1.msra.mxu0 0.0
        %1749 = vmatprep.subr.mxu0 0.0
        %1750 = vmatpush1.msra.mxu0 0.0
        %1751 = vmatprep.subr.mxu0 0.0
        %1752 = vmatpush1.msra.mxu0 0.0
        %1753 = vmatprep.subr.mxu0 0.0
        %1754 = vmatpush1.msra.mxu0 0.0
        %1755 = vmatprep.subr.mxu0 0.0
        %1756 = vmatpush1.msra.mxu0 0.0
        %1757 = vmatprep.subr.mxu0 0.0
        %1758 = vmatpush1.msra.mxu0 0.0
        %1759 = vmatprep.subr.mxu0 0.0
        %1760 = vmatpush1.msra.mxu0 0.0
        %1761 = vmatprep.subr.mxu0 0.0
        %1762 = vmatpush1.msra.mxu0 %v1242
        %1763 = vmatprep.subr.mxu0 0.0
        %1764 = vmatpush2.msra.mxu0 0.0
        %1765 = vmatprep.subr.mxu0 0.0
        %1766 = vmatpush2.msra.mxu0 0.0
        %1767 = vmatprep.subr.mxu0 0.0
        %1768 = vmatpush2.msra.mxu0 0.0
        %1769 = vmatprep.subr.mxu0 0.0
        %1770 = vmatpush2.msra.mxu0 0.0
        %1771 = vmatprep.subr.mxu0 0.0
        %1772 = vmatpush2.msra.mxu0 0.0
        %1773 = vmatprep.subr.mxu0 0.0
        %1774 = vmatpush2.msra.mxu0 0.0
        %1775 = vmatprep.subr.mxu0 0.0
        %1776 = vmatpush2.msra.mxu0 0.0
        %1777 = vmatprep.subr.mxu0 0.0
        %1778 = vmatpush2.msra.mxu0 0.0
        %1779 = vmatprep.subr.mxu0 0.0
        %1780 = vmatpush2.msra.mxu0 0.0
        %1781 = vmatprep.subr.mxu0 0.0
        %1782 = vmatpush2.msra.mxu0 0.0
        %1783 = vmatprep.subr.mxu0 0.0
        %1784 = vmatpush2.msra.mxu0 0.0
        %1785 = vmatprep.subr.mxu0 0.0
        %1786 = vmatpush2.msra.mxu0 0.0
        %1787 = vmatprep.subr.mxu0 0.0
        %1788 = vmatpush2.msra.mxu0 0.0
        %1789 = vmatprep.subr.mxu0 0.0
        %1790 = vmatpush2.msra.mxu0 0.0
        %1791 = vmatprep.subr.mxu0 0.0
        %1792 = vmatpush2.msra.mxu0 0.0
        %1793 = vmatprep.subr.mxu0 0.0
        %1794 = vmatpush2.msra.mxu0 0.0
        %1795 = vmatprep.mubr.f32.mxu0 0.0
        %1796 = vmatmul.mubr.f32.gmra.mxu0 %v1729
        %v1797 = vpop.f32.mrf.mxu0
        %v1798 = vadd.f32 %v1725, %v1797
        %v1799 = vpop.f32.mrf.mxu0
        %1800 = vdwg.mxu0
        %s1801 = scalar_lea.vmem %s766, 64
        %v1802 = vld [vmem:[%s1801] sm:$0xff]
        %v1803 = vld [vmem:[%s1801 + $0x8] sm:$0xff]
        %v1804 = vld [vmem:[%s1801 + $0x10] sm:$0xff]
        %v1805 = vld [vmem:[%s1801 + $0x18] sm:$0xff]
        %s1806 = scalar_lea.vmem %s770, 2
        %v1807 = vld [vmem:[%s1806] sm:$0x1]
        %v1809 = vlaneseq
        %v1810 = vshrl.u32 %v1809, 7
        %v1811 = vsub.s32 0, %v1810
        %v1812 = vrot.slane %v1807, %v1811
        %1814 = vmatprep.subr.mxu0 0.0
        %1815 = vmatpush1.msra.mxu0 0.0
        %1816 = vmatprep.subr.mxu0 0.0
        %1817 = vmatpush1.msra.mxu0 0.0
        %1818 = vmatprep.subr.mxu0 0.0
        %1819 = vmatpush1.msra.mxu0 0.0
        %1820 = vmatprep.subr.mxu0 0.0
        %1821 = vmatpush1.msra.mxu0 0.0
        %1822 = vmatprep.subr.mxu0 0.0
        %1823 = vmatpush1.msra.mxu0 0.0
        %1824 = vmatprep.subr.mxu0 0.0
        %1825 = vmatpush1.msra.mxu0 0.0
        %1826 = vmatprep.subr.mxu0 0.0
        %1827 = vmatpush1.msra.mxu0 0.0
        %1828 = vmatprep.subr.mxu0 0.0
        %1829 = vmatpush1.msra.mxu0 0.0
        %1830 = vmatprep.subr.mxu0 0.0
        %1831 = vmatpush1.msra.mxu0 0.0
        %1832 = vmatprep.subr.mxu0 0.0
        %1833 = vmatpush1.msra.mxu0 0.0
        %1834 = vmatprep.subr.mxu0 0.0
        %1835 = vmatpush1.msra.mxu0 0.0
        %1836 = vmatprep.subr.mxu0 0.0
        %1837 = vmatpush1.msra.mxu0 0.0
        %1838 = vmatprep.subr.mxu0 0.0
        %1839 = vmatpush1.msra.mxu0 %v1805
        %1840 = vmatprep.subr.mxu0 0.0
        %1841 = vmatpush1.msra.mxu0 %v1804
        %1842 = vmatprep.subr.mxu0 0.0
        %1843 = vmatpush1.msra.mxu0 %v1803
        %1844 = vmatprep.subr.mxu0 0.0
        %1845 = vmatpush1.msra.mxu0 %v1802
        %1846 = vmatprep.subr.mxu0 0.0
        %1847 = vmatpush2.msra.mxu0 0.0
        %1848 = vmatprep.subr.mxu0 0.0
        %1849 = vmatpush2.msra.mxu0 0.0
        %1850 = vmatprep.subr.mxu0 0.0
        %1851 = vmatpush2.msra.mxu0 0.0
        %1852 = vmatprep.subr.mxu0 0.0
        %1853 = vmatpush2.msra.mxu0 0.0
        %1854 = vmatprep.subr.mxu0 0.0
        %1855 = vmatpush2.msra.mxu0 0.0
        %1856 = vmatprep.subr.mxu0 0.0
        %1857 = vmatpush2.msra.mxu0 0.0
        %1858 = vmatprep.subr.mxu0 0.0
        %1859 = vmatpush2.msra.mxu0 0.0
        %1860 = vmatprep.subr.mxu0 0.0
        %1861 = vmatpush2.msra.mxu0 0.0
        %1862 = vmatprep.subr.mxu0 0.0
        %1863 = vmatpush2.msra.mxu0 0.0
        %1864 = vmatprep.subr.mxu0 0.0
        %1865 = vmatpush2.msra.mxu0 0.0
        %1866 = vmatprep.subr.mxu0 0.0
        %1867 = vmatpush2.msra.mxu0 0.0
        %1868 = vmatprep.subr.mxu0 0.0
        %1869 = vmatpush2.msra.mxu0 0.0
        %1870 = vmatprep.subr.mxu0 0.0
        %1871 = vmatpush2.msra.mxu0 0.0
        %1872 = vmatprep.subr.mxu0 0.0
        %1873 = vmatpush2.msra.mxu0 0.0
        %1874 = vmatprep.subr.mxu0 0.0
        %1875 = vmatpush2.msra.mxu0 0.0
        %1876 = vmatprep.subr.mxu0 0.0
        %1877 = vmatpush2.msra.mxu0 0.0
        %1878 = vmatprep.mubr.f32.mxu0 0.0
        %1879 = vmatmul.mubr.f32.gmra.mxu0 %v846
        %v1880 = vpop.f32.mrf.mxu0
        %v1881 = vadd.f32 %v1812, %v1880
        %v1882 = vpop.f32.mrf.mxu0
        %1883 = vdwg.mxu0
        %s1884 = scalar_lea.vmem %s775, 64
        %v1885 = vld [vmem:[%s1884] sm:$0xff]
        %v1886 = vld [vmem:[%s1884 + $0x8] sm:$0xff]
        %v1887 = vld [vmem:[%s1884 + $0x10] sm:$0xff]
        %v1888 = vld [vmem:[%s1884 + $0x18] sm:$0xff]
        %s1889 = scalar_lea.vmem %s779, 2
        %v1890 = vld [vmem:[%s1889] sm:$0x1]
        %v1892 = vlaneseq
        %v1893 = vshrl.u32 %v1892, 7
        %v1894 = vsub.s32 0, %v1893
        %v1895 = vrot.slane %v1890, %v1894
        %1897 = vmatprep.subr.mxu0 0.0
        %1898 = vmatpush1.msra.mxu0 0.0
        %1899 = vmatprep.subr.mxu0 0.0
        %1900 = vmatpush1.msra.mxu0 0.0
        %1901 = vmatprep.subr.mxu0 0.0
        %1902 = vmatpush1.msra.mxu0 0.0
        %1903 = vmatprep.subr.mxu0 0.0
        %1904 = vmatpush1.msra.mxu0 0.0
        %1905 = vmatprep.subr.mxu0 0.0
        %1906 = vmatpush1.msra.mxu0 0.0
        %1907 = vmatprep.subr.mxu0 0.0
        %1908 = vmatpush1.msra.mxu0 0.0
        %1909 = vmatprep.subr.mxu0 0.0
        %1910 = vmatpush1.msra.mxu0 0.0
        %1911 = vmatprep.subr.mxu0 0.0
        %1912 = vmatpush1.msra.mxu0 0.0
        %1913 = vmatprep.subr.mxu0 0.0
        %1914 = vmatpush1.msra.mxu0 0.0
        %1915 = vmatprep.subr.mxu0 0.0
        %1916 = vmatpush1.msra.mxu0 0.0
        %1917 = vmatprep.subr.mxu0 0.0
        %1918 = vmatpush1.msra.mxu0 0.0
        %1919 = vmatprep.subr.mxu0 0.0
        %1920 = vmatpush1.msra.mxu0 0.0
        %1921 = vmatprep.subr.mxu0 0.0
        %1922 = vmatpush1.msra.mxu0 %v1888
        %1923 = vmatprep.subr.mxu0 0.0
        %1924 = vmatpush1.msra.mxu0 %v1887
        %1925 = vmatprep.subr.mxu0 0.0
        %1926 = vmatpush1.msra.mxu0 %v1886
        %1927 = vmatprep.subr.mxu0 0.0
        %1928 = vmatpush1.msra.mxu0 %v1885
        %1929 = vmatprep.subr.mxu0 0.0
        %1930 = vmatpush2.msra.mxu0 0.0
        %1931 = vmatprep.subr.mxu0 0.0
        %1932 = vmatpush2.msra.mxu0 0.0
        %1933 = vmatprep.subr.mxu0 0.0
        %1934 = vmatpush2.msra.mxu0 0.0
        %1935 = vmatprep.subr.mxu0 0.0
        %1936 = vmatpush2.msra.mxu0 0.0
        %1937 = vmatprep.subr.mxu0 0.0
        %1938 = vmatpush2.msra.mxu0 0.0
        %1939 = vmatprep.subr.mxu0 0.0
        %1940 = vmatpush2.msra.mxu0 0.0
        %1941 = vmatprep.subr.mxu0 0.0
        %1942 = vmatpush2.msra.mxu0 0.0
        %1943 = vmatprep.subr.mxu0 0.0
        %1944 = vmatpush2.msra.mxu0 0.0
        %1945 = vmatprep.subr.mxu0 0.0
        %1946 = vmatpush2.msra.mxu0 0.0
        %1947 = vmatprep.subr.mxu0 0.0
        %1948 = vmatpush2.msra.mxu0 0.0
        %1949 = vmatprep.subr.mxu0 0.0
        %1950 = vmatpush2.msra.mxu0 0.0
        %1951 = vmatprep.subr.mxu0 0.0
        %1952 = vmatpush2.msra.mxu0 0.0
        %1953 = vmatprep.subr.mxu0 0.0
        %1954 = vmatpush2.msra.mxu0 0.0
        %1955 = vmatprep.subr.mxu0 0.0
        %1956 = vmatpush2.msra.mxu0 0.0
        %1957 = vmatprep.subr.mxu0 0.0
        %1958 = vmatpush2.msra.mxu0 0.0
        %1959 = vmatprep.subr.mxu0 0.0
        %1960 = vmatpush2.msra.mxu0 0.0
        %1961 = vmatprep.mubr.f32.mxu0 0.0
        %1962 = vmatmul.mubr.f32.gmra.mxu0 %v846
        %v1963 = vpop.f32.mrf.mxu0
        %v1964 = vadd.f32 %v1895, %v1963
        %v1965 = vpop.f32.mrf.mxu0
        %1966 = vdwg.mxu0
        %s1967 = scalar_lea.vmem %s784, 64
        %v1968 = vld [vmem:[%s1967] sm:$0xff]
        %v1969 = vld [vmem:[%s1967 + $0x8] sm:$0xff]
        %v1970 = vld [vmem:[%s1967 + $0x10] sm:$0xff]
        %v1971 = vld [vmem:[%s1967 + $0x18] sm:$0xff]
        %s1972 = scalar_lea.vmem %s788, 2
        %v1973 = vld [vmem:[%s1972] sm:$0x1]
        %v1975 = vlaneseq
        %v1976 = vshrl.u32 %v1975, 7
        %v1977 = vsub.s32 0, %v1976
        %v1978 = vrot.slane %v1973, %v1977
        %1980 = vmatprep.subr.mxu0 0.0
        %1981 = vmatpush1.msra.mxu0 0.0
        %1982 = vmatprep.subr.mxu0 0.0
        %1983 = vmatpush1.msra.mxu0 0.0
        %1984 = vmatprep.subr.mxu0 0.0
        %1985 = vmatpush1.msra.mxu0 0.0
        %1986 = vmatprep.subr.mxu0 0.0
        %1987 = vmatpush1.msra.mxu0 0.0
        %1988 = vmatprep.subr.mxu0 0.0
        %1989 = vmatpush1.msra.mxu0 0.0
        %1990 = vmatprep.subr.mxu0 0.0
        %1991 = vmatpush1.msra.mxu0 0.0
        %1992 = vmatprep.subr.mxu0 0.0
        %1993 = vmatpush1.msra.mxu0 0.0
        %1994 = vmatprep.subr.mxu0 0.0
        %1995 = vmatpush1.msra.mxu0 0.0
        %1996 = vmatprep.subr.mxu0 0.0
        %1997 = vmatpush1.msra.mxu0 0.0
        %1998 = vmatprep.subr.mxu0 0.0
        %1999 = vmatpush1.msra.mxu0 0.0
        %2000 = vmatprep.subr.mxu0 0.0
        %2001 = vmatpush1.msra.mxu0 0.0
        %2002 = vmatprep.subr.mxu0 0.0
        %2003 = vmatpush1.msra.mxu0 0.0
        %2004 = vmatprep.subr.mxu0 0.0
        %2005 = vmatpush1.msra.mxu0 %v1971
        %2006 = vmatprep.subr.mxu0 0.0
        %2007 = vmatpush1.msra.mxu0 %v1970
        %2008 = vmatprep.subr.mxu0 0.0
        %2009 = vmatpush1.msra.mxu0 %v1969
        %2010 = vmatprep.subr.mxu0 0.0
        %2011 = vmatpush1.msra.mxu0 %v1968
        %2012 = vmatprep.subr.mxu0 0.0
        %2013 = vmatpush2.msra.mxu0 0.0
        %2014 = vmatprep.subr.mxu0 0.0
        %2015 = vmatpush2.msra.mxu0 0.0
        %2016 = vmatprep.subr.mxu0 0.0
        %2017 = vmatpush2.msra.mxu0 0.0
        %2018 = vmatprep.subr.mxu0 0.0
        %2019 = vmatpush2.msra.mxu0 0.0
        %2020 = vmatprep.subr.mxu0 0.0
        %2021 = vmatpush2.msra.mxu0 0.0
        %2022 = vmatprep.subr.mxu0 0.0
        %2023 = vmatpush2.msra.mxu0 0.0
        %2024 = vmatprep.subr.mxu0 0.0
        %2025 = vmatpush2.msra.mxu0 0.0
        %2026 = vmatprep.subr.mxu0 0.0
        %2027 = vmatpush2.msra.mxu0 0.0
        %2028 = vmatprep.subr.mxu0 0.0
        %2029 = vmatpush2.msra.mxu0 0.0
        %2030 = vmatprep.subr.mxu0 0.0
        %2031 = vmatpush2.msra.mxu0 0.0
        %2032 = vmatprep.subr.mxu0 0.0
        %2033 = vmatpush2.msra.mxu0 0.0
        %2034 = vmatprep.subr.mxu0 0.0
        %2035 = vmatpush2.msra.mxu0 0.0
        %2036 = vmatprep.subr.mxu0 0.0
        %2037 = vmatpush2.msra.mxu0 0.0
        %2038 = vmatprep.subr.mxu0 0.0
        %2039 = vmatpush2.msra.mxu0 0.0
        %2040 = vmatprep.subr.mxu0 0.0
        %2041 = vmatpush2.msra.mxu0 0.0
        %2042 = vmatprep.subr.mxu0 0.0
        %2043 = vmatpush2.msra.mxu0 0.0
        %2044 = vmatprep.mubr.f32.mxu0 0.0
        %2045 = vmatmul.mubr.f32.gmra.mxu0 %v846
        %v2046 = vpop.f32.mrf.mxu0
        %v2047 = vadd.f32 %v1978, %v2046
        %v2048 = vpop.f32.mrf.mxu0
        %2049 = vdwg.mxu0
        %v2051 = vsel %vm1080, %v1881, 0
        %v2054 = vsel %vm1080, %v1964, 0
        %2056 = vmatprep.subr.mxu0 0.0
        %2057 = vmatpush1.xpose.msra.mxu0 0.0
        %2058 = vmatprep.subr.mxu0 0.0
        %2059 = vmatpush1.xpose.msra.mxu0 0.0
        %2060 = vmatprep.subr.mxu0 0.0
        %2061 = vmatpush1.xpose.msra.mxu0 0.0
        %2062 = vmatprep.subr.mxu0 0.0
        %2063 = vmatpush1.xpose.msra.mxu0 0.0
        %2064 = vmatprep.subr.mxu0 0.0
        %2065 = vmatpush1.xpose.msra.mxu0 0.0
        %2066 = vmatprep.subr.mxu0 0.0
        %2067 = vmatpush1.xpose.msra.mxu0 0.0
        %2068 = vmatprep.subr.mxu0 0.0
        %2069 = vmatpush1.xpose.msra.mxu0 0.0
        %2070 = vmatprep.subr.mxu0 0.0
        %2071 = vmatpush1.xpose.msra.mxu0 0.0
        %2072 = vmatprep.subr.mxu0 0.0
        %2073 = vmatpush1.xpose.msra.mxu0 0.0
        %2074 = vmatprep.subr.mxu0 0.0
        %2075 = vmatpush1.xpose.msra.mxu0 0.0
        %2076 = vmatprep.subr.mxu0 0.0
        %2077 = vmatpush1.xpose.msra.mxu0 0.0
        %2078 = vmatprep.subr.mxu0 0.0
        %2079 = vmatpush1.xpose.msra.mxu0 0.0
        %2080 = vmatprep.subr.mxu0 0.0
        %2081 = vmatpush1.xpose.msra.mxu0 0.0
        %2082 = vmatprep.subr.mxu0 0.0
        %2083 = vmatpush1.xpose.msra.mxu0 0.0
        %2084 = vmatprep.subr.mxu0 0.0
        %2085 = vmatpush1.xpose.msra.mxu0 0.0
        %2086 = vmatprep.subr.mxu0 0.0
        %2087 = vmatpush1.xpose.msra.mxu0 %v2054
        %2088 = vmatprep.subr.mxu0 0.0
        %2089 = vmatpush2.xpose.msra.mxu0 0.0
        %2090 = vmatprep.subr.mxu0 0.0
        %2091 = vmatpush2.xpose.msra.mxu0 0.0
        %2092 = vmatprep.subr.mxu0 0.0
        %2093 = vmatpush2.xpose.msra.mxu0 0.0
        %2094 = vmatprep.subr.mxu0 0.0
        %2095 = vmatpush2.xpose.msra.mxu0 0.0
        %2096 = vmatprep.subr.mxu0 0.0
        %2097 = vmatpush2.xpose.msra.mxu0 0.0
        %2098 = vmatprep.subr.mxu0 0.0
        %2099 = vmatpush2.xpose.msra.mxu0 0.0
        %2100 = vmatprep.subr.mxu0 0.0
        %2101 = vmatpush2.xpose.msra.mxu0 0.0
        %2102 = vmatprep.subr.mxu0 0.0
        %2103 = vmatpush2.xpose.msra.mxu0 0.0
        %2104 = vmatprep.subr.mxu0 0.0
        %2105 = vmatpush2.xpose.msra.mxu0 0.0
        %2106 = vmatprep.subr.mxu0 0.0
        %2107 = vmatpush2.xpose.msra.mxu0 0.0
        %2108 = vmatprep.subr.mxu0 0.0
        %2109 = vmatpush2.xpose.msra.mxu0 0.0
        %2110 = vmatprep.subr.mxu0 0.0
        %2111 = vmatpush2.xpose.msra.mxu0 0.0
        %2112 = vmatprep.subr.mxu0 0.0
        %2113 = vmatpush2.xpose.msra.mxu0 0.0
        %2114 = vmatprep.subr.mxu0 0.0
        %2115 = vmatpush2.xpose.msra.mxu0 0.0
        %2116 = vmatprep.subr.mxu0 0.0
        %2117 = vmatpush2.xpose.msra.mxu0 0.0
        %2118 = vmatprep.subr.mxu0 0.0
        %2119 = vmatpush2.xpose.msra.mxu0 0.0
        %2120 = vmatprep.mubr.f32.mxu0 0.0
        %2121 = vmatmul.mubr.f32.gmra.mxu0 %v2051
        %v2122 = vpop.f32.mrf.mxu0
        %v2123 = vadd.f32 0.0, %v2122
        %v2124 = vpop.f32.mrf.mxu0
        %2125 = vdwg.mxu0
        %v2126 = vmul.f32 %v2123, 0.35355338
        %v2127 = vsel %vm1080, %v2126, -inf
        %2128 = vmax.xlane.f32.xlu0 %v2127
        %v2129 = vpop.xlane.xlu0 %2128
        %v2130 = vsub.f32 %v2126, %v2129
        %v2131 = vmul.f32 %v2130, 1.442695
        %v2132 = vpow.pop %v2131
        %v2133 = vsel %vm1080, %v2132, 0.0
        %2134 = vadd.xlane.f32.xlu0 %v2133
        %v2135 = vpop.xlane.xlu0 %2134
        %v2136 = vrcp.pop %v2135
        %v2137 = vmul.f32 %v2132, %v2136
        %v2139 = vsel %vm1080, %v2137, 0
        %2141 = vmatprep.subr.mxu0 0.0
        %2142 = vmatpush1.msra.mxu0 0.0
        %2143 = vmatprep.subr.mxu0 0.0
        %2144 = vmatpush1.msra.mxu0 0.0
        %2145 = vmatprep.subr.mxu0 0.0
        %2146 = vmatpush1.msra.mxu0 0.0
        %2147 = vmatprep.subr.mxu0 0.0
        %2148 = vmatpush1.msra.mxu0 0.0
        %2149 = vmatprep.subr.mxu0 0.0
        %2150 = vmatpush1.msra.mxu0 0.0
        %2151 = vmatprep.subr.mxu0 0.0
        %2152 = vmatpush1.msra.mxu0 0.0
        %2153 = vmatprep.subr.mxu0 0.0
        %2154 = vmatpush1.msra.mxu0 0.0
        %2155 = vmatprep.subr.mxu0 0.0
        %2156 = vmatpush1.msra.mxu0 0.0
        %2157 = vmatprep.subr.mxu0 0.0
        %2158 = vmatpush1.msra.mxu0 0.0
        %2159 = vmatprep.subr.mxu0 0.0
        %2160 = vmatpush1.msra.mxu0 0.0
        %2161 = vmatprep.subr.mxu0 0.0
        %2162 = vmatpush1.msra.mxu0 0.0
        %2163 = vmatprep.subr.mxu0 0.0
        %2164 = vmatpush1.msra.mxu0 0.0
        %2165 = vmatprep.subr.mxu0 0.0
        %2166 = vmatpush1.msra.mxu0 0.0
        %2167 = vmatprep.subr.mxu0 0.0
        %2168 = vmatpush1.msra.mxu0 0.0
        %2169 = vmatprep.subr.mxu0 0.0
        %2170 = vmatpush1.msra.mxu0 0.0
        %2171 = vmatprep.subr.mxu0 0.0
        %2172 = vmatpush1.msra.mxu0 %v2047
        %2173 = vmatprep.subr.mxu0 0.0
        %2174 = vmatpush2.msra.mxu0 0.0
        %2175 = vmatprep.subr.mxu0 0.0
        %2176 = vmatpush2.msra.mxu0 0.0
        %2177 = vmatprep.subr.mxu0 0.0
        %2178 = vmatpush2.msra.mxu0 0.0
        %2179 = vmatprep.subr.mxu0 0.0
        %2180 = vmatpush2.msra.mxu0 0.0
        %2181 = vmatprep.subr.mxu0 0.0
        %2182 = vmatpush2.msra.mxu0 0.0
        %2183 = vmatprep.subr.mxu0 0.0
        %2184 = vmatpush2.msra.mxu0 0.0
        %2185 = vmatprep.subr.mxu0 0.0
        %2186 = vmatpush2.msra.mxu0 0.0
        %2187 = vmatprep.subr.mxu0 0.0
        %2188 = vmatpush2.msra.mxu0 0.0
        %2189 = vmatprep.subr.mxu0 0.0
        %2190 = vmatpush2.msra.mxu0 0.0
        %2191 = vmatprep.subr.mxu0 0.0
        %2192 = vmatpush2.msra.mxu0 0.0
        %2193 = vmatprep.subr.mxu0 0.0
        %2194 = vmatpush2.msra.mxu0 0.0
        %2195 = vmatprep.subr.mxu0 0.0
        %2196 = vmatpush2.msra.mxu0 0.0
        %2197 = vmatprep.subr.mxu0 0.0
        %2198 = vmatpush2.msra.mxu0 0.0
        %2199 = vmatprep.subr.mxu0 0.0
        %2200 = vmatpush2.msra.mxu0 0.0
        %2201 = vmatprep.subr.mxu0 0.0
        %2202 = vmatpush2.msra.mxu0 0.0
        %2203 = vmatprep.subr.mxu0 0.0
        %2204 = vmatpush2.msra.mxu0 0.0
        %2205 = vmatprep.mubr.f32.mxu0 0.0
        %2206 = vmatmul.mubr.f32.gmra.mxu0 %v2139
        %v2207 = vpop.f32.mrf.mxu0
        %v2208 = vadd.f32 0.0, %v2207
        %v2209 = vpop.f32.mrf.mxu0
        %2210 = vdwg.mxu0
        %s2211 = scalar_lea.vmem %s793, 16
        %v2212 = vld [vmem:[%s2211] sm:$0xff]
        %v2214 = vsel %vm1080, %v2208, 0
        %2216 = vmatprep.subr.mxu0 0.0
        %2217 = vmatpush1.msra.mxu0 0.0
        %2218 = vmatprep.subr.mxu0 0.0
        %2219 = vmatpush1.msra.mxu0 0.0
        %2220 = vmatprep.subr.mxu0 0.0
        %2221 = vmatpush1.msra.mxu0 0.0
        %2222 = vmatprep.subr.mxu0 0.0
        %2223 = vmatpush1.msra.mxu0 0.0
        %2224 = vmatprep.subr.mxu0 0.0
        %2225 = vmatpush1.msra.mxu0 0.0
        %2226 = vmatprep.subr.mxu0 0.0
        %2227 = vmatpush1.msra.mxu0 0.0
        %2228 = vmatprep.subr.mxu0 0.0
        %2229 = vmatpush1.msra.mxu0 0.0
        %2230 = vmatprep.subr.mxu0 0.0
        %2231 = vmatpush1.msra.mxu0 0.0
        %2232 = vmatprep.subr.mxu0 0.0
        %2233 = vmatpush1.msra.mxu0 0.0
        %2234 = vmatprep.subr.mxu0 0.0
        %2235 = vmatpush1.msra.mxu0 0.0
        %2236 = vmatprep.subr.mxu0 0.0
        %2237 = vmatpush1.msra.mxu0 0.0
        %2238 = vmatprep.subr.mxu0 0.0
        %2239 = vmatpush1.msra.mxu0 0.0
        %2240 = vmatprep.subr.mxu0 0.0
        %2241 = vmatpush1.msra.mxu0 0.0
        %2242 = vmatprep.subr.mxu0 0.0
        %2243 = vmatpush1.msra.mxu0 0.0
        %2244 = vmatprep.subr.mxu0 0.0
        %2245 = vmatpush1.msra.mxu0 0.0
        %2246 = vmatprep.subr.mxu0 0.0
        %2247 = vmatpush1.msra.mxu0 %v2212
        %2248 = vmatprep.subr.mxu0 0.0
        %2249 = vmatpush2.msra.mxu0 0.0
        %2250 = vmatprep.subr.mxu0 0.0
        %2251 = vmatpush2.msra.mxu0 0.0
        %2252 = vmatprep.subr.mxu0 0.0
        %2253 = vmatpush2.msra.mxu0 0.0
        %2254 = vmatprep.subr.mxu0 0.0
        %2255 = vmatpush2.msra.mxu0 0.0
        %2256 = vmatprep.subr.mxu0 0.0
        %2257 = vmatpush2.msra.mxu0 0.0
        %2258 = vmatprep.subr.mxu0 0.0
        %2259 = vmatpush2.msra.mxu0 0.0
        %2260 = vmatprep.subr.mxu0 0.0
        %2261 = vmatpush2.msra.mxu0 0.0
        %2262 = vmatprep.subr.mxu0 0.0
        %2263 = vmatpush2.msra.mxu0 0.0
        %2264 = vmatprep.subr.mxu0 0.0
        %2265 = vmatpush2.msra.mxu0 0.0
        %2266 = vmatprep.subr.mxu0 0.0
        %2267 = vmatpush2.msra.mxu0 0.0
        %2268 = vmatprep.subr.mxu0 0.0
        %2269 = vmatpush2.msra.mxu0 0.0
        %2270 = vmatprep.subr.mxu0 0.0
        %2271 = vmatpush2.msra.mxu0 0.0
        %2272 = vmatprep.subr.mxu0 0.0
        %2273 = vmatpush2.msra.mxu0 0.0
        %2274 = vmatprep.subr.mxu0 0.0
        %2275 = vmatpush2.msra.mxu0 0.0
        %2276 = vmatprep.subr.mxu0 0.0
        %2277 = vmatpush2.msra.mxu0 0.0
        %2278 = vmatprep.subr.mxu0 0.0
        %2279 = vmatpush2.msra.mxu0 0.0
        %2280 = vmatprep.mubr.f32.mxu0 0.0
        %2281 = vmatmul.mubr.f32.gmra.mxu0 %v2214
        %v2282 = vpop.f32.mrf.mxu0
        %v2283 = vadd.f32 0.0, %v2282
        %v2284 = vpop.f32.mrf.mxu0
        %2285 = vdwg.mxu0
        %v2286 = vadd.f32 %v1798, %v2283
        %s2287 = scalar_lea.vmem %s766, 96
        %v2288 = vld [vmem:[%s2287] sm:$0xff]
        %v2289 = vld [vmem:[%s2287 + $0x8] sm:$0xff]
        %v2290 = vld [vmem:[%s2287 + $0x10] sm:$0xff]
        %v2291 = vld [vmem:[%s2287 + $0x18] sm:$0xff]
        %s2292 = scalar_lea.vmem %s770, 3
        %v2293 = vld [vmem:[%s2292] sm:$0x1]
        %v2295 = vlaneseq
        %v2296 = vshrl.u32 %v2295, 7
        %v2297 = vsub.s32 0, %v2296
        %v2298 = vrot.slane %v2293, %v2297
        %2300 = vmatprep.subr.mxu0 0.0
        %2301 = vmatpush1.msra.mxu0 0.0
        %2302 = vmatprep.subr.mxu0 0.0
        %2303 = vmatpush1.msra.mxu0 0.0
        %2304 = vmatprep.subr.mxu0 0.0
        %2305 = vmatpush1.msra.mxu0 0.0
        %2306 = vmatprep.subr.mxu0 0.0
        %2307 = vmatpush1.msra.mxu0 0.0
        %2308 = vmatprep.subr.mxu0 0.0
        %2309 = vmatpush1.msra.mxu0 0.0
        %2310 = vmatprep.subr.mxu0 0.0
        %2311 = vmatpush1.msra.mxu0 0.0
        %2312 = vmatprep.subr.mxu0 0.0
        %2313 = vmatpush1.msra.mxu0 0.0
        %2314 = vmatprep.subr.mxu0 0.0
        %2315 = vmatpush1.msra.mxu0 0.0
        %2316 = vmatprep.subr.mxu0 0.0
        %2317 = vmatpush1.msra.mxu0 0.0
        %2318 = vmatprep.subr.mxu0 0.0
        %2319 = vmatpush1.msra.mxu0 0.0
        %2320 = vmatprep.subr.mxu0 0.0
        %2321 = vmatpush1.msra.mxu0 0.0
        %2322 = vmatprep.subr.mxu0 0.0
        %2323 = vmatpush1.msra.mxu0 0.0
        %2324 = vmatprep.subr.mxu0 0.0
        %2325 = vmatpush1.msra.mxu0 %v2291
        %2326 = vmatprep.subr.mxu0 0.0
        %2327 = vmatpush1.msra.mxu0 %v2290
        %2328 = vmatprep.subr.mxu0 0.0
        %2329 = vmatpush1.msra.mxu0 %v2289
        %2330 = vmatprep.subr.mxu0 0.0
        %2331 = vmatpush1.msra.mxu0 %v2288
        %2332 = vmatprep.subr.mxu0 0.0
        %2333 = vmatpush2.msra.mxu0 0.0
        %2334 = vmatprep.subr.mxu0 0.0
        %2335 = vmatpush2.msra.mxu0 0.0
        %2336 = vmatprep.subr.mxu0 0.0
        %2337 = vmatpush2.msra.mxu0 0.0
        %2338 = vmatprep.subr.mxu0 0.0
        %2339 = vmatpush2.msra.mxu0 0.0
        %2340 = vmatprep.subr.mxu0 0.0
        %2341 = vmatpush2.msra.mxu0 0.0
        %2342 = vmatprep.subr.mxu0 0.0
        %2343 = vmatpush2.msra.mxu0 0.0
        %2344 = vmatprep.subr.mxu0 0.0
        %2345 = vmatpush2.msra.mxu0 0.0
        %2346 = vmatprep.subr.mxu0 0.0
        %2347 = vmatpush2.msra.mxu0 0.0
        %2348 = vmatprep.subr.mxu0 0.0
        %2349 = vmatpush2.msra.mxu0 0.0
        %2350 = vmatprep.subr.mxu0 0.0
        %2351 = vmatpush2.msra.mxu0 0.0
        %2352 = vmatprep.subr.mxu0 0.0
        %2353 = vmatpush2.msra.mxu0 0.0
        %2354 = vmatprep.subr.mxu0 0.0
        %2355 = vmatpush2.msra.mxu0 0.0
        %2356 = vmatprep.subr.mxu0 0.0
        %2357 = vmatpush2.msra.mxu0 0.0
        %2358 = vmatprep.subr.mxu0 0.0
        %2359 = vmatpush2.msra.mxu0 0.0
        %2360 = vmatprep.subr.mxu0 0.0
        %2361 = vmatpush2.msra.mxu0 0.0
        %2362 = vmatprep.subr.mxu0 0.0
        %2363 = vmatpush2.msra.mxu0 0.0
        %2364 = vmatprep.mubr.f32.mxu0 0.0
        %2365 = vmatmul.mubr.f32.gmra.mxu0 %v846
        %v2366 = vpop.f32.mrf.mxu0
        %v2367 = vadd.f32 %v2298, %v2366
        %v2368 = vpop.f32.mrf.mxu0
        %2369 = vdwg.mxu0
        %s2370 = scalar_lea.vmem %s775, 96
        %v2371 = vld [vmem:[%s2370] sm:$0xff]
        %v2372 = vld [vmem:[%s2370 + $0x8] sm:$0xff]
        %v2373 = vld [vmem:[%s2370 + $0x10] sm:$0xff]
        %v2374 = vld [vmem:[%s2370 + $0x18] sm:$0xff]
        %s2375 = scalar_lea.vmem %s779, 3
        %v2376 = vld [vmem:[%s2375] sm:$0x1]
        %v2378 = vlaneseq
        %v2379 = vshrl.u32 %v2378, 7
        %v2380 = vsub.s32 0, %v2379
        %v2381 = vrot.slane %v2376, %v2380
        %2383 = vmatprep.subr.mxu0 0.0
        %2384 = vmatpush1.msra.mxu0 0.0
        %2385 = vmatprep.subr.mxu0 0.0
        %2386 = vmatpush1.msra.mxu0 0.0
        %2387 = vmatprep.subr.mxu0 0.0
        %2388 = vmatpush1.msra.mxu0 0.0
        %2389 = vmatprep.subr.mxu0 0.0
        %2390 = vmatpush1.msra.mxu0 0.0
        %2391 = vmatprep.subr.mxu0 0.0
        %2392 = vmatpush1.msra.mxu0 0.0
        %2393 = vmatprep.subr.mxu0 0.0
        %2394 = vmatpush1.msra.mxu0 0.0
        %2395 = vmatprep.subr.mxu0 0.0
        %2396 = vmatpush1.msra.mxu0 0.0
        %2397 = vmatprep.subr.mxu0 0.0
        %2398 = vmatpush1.msra.mxu0 0.0
        %2399 = vmatprep.subr.mxu0 0.0
        %2400 = vmatpush1.msra.mxu0 0.0
        %2401 = vmatprep.subr.mxu0 0.0
        %2402 = vmatpush1.msra.mxu0 0.0
        %2403 = vmatprep.subr.mxu0 0.0
        %2404 = vmatpush1.msra.mxu0 0.0
        %2405 = vmatprep.subr.mxu0 0.0
        %2406 = vmatpush1.msra.mxu0 0.0
        %2407 = vmatprep.subr.mxu0 0.0
        %2408 = vmatpush1.msra.mxu0 %v2374
        %2409 = vmatprep.subr.mxu0 0.0
        %2410 = vmatpush1.msra.mxu0 %v2373
        %2411 = vmatprep.subr.mxu0 0.0
        %2412 = vmatpush1.msra.mxu0 %v2372
        %2413 = vmatprep.subr.mxu0 0.0
        %2414 = vmatpush1.msra.mxu0 %v2371
        %2415 = vmatprep.subr.mxu0 0.0
        %2416 = vmatpush2.msra.mxu0 0.0
        %2417 = vmatprep.subr.mxu0 0.0
        %2418 = vmatpush2.msra.mxu0 0.0
        %2419 = vmatprep.subr.mxu0 0.0
        %2420 = vmatpush2.msra.mxu0 0.0
        %2421 = vmatprep.subr.mxu0 0.0
        %2422 = vmatpush2.msra.mxu0 0.0
        %2423 = vmatprep.subr.mxu0 0.0
        %2424 = vmatpush2.msra.mxu0 0.0
        %2425 = vmatprep.subr.mxu0 0.0
        %2426 = vmatpush2.msra.mxu0 0.0
        %2427 = vmatprep.subr.mxu0 0.0
        %2428 = vmatpush2.msra.mxu0 0.0
        %2429 = vmatprep.subr.mxu0 0.0
        %2430 = vmatpush2.msra.mxu0 0.0
        %2431 = vmatprep.subr.mxu0 0.0
        %2432 = vmatpush2.msra.mxu0 0.0
        %2433 = vmatprep.subr.mxu0 0.0
        %2434 = vmatpush2.msra.mxu0 0.0
        %2435 = vmatprep.subr.mxu0 0.0
        %2436 = vmatpush2.msra.mxu0 0.0
        %2437 = vmatprep.subr.mxu0 0.0
        %2438 = vmatpush2.msra.mxu0 0.0
        %2439 = vmatprep.subr.mxu0 0.0
        %2440 = vmatpush2.msra.mxu0 0.0
        %2441 = vmatprep.subr.mxu0 0.0
        %2442 = vmatpush2.msra.mxu0 0.0
        %2443 = vmatprep.subr.mxu0 0.0
        %2444 = vmatpush2.msra.mxu0 0.0
        %2445 = vmatprep.subr.mxu0 0.0
        %2446 = vmatpush2.msra.mxu0 0.0
        %2447 = vmatprep.mubr.f32.mxu0 0.0
        %2448 = vmatmul.mubr.f32.gmra.mxu0 %v846
        %v2449 = vpop.f32.mrf.mxu0
        %v2450 = vadd.f32 %v2381, %v2449
        %v2451 = vpop.f32.mrf.mxu0
        %2452 = vdwg.mxu0
        %s2453 = scalar_lea.vmem %s784, 96
        %v2454 = vld [vmem:[%s2453] sm:$0xff]
        %v2455 = vld [vmem:[%s2453 + $0x8] sm:$0xff]
        %v2456 = vld [vmem:[%s2453 + $0x10] sm:$0xff]
        %v2457 = vld [vmem:[%s2453 + $0x18] sm:$0xff]
        %s2458 = scalar_lea.vmem %s788, 3
        %v2459 = vld [vmem:[%s2458] sm:$0x1]
        %v2461 = vlaneseq
        %v2462 = vshrl.u32 %v2461, 7
        %v2463 = vsub.s32 0, %v2462
        %v2464 = vrot.slane %v2459, %v2463
        %2466 = vmatprep.subr.mxu0 0.0
        %2467 = vmatpush1.msra.mxu0 0.0
        %2468 = vmatprep.subr.mxu0 0.0
        %2469 = vmatpush1.msra.mxu0 0.0
        %2470 = vmatprep.subr.mxu0 0.0
        %2471 = vmatpush1.msra.mxu0 0.0
        %2472 = vmatprep.subr.mxu0 0.0
        %2473 = vmatpush1.msra.mxu0 0.0
        %2474 = vmatprep.subr.mxu0 0.0
        %2475 = vmatpush1.msra.mxu0 0.0
        %2476 = vmatprep.subr.mxu0 0.0
        %2477 = vmatpush1.msra.mxu0 0.0
        %2478 = vmatprep.subr.mxu0 0.0
        %2479 = vmatpush1.msra.mxu0 0.0
        %2480 = vmatprep.subr.mxu0 0.0
        %2481 = vmatpush1.msra.mxu0 0.0
        %2482 = vmatprep.subr.mxu0 0.0
        %2483 = vmatpush1.msra.mxu0 0.0
        %2484 = vmatprep.subr.mxu0 0.0
        %2485 = vmatpush1.msra.mxu0 0.0
        %2486 = vmatprep.subr.mxu0 0.0
        %2487 = vmatpush1.msra.mxu0 0.0
        %2488 = vmatprep.subr.mxu0 0.0
        %2489 = vmatpush1.msra.mxu0 0.0
        %2490 = vmatprep.subr.mxu0 0.0
        %2491 = vmatpush1.msra.mxu0 %v2457
        %2492 = vmatprep.subr.mxu0 0.0
        %2493 = vmatpush1.msra.mxu0 %v2456
        %2494 = vmatprep.subr.mxu0 0.0
        %2495 = vmatpush1.msra.mxu0 %v2455
        %2496 = vmatprep.subr.mxu0 0.0
        %2497 = vmatpush1.msra.mxu0 %v2454
        %2498 = vmatprep.subr.mxu0 0.0
        %2499 = vmatpush2.msra.mxu0 0.0
        %2500 = vmatprep.subr.mxu0 0.0
        %2501 = vmatpush2.msra.mxu0 0.0
        %2502 = vmatprep.subr.mxu0 0.0
        %2503 = vmatpush2.msra.mxu0 0.0
        %2504 = vmatprep.subr.mxu0 0.0
        %2505 = vmatpush2.msra.mxu0 0.0
        %2506 = vmatprep.subr.mxu0 0.0
        %2507 = vmatpush2.msra.mxu0 0.0
        %2508 = vmatprep.subr.mxu0 0.0
        %2509 = vmatpush2.msra.mxu0 0.0
        %2510 = vmatprep.subr.mxu0 0.0
        %2511 = vmatpush2.msra.mxu0 0.0
        %2512 = vmatprep.subr.mxu0 0.0
        %2513 = vmatpush2.msra.mxu0 0.0
        %2514 = vmatprep.subr.mxu0 0.0
        %2515 = vmatpush2.msra.mxu0 0.0
        %2516 = vmatprep.subr.mxu0 0.0
        %2517 = vmatpush2.msra.mxu0 0.0
        %2518 = vmatprep.subr.mxu0 0.0
        %2519 = vmatpush2.msra.mxu0 0.0
        %2520 = vmatprep.subr.mxu0 0.0
        %2521 = vmatpush2.msra.mxu0 0.0
        %2522 = vmatprep.subr.mxu0 0.0
        %2523 = vmatpush2.msra.mxu0 0.0
        %2524 = vmatprep.subr.mxu0 0.0
        %2525 = vmatpush2.msra.mxu0 0.0
        %2526 = vmatprep.subr.mxu0 0.0
        %2527 = vmatpush2.msra.mxu0 0.0
        %2528 = vmatprep.subr.mxu0 0.0
        %2529 = vmatpush2.msra.mxu0 0.0
        %2530 = vmatprep.mubr.f32.mxu0 0.0
        %2531 = vmatmul.mubr.f32.gmra.mxu0 %v846
        %v2532 = vpop.f32.mrf.mxu0
        %v2533 = vadd.f32 %v2464, %v2532
        %v2534 = vpop.f32.mrf.mxu0
        %2535 = vdwg.mxu0
        %v2537 = vsel %vm1080, %v2367, 0
        %v2540 = vsel %vm1080, %v2450, 0
        %2542 = vmatprep.subr.mxu0 0.0
        %2543 = vmatpush1.xpose.msra.mxu0 0.0
        %2544 = vmatprep.subr.mxu0 0.0
        %2545 = vmatpush1.xpose.msra.mxu0 0.0
        %2546 = vmatprep.subr.mxu0 0.0
        %2547 = vmatpush1.xpose.msra.mxu0 0.0
        %2548 = vmatprep.subr.mxu0 0.0
        %2549 = vmatpush1.xpose.msra.mxu0 0.0
        %2550 = vmatprep.subr.mxu0 0.0
        %2551 = vmatpush1.xpose.msra.mxu0 0.0
        %2552 = vmatprep.subr.mxu0 0.0
        %2553 = vmatpush1.xpose.msra.mxu0 0.0
        %2554 = vmatprep.subr.mxu0 0.0
        %2555 = vmatpush1.xpose.msra.mxu0 0.0
        %2556 = vmatprep.subr.mxu0 0.0
        %2557 = vmatpush1.xpose.msra.mxu0 0.0
        %2558 = vmatprep.subr.mxu0 0.0
        %2559 = vmatpush1.xpose.msra.mxu0 0.0
        %2560 = vmatprep.subr.mxu0 0.0
        %2561 = vmatpush1.xpose.msra.mxu0 0.0
        %2562 = vmatprep.subr.mxu0 0.0
        %2563 = vmatpush1.xpose.msra.mxu0 0.0
        %2564 = vmatprep.subr.mxu0 0.0
        %2565 = vmatpush1.xpose.msra.mxu0 0.0
        %2566 = vmatprep.subr.mxu0 0.0
        %2567 = vmatpush1.xpose.msra.mxu0 0.0
        %2568 = vmatprep.subr.mxu0 0.0
        %2569 = vmatpush1.xpose.msra.mxu0 0.0
        %2570 = vmatprep.subr.mxu0 0.0
        %2571 = vmatpush1.xpose.msra.mxu0 0.0
        %2572 = vmatprep.subr.mxu0 0.0
        %2573 = vmatpush1.xpose.msra.mxu0 %v2540
        %2574 = vmatprep.subr.mxu0 0.0
        %2575 = vmatpush2.xpose.msra.mxu0 0.0
        %2576 = vmatprep.subr.mxu0 0.0
        %2577 = vmatpush2.xpose.msra.mxu0 0.0
        %2578 = vmatprep.subr.mxu0 0.0
        %2579 = vmatpush2.xpose.msra.mxu0 0.0
        %2580 = vmatprep.subr.mxu0 0.0
        %2581 = vmatpush2.xpose.msra.mxu0 0.0
        %2582 = vmatprep.subr.mxu0 0.0
        %2583 = vmatpush2.xpose.msra.mxu0 0.0
        %2584 = vmatprep.subr.mxu0 0.0
        %2585 = vmatpush2.xpose.msra.mxu0 0.0
        %2586 = vmatprep.subr.mxu0 0.0
        %2587 = vmatpush2.xpose.msra.mxu0 0.0
        %2588 = vmatprep.subr.mxu0 0.0
        %2589 = vmatpush2.xpose.msra.mxu0 0.0
        %2590 = vmatprep.subr.mxu0 0.0
        %2591 = vmatpush2.xpose.msra.mxu0 0.0
        %2592 = vmatprep.subr.mxu0 0.0
        %2593 = vmatpush2.xpose.msra.mxu0 0.0
        %2594 = vmatprep.subr.mxu0 0.0
        %2595 = vmatpush2.xpose.msra.mxu0 0.0
        %2596 = vmatprep.subr.mxu0 0.0
        %2597 = vmatpush2.xpose.msra.mxu0 0.0
        %2598 = vmatprep.subr.mxu0 0.0
        %2599 = vmatpush2.xpose.msra.mxu0 0.0
        %2600 = vmatprep.subr.mxu0 0.0
        %2601 = vmatpush2.xpose.msra.mxu0 0.0
        %2602 = vmatprep.subr.mxu0 0.0
        %2603 = vmatpush2.xpose.msra.mxu0 0.0
        %2604 = vmatprep.subr.mxu0 0.0
        %2605 = vmatpush2.xpose.msra.mxu0 0.0
        %2606 = vmatprep.mubr.f32.mxu0 0.0
        %2607 = vmatmul.mubr.f32.gmra.mxu0 %v2537
        %v2608 = vpop.f32.mrf.mxu0
        %v2609 = vadd.f32 0.0, %v2608
        %v2610 = vpop.f32.mrf.mxu0
        %2611 = vdwg.mxu0
        %v2612 = vmul.f32 %v2609, 0.35355338
        %v2613 = vsel %vm1080, %v2612, -inf
        %2614 = vmax.xlane.f32.xlu0 %v2613
        %v2615 = vpop.xlane.xlu0 %2614
        %v2616 = vsub.f32 %v2612, %v2615
        %v2617 = vmul.f32 %v2616, 1.442695
        %v2618 = vpow.pop %v2617
        %v2619 = vsel %vm1080, %v2618, 0.0
        %2620 = vadd.xlane.f32.xlu0 %v2619
        %v2621 = vpop.xlane.xlu0 %2620
        %v2622 = vrcp.pop %v2621
        %v2623 = vmul.f32 %v2618, %v2622
        %v2625 = vsel %vm1080, %v2623, 0
        %2627 = vmatprep.subr.mxu0 0.0
        %2628 = vmatpush1.msra.mxu0 0.0
        %2629 = vmatprep.subr.mxu0 0.0
        %2630 = vmatpush1.msra.mxu0 0.0
        %2631 = vmatprep.subr.mxu0 0.0
        %2632 = vmatpush1.msra.mxu0 0.0
        %2633 = vmatprep.subr.mxu0 0.0
        %2634 = vmatpush1.msra.mxu0 0.0
        %2635 = vmatprep.subr.mxu0 0.0
        %2636 = vmatpush1.msra.mxu0 0.0
        %2637 = vmatprep.subr.mxu0 0.0
        %2638 = vmatpush1.msra.mxu0 0.0
        %2639 = vmatprep.subr.mxu0 0.0
        %2640 = vmatpush1.msra.mxu0 0.0
        %2641 = vmatprep.subr.mxu0 0.0
        %2642 = vmatpush1.msra.mxu0 0.0
        %2643 = vmatprep.subr.mxu0 0.0
        %2644 = vmatpush1.msra.mxu0 0.0
        %2645 = vmatprep.subr.mxu0 0.0
        %2646 = vmatpush1.msra.mxu0 0.0
        %2647 = vmatprep.subr.mxu0 0.0
        %2648 = vmatpush1.msra.mxu0 0.0
        %2649 = vmatprep.subr.mxu0 0.0
        %2650 = vmatpush1.msra.mxu0 0.0
        %2651 = vmatprep.subr.mxu0 0.0
        %2652 = vmatpush1.msra.mxu0 0.0
        %2653 = vmatprep.subr.mxu0 0.0
        %2654 = vmatpush1.msra.mxu0 0.0
        %2655 = vmatprep.subr.mxu0 0.0
        %2656 = vmatpush1.msra.mxu0 0.0
        %2657 = vmatprep.subr.mxu0 0.0
        %2658 = vmatpush1.msra.mxu0 %v2533
        %2659 = vmatprep.subr.mxu0 0.0
        %2660 = vmatpush2.msra.mxu0 0.0
        %2661 = vmatprep.subr.mxu0 0.0
        %2662 = vmatpush2.msra.mxu0 0.0
        %2663 = vmatprep.subr.mxu0 0.0
        %2664 = vmatpush2.msra.mxu0 0.0
        %2665 = vmatprep.subr.mxu0 0.0
        %2666 = vmatpush2.msra.mxu0 0.0
        %2667 = vmatprep.subr.mxu0 0.0
        %2668 = vmatpush2.msra.mxu0 0.0
        %2669 = vmatprep.subr.mxu0 0.0
        %2670 = vmatpush2.msra.mxu0 0.0
        %2671 = vmatprep.subr.mxu0 0.0
        %2672 = vmatpush2.msra.mxu0 0.0
        %2673 = vmatprep.subr.mxu0 0.0
        %2674 = vmatpush2.msra.mxu0 0.0
        %2675 = vmatprep.subr.mxu0 0.0
        %2676 = vmatpush2.msra.mxu0 0.0
        %2677 = vmatprep.subr.mxu0 0.0
        %2678 = vmatpush2.msra.mxu0 0.0
        %2679 = vmatprep.subr.mxu0 0.0
        %2680 = vmatpush2.msra.mxu0 0.0
        %2681 = vmatprep.subr.mxu0 0.0
        %2682 = vmatpush2.msra.mxu0 0.0
        %2683 = vmatprep.subr.mxu0 0.0
        %2684 = vmatpush2.msra.mxu0 0.0
        %2685 = vmatprep.subr.mxu0 0.0
        %2686 = vmatpush2.msra.mxu0 0.0
        %2687 = vmatprep.subr.mxu0 0.0
        %2688 = vmatpush2.msra.mxu0 0.0
        %2689 = vmatprep.subr.mxu0 0.0
        %2690 = vmatpush2.msra.mxu0 0.0
        %2691 = vmatprep.mubr.f32.mxu0 0.0
        %2692 = vmatmul.mubr.f32.gmra.mxu0 %v2625
        %v2693 = vpop.f32.mrf.mxu0
        %v2694 = vadd.f32 0.0, %v2693
        %v2695 = vpop.f32.mrf.mxu0
        %2696 = vdwg.mxu0
        %s2697 = scalar_lea.vmem %s793, 24
        %v2698 = vld [vmem:[%s2697] sm:$0xff]
        %v2700 = vsel %vm1080, %v2694, 0
        %2702 = vmatprep.subr.mxu0 0.0
        %2703 = vmatpush1.msra.mxu0 0.0
        %2704 = vmatprep.subr.mxu0 0.0
        %2705 = vmatpush1.msra.mxu0 0.0
        %2706 = vmatprep.subr.mxu0 0.0
        %2707 = vmatpush1.msra.mxu0 0.0
        %2708 = vmatprep.subr.mxu0 0.0
        %2709 = vmatpush1.msra.mxu0 0.0
        %2710 = vmatprep.subr.mxu0 0.0
        %2711 = vmatpush1.msra.mxu0 0.0
        %2712 = vmatprep.subr.mxu0 0.0
        %2713 = vmatpush1.msra.mxu0 0.0
        %2714 = vmatprep.subr.mxu0 0.0
        %2715 = vmatpush1.msra.mxu0 0.0
        %2716 = vmatprep.subr.mxu0 0.0
        %2717 = vmatpush1.msra.mxu0 0.0
        %2718 = vmatprep.subr.mxu0 0.0
        %2719 = vmatpush1.msra.mxu0 0.0
        %2720 = vmatprep.subr.mxu0 0.0
        %2721 = vmatpush1.msra.mxu0 0.0
        %2722 = vmatprep.subr.mxu0 0.0
        %2723 = vmatpush1.msra.mxu0 0.0
        %2724 = vmatprep.subr.mxu0 0.0
        %2725 = vmatpush1.msra.mxu0 0.0
        %2726 = vmatprep.subr.mxu0 0.0
        %2727 = vmatpush1.msra.mxu0 0.0
        %2728 = vmatprep.subr.mxu0 0.0
        %2729 = vmatpush1.msra.mxu0 0.0
        %2730 = vmatprep.subr.mxu0 0.0
        %2731 = vmatpush1.msra.mxu0 0.0
        %2732 = vmatprep.subr.mxu0 0.0
        %2733 = vmatpush1.msra.mxu0 %v2698
        %2734 = vmatprep.subr.mxu0 0.0
        %2735 = vmatpush2.msra.mxu0 0.0
        %2736 = vmatprep.subr.mxu0 0.0
        %2737 = vmatpush2.msra.mxu0 0.0
        %2738 = vmatprep.subr.mxu0 0.0
        %2739 = vmatpush2.msra.mxu0 0.0
        %2740 = vmatprep.subr.mxu0 0.0
        %2741 = vmatpush2.msra.mxu0 0.0
        %2742 = vmatprep.subr.mxu0 0.0
        %2743 = vmatpush2.msra.mxu0 0.0
        %2744 = vmatprep.subr.mxu0 0.0
        %2745 = vmatpush2.msra.mxu0 0.0
        %2746 = vmatprep.subr.mxu0 0.0
        %2747 = vmatpush2.msra.mxu0 0.0
        %2748 = vmatprep.subr.mxu0 0.0
        %2749 = vmatpush2.msra.mxu0 0.0
        %2750 = vmatprep.subr.mxu0 0.0
        %2751 = vmatpush2.msra.mxu0 0.0
        %2752 = vmatprep.subr.mxu0 0.0
        %2753 = vmatpush2.msra.mxu0 0.0
        %2754 = vmatprep.subr.mxu0 0.0
        %2755 = vmatpush2.msra.mxu0 0.0
        %2756 = vmatprep.subr.mxu0 0.0
        %2757 = vmatpush2.msra.mxu0 0.0
        %2758 = vmatprep.subr.mxu0 0.0
        %2759 = vmatpush2.msra.mxu0 0.0
        %2760 = vmatprep.subr.mxu0 0.0
        %2761 = vmatpush2.msra.mxu0 0.0
        %2762 = vmatprep.subr.mxu0 0.0
        %2763 = vmatpush2.msra.mxu0 0.0
        %2764 = vmatprep.subr.mxu0 0.0
        %2765 = vmatpush2.msra.mxu0 0.0
        %2766 = vmatprep.mubr.f32.mxu0 0.0
        %2767 = vmatmul.mubr.f32.gmra.mxu0 %v2700
        %v2768 = vpop.f32.mrf.mxu0
        %v2769 = vadd.f32 0.0, %v2768
        %v2770 = vpop.f32.mrf.mxu0
        %2771 = vdwg.mxu0
        %v2772 = vadd.f32 %v2286, %v2769
        %v2773 = vld [vmem:[%s796] sm:$0x1]
        %v2775 = vlaneseq
        %v2776 = vshrl.u32 %v2775, 7
        %v2777 = vsub.s32 0, %v2776
        %v2778 = vrot.slane %v2773, %v2777
        %v2780 = vadd.f32 %v2772, %v2778
        %v2781 = vadd.f32 %v832, %v2780
        %v2782 = vld [vmem:[%s799] sm:$0x1]
        %v2783 = vld [vmem:[%s802] sm:$0x1]
        %v2784 = vsel %vm844, %v2781, 0.0
        %2785 = vadd.xlane.f32.xlu0 %v2784
        %v2786 = vpop.xlane.xlu0 %2785
        %v2787 = vrcp.pop 32.0
        %v2788 = vmul.f32 %v2786, %v2787
        %v2789 = vsub.f32 %v2781, %v2788
        %v2790 = vmul.f32 %v2789, %v2789
        %v2791 = vsel %vm844, %v2790, 0.0
        %2792 = vadd.xlane.f32.xlu0 %v2791
        %v2793 = vpop.xlane.xlu0 %2792
        %v2794 = vmul.f32 %v2793, %v2787
        %v2795 = vadd.f32 %v2794, 1e-05
        %v2796 = vrsqrt.pop %v2795
        %v2797 = vmul.f32 %v2789, %v2796
        %v2799 = vlaneseq
        %v2800 = vshrl.u32 %v2799, 7
        %v2801 = vsub.s32 0, %v2800
        %v2802 = vrot.slane %v2782, %v2801
        %v2804 = vmul.f32 %v2797, %v2802
        %v2806 = vlaneseq
        %v2807 = vshrl.u32 %v2806, 7
        %v2808 = vsub.s32 0, %v2807
        %v2809 = vrot.slane %v2783, %v2808
        %v2811 = vadd.f32 %v2804, %v2809
        %v2812 = vld [vmem:[%s807] sm:$0xff]
        %v2813 = vld [vmem:[%s807 + $0x8] sm:$0xff]
        %v2814 = vld [vmem:[%s807 + $0x10] sm:$0xff]
        %v2815 = vld [vmem:[%s807 + $0x18] sm:$0xff]
        %v2816 = vld [vmem:[%s810] sm:$0x1]
        %v2818 = vlaneseq
        %v2819 = vshrl.u32 %v2818, 7
        %v2820 = vsub.s32 0, %v2819
        %v2821 = vrot.slane %v2816, %v2820
        %v2824 = vsel %vm844, %v2811, 0
        %2826 = vmatprep.subr.mxu0 0.0
        %2827 = vmatpush1.msra.mxu0 0.0
        %2828 = vmatprep.subr.mxu0 0.0
        %2829 = vmatpush1.msra.mxu0 0.0
        %2830 = vmatprep.subr.mxu0 0.0
        %2831 = vmatpush1.msra.mxu0 0.0
        %2832 = vmatprep.subr.mxu0 0.0
        %2833 = vmatpush1.msra.mxu0 0.0
        %2834 = vmatprep.subr.mxu0 0.0
        %2835 = vmatpush1.msra.mxu0 0.0
        %2836 = vmatprep.subr.mxu0 0.0
        %2837 = vmatpush1.msra.mxu0 0.0
        %2838 = vmatprep.subr.mxu0 0.0
        %2839 = vmatpush1.msra.mxu0 0.0
        %2840 = vmatprep.subr.mxu0 0.0
        %2841 = vmatpush1.msra.mxu0 0.0
        %2842 = vmatprep.subr.mxu0 0.0
        %2843 = vmatpush1.msra.mxu0 0.0
        %2844 = vmatprep.subr.mxu0 0.0
        %2845 = vmatpush1.msra.mxu0 0.0
        %2846 = vmatprep.subr.mxu0 0.0
        %2847 = vmatpush1.msra.mxu0 0.0
        %2848 = vmatprep.subr.mxu0 0.0
        %2849 = vmatpush1.msra.mxu0 0.0
        %2850 = vmatprep.subr.mxu0 0.0
        %2851 = vmatpush1.msra.mxu0 %v2815
        %2852 = vmatprep.subr.mxu0 0.0
        %2853 = vmatpush1.msra.mxu0 %v2814
        %2854 = vmatprep.subr.mxu0 0.0
        %2855 = vmatpush1.msra.mxu0 %v2813
        %2856 = vmatprep.subr.mxu0 0.0
        %2857 = vmatpush1.msra.mxu0 %v2812
        %2858 = vmatprep.subr.mxu0 0.0
        %2859 = vmatpush2.msra.mxu0 0.0
        %2860 = vmatprep.subr.mxu0 0.0
        %2861 = vmatpush2.msra.mxu0 0.0
        %2862 = vmatprep.subr.mxu0 0.0
        %2863 = vmatpush2.msra.mxu0 0.0
        %2864 = vmatprep.subr.mxu0 0.0
        %2865 = vmatpush2.msra.mxu0 0.0
        %2866 = vmatprep.subr.mxu0 0.0
        %2867 = vmatpush2.msra.mxu0 0.0
        %2868 = vmatprep.subr.mxu0 0.0
        %2869 = vmatpush2.msra.mxu0 0.0
        %2870 = vmatprep.subr.mxu0 0.0
        %2871 = vmatpush2.msra.mxu0 0.0
        %2872 = vmatprep.subr.mxu0 0.0
        %2873 = vmatpush2.msra.mxu0 0.0
        %2874 = vmatprep.subr.mxu0 0.0
        %2875 = vmatpush2.msra.mxu0 0.0
        %2876 = vmatprep.subr.mxu0 0.0
        %2877 = vmatpush2.msra.mxu0 0.0
        %2878 = vmatprep.subr.mxu0 0.0
        %2879 = vmatpush2.msra.mxu0 0.0
        %2880 = vmatprep.subr.mxu0 0.0
        %2881 = vmatpush2.msra.mxu0 0.0
        %2882 = vmatprep.subr.mxu0 0.0
        %2883 = vmatpush2.msra.mxu0 0.0
        %2884 = vmatprep.subr.mxu0 0.0
        %2885 = vmatpush2.msra.mxu0 0.0
        %2886 = vmatprep.subr.mxu0 0.0
        %2887 = vmatpush2.msra.mxu0 0.0
        %2888 = vmatprep.subr.mxu0 0.0
        %2889 = vmatpush2.msra.mxu0 0.0
        %2890 = vmatprep.mubr.f32.mxu0 0.0
        %2891 = vmatmul.mubr.f32.gmra.mxu0 %v2824
        %v2892 = vpop.f32.mrf.mxu0
        %v2893 = vadd.f32 %v2821, %v2892
        %v2894 = vpop.f32.mrf.mxu0
        %2895 = vdwg.mxu0
        %v2896 = vmax.f32 %v2893, 0.0
        %v2897 = vld [vmem:[%s815] sm:$0xff]
        %v2898 = vld [vmem:[%s815 + $0x8] sm:$0xff]
        %v2899 = vld [vmem:[%s815 + $0x10] sm:$0xff]
        %v2900 = vld [vmem:[%s815 + $0x18] sm:$0xff]
        %v2901 = vld [vmem:[%s815 + $0x20] sm:$0xff]
        %v2902 = vld [vmem:[%s815 + $0x28] sm:$0xff]
        %v2903 = vld [vmem:[%s815 + $0x30] sm:$0xff]
        %v2904 = vld [vmem:[%s815 + $0x38] sm:$0xff]
        %v2905 = vld [vmem:[%s818] sm:$0x1]
        %v2907 = vlaneseq
        %v2908 = vshrl.u32 %v2907, 7
        %v2909 = vsub.s32 0, %v2908
        %v2910 = vrot.slane %v2905, %v2909
        %vm2912 = vcmask 523264
        %v2914 = vsel %vm2912, %v2896, 0
        %2916 = vmatprep.subr.mxu0 0.0
        %2917 = vmatpush1.msra.mxu0 0.0
        %2918 = vmatprep.subr.mxu0 0.0
        %2919 = vmatpush1.msra.mxu0 0.0
        %2920 = vmatprep.subr.mxu0 0.0
        %2921 = vmatpush1.msra.mxu0 0.0
        %2922 = vmatprep.subr.mxu0 0.0
        %2923 = vmatpush1.msra.mxu0 0.0
        %2924 = vmatprep.subr.mxu0 0.0
        %2925 = vmatpush1.msra.mxu0 0.0
        %2926 = vmatprep.subr.mxu0 0.0
        %2927 = vmatpush1.msra.mxu0 0.0
        %2928 = vmatprep.subr.mxu0 0.0
        %2929 = vmatpush1.msra.mxu0 0.0
        %2930 = vmatprep.subr.mxu0 0.0
        %2931 = vmatpush1.msra.mxu0 0.0
        %2932 = vmatprep.subr.mxu0 0.0
        %2933 = vmatpush1.msra.mxu0 %v2904
        %2934 = vmatprep.subr.mxu0 0.0
        %2935 = vmatpush1.msra.mxu0 %v2903
        %2936 = vmatprep.subr.mxu0 0.0
        %2937 = vmatpush1.msra.mxu0 %v2902
        %2938 = vmatprep.subr.mxu0 0.0
        %2939 = vmatpush1.msra.mxu0 %v2901
        %2940 = vmatprep.subr.mxu0 0.0
        %2941 = vmatpush1.msra.mxu0 %v2900
        %2942 = vmatprep.subr.mxu0 0.0
        %2943 = vmatpush1.msra.mxu0 %v2899
        %2944 = vmatprep.subr.mxu0 0.0
        %2945 = vmatpush1.msra.mxu0 %v2898
        %2946 = vmatprep.subr.mxu0 0.0
        %2947 = vmatpush1.msra.mxu0 %v2897
        %2948 = vmatprep.subr.mxu0 0.0
        %2949 = vmatpush2.msra.mxu0 0.0
        %2950 = vmatprep.subr.mxu0 0.0
        %2951 = vmatpush2.msra.mxu0 0.0
        %2952 = vmatprep.subr.mxu0 0.0
        %2953 = vmatpush2.msra.mxu0 0.0
        %2954 = vmatprep.subr.mxu0 0.0
        %2955 = vmatpush2.msra.mxu0 0.0
        %2956 = vmatprep.subr.mxu0 0.0
        %2957 = vmatpush2.msra.mxu0 0.0
        %2958 = vmatprep.subr.mxu0 0.0
        %2959 = vmatpush2.msra.mxu0 0.0
        %2960 = vmatprep.subr.mxu0 0.0
        %2961 = vmatpush2.msra.mxu0 0.0
        %2962 = vmatprep.subr.mxu0 0.0
        %2963 = vmatpush2.msra.mxu0 0.0
        %2964 = vmatprep.subr.mxu0 0.0
        %2965 = vmatpush2.msra.mxu0 0.0
        %2966 = vmatprep.subr.mxu0 0.0
        %2967 = vmatpush2.msra.mxu0 0.0
        %2968 = vmatprep.subr.mxu0 0.0
        %2969 = vmatpush2.msra.mxu0 0.0
        %2970 = vmatprep.subr.mxu0 0.0
        %2971 = vmatpush2.msra.mxu0 0.0
        %2972 = vmatprep.subr.mxu0 0.0
        %2973 = vmatpush2.msra.mxu0 0.0
        %2974 = vmatprep.subr.mxu0 0.0
        %2975 = vmatpush2.msra.mxu0 0.0
        %2976 = vmatprep.subr.mxu0 0.0
        %2977 = vmatpush2.msra.mxu0 0.0
        %2978 = vmatprep.subr.mxu0 0.0
        %2979 = vmatpush2.msra.mxu0 0.0
        %2980 = vmatprep.mubr.f32.mxu0 0.0
        %2981 = vmatmul.mubr.f32.gmra.mxu0 %v2914
        %v2982 = vpop.f32.mrf.mxu0
        %v2983 = vadd.f32 %v2910, %v2982
        %v2984 = vpop.f32.mrf.mxu0
        %2985 = vdwg.mxu0
        %v2986 = vadd.f32 %v2811, %v2983
        %v2987 = vld [vmem:[%s821] sm:$0x1]
        %v2988 = vld [vmem:[%s824] sm:$0x1]
        %v2989 = vsel %vm844, %v2986, 0.0
        %2990 = vadd.xlane.f32.xlu0 %v2989
        %v2991 = vpop.xlane.xlu0 %2990
        %v2992 = vmul.f32 %v2991, %v2787
        %v2993 = vsub.f32 %v2986, %v2992
        %v2994 = vmul.f32 %v2993, %v2993
        %v2995 = vsel %vm844, %v2994, 0.0
        %2996 = vadd.xlane.f32.xlu0 %v2995
        %v2997 = vpop.xlane.xlu0 %2996
        %v2998 = vmul.f32 %v2997, %v2787
        %v2999 = vadd.f32 %v2998, 1e-05
        %v3000 = vrsqrt.pop %v2999
        %v3001 = vmul.f32 %v2993, %v3000
        %v3003 = vlaneseq
        %v3004 = vshrl.u32 %v3003, 7
        %v3005 = vsub.s32 0, %v3004
        %v3006 = vrot.slane %v2987, %v3005
        %v3008 = vmul.f32 %v3001, %v3006
        %v3010 = vlaneseq
        %v3011 = vshrl.u32 %v3010, 7
        %v3012 = vsub.s32 0, %v3011
        %v3013 = vrot.slane %v2988, %v3012
        %v3015 = vadd.f32 %v3008, %v3013
        %3016 = vst.msk [vmem:[#allocation2] sm:$0xff] %vm844, %v3015
        %3017 = vst.msk [vmem:[%s757] sm:$0xff] %vm844, %v3015
        %s3018 = sand.u32 %s493, 1
        %s3019 = scalar_lea.sflag [#allocation4], %s3018
        %s3020 = sand.u32 %s493, 1
        %s3021 = smul.addr %s3020, 8
        %s3022 = scalar_lea.vmem [#allocation3], %s3021
        // Predicated region
        $region93: #{transformer_encoder_forward.1} parent=87 // pred_check
          %p3023 = pneg %p503
        $region94: #{transformer_encoder_forward.1} parent=87 // pred_check_branch
          %3025 = sbr.rel (%p3023) target = $region96
        $region95: #{transformer_encoder_forward.1} parent=87 // pred_region
          %s3027 = ssub.s32 128, 128
          %3028 = vsyncadd %s3019, %s3027
          %s3029 = smul.addr %s35, 128
          %s3030 = scalar_lea.hbm %s17, %s3029
          %s3032 = sshll.u32 %s3022, 4
          %s3033 = int_to_ptr.vmem [resolvable:$true] %s3032
          %3035 = dma.vmem_to_hbm [thread:$0]  %s3033, 128, %s3030, %s3019
        $region96: #{transformer_encoder_forward.1} parent=87 // pred_fallthru
          _
      $region88: #{transformer_encoder_forward.1} parent=5 // pred_fallthru
        _
      %p3036 = scmp.le.s32.totalorder 2, %s26
      // Predicated region
      $region97: #{transformer_encoder_forward.1} parent=5 // pred_check
        %p3037 = pneg %p3036
      $region98: #{transformer_encoder_forward.1} parent=5 // pred_check_branch
        %3039 = sbr.rel (%p3037) target = $region100
      $region99: #{transformer_encoder_forward.1} parent=5 // pred_region
        %s3040 = ssub.s32 %s26, 2
        // Predicated region
        $region101: #{transformer_encoder_forward.1} parent=99 // pred_check
          %p3041 = pneg %p509
        $region102: #{transformer_encoder_forward.1} parent=99 // pred_check_branch
          %3043 = sbr.rel (%p3041) target = $region104
        $region103: #{transformer_encoder_forward.1} parent=99 // pred_region
          %s3044 = sand.u32 %s494, 1
          %s3045 = scalar_lea.sflag [#allocation4], %s3044
          %s3046 = sand.u32 %s494, 1
          %s3047 = smul.addr %s3046, 8
          %s3048 = scalar_lea.vmem [#allocation3], %s3047
          %3049 = dma.done %s3045, 128
        $region104: #{transformer_encoder_forward.1} parent=99 // pred_fallthru
          _
      $region100: #{transformer_encoder_forward.1} parent=5 // pred_fallthru
        _
    $region6: #{transformer_encoder_forward.1} parent=1 // loop_footer
      %s30 = sadd.s32 1, %s26
    $region7: #{transformer_encoder_forward.1} parent=1 // loop_footer_branch
      %25 = sbr.rel target = $region3
    $region8: #{transformer_encoder_forward.1} parent=1 // loop_exit
      _
    %3050 = vsyncpa [#allocation4], 1
    %s3051 = scalar_lea.sflag [#allocation4], 1
    %3052 = vsyncpa %s3051, 1

</llo_original>
